<compile_context>
chip_gen: v5e
topology: v5e:2x2
jax: 0.10.0
libtpu: 0.0.40
codegen_flags: <defaults>
</compile_context>

<pallas_src>
import functools

import jax
import jax.numpy as jnp
import numpy as np
from jax.experimental import pallas as pl
from jax.experimental.pallas import tpu as pltpu


def _round_up(v, m):
    return (v + m - 1) // m * m


def _physical_vmem_bytes():
    try:
        cap = getattr(pltpu.get_tpu_info(), "vmem_capacity_bytes", None)
        if cap:
            return int(cap)
    except Exception:
        pass
    return 64 * 1024 * 1024          # conservative fallback (v7x per-core VMEM)


_PHYS_VMEM = _physical_vmem_bytes()


# --------------------------------------------------------------------------
# In-kernel helpers
# --------------------------------------------------------------------------
def _conv3x3_packed(load_rows, w_ref, *, m_rows, Wp, C, lead, tpg, n_groups):
    """Tap-packed 3x3 convolution: ceil(9*C/128) MXU matmuls instead of 9.

    load_rows(off, m) returns an (m, Cp) f32 slab whose row r holds padded-grid
    cell (off - lead + r); channels live in lanes [0, C), all other lanes are
    exactly zero (so the lane rolls cannot contaminate other taps' lane groups).
    """
    cout = w_ref.shape[-1]
    acc = jnp.zeros((m_rows, cout), jnp.float32)
    for g in range(n_groups):
        packed = None
        for tl in range(tpg):
            t = g * tpg + tl
            if t >= 9:
                break
            kh, kw = divmod(t, 3)
            slab = load_rows(lead + kh * Wp + kw, m_rows)
            if tl * C > 0:
                # Move this tap's channels into lanes [tl*C, (tl+1)*C).
                slab = pltpu.roll(slab, shift=tl * C, axis=1)
            packed = slab if packed is None else packed + slab
        acc = acc + jnp.dot(packed.astype(jnp.bfloat16), w_ref[g],
                            preferred_element_type=jnp.float32)
    return acc


# --------------------------------------------------------------------------
# Phase A: conv1 + per-image BN1 partial statistics
# --------------------------------------------------------------------------
def _conv1_stats_kernel(x_ref, mq_ref, w1_ref, y1_ref, st1_ref, *,
                        Wp, C, lead, tpg, n_groups, m_cmp, ctr):
    cp = x_ref.shape[-1]
    load = lambda off, m: x_ref[off:off + m, :]
    y = _conv3x3_packed(load, w1_ref, m_rows=m_cmp, Wp=Wp, C=C, lead=lead,
                        tpg=tpg, n_groups=n_groups)

    # Per-image BatchNorm partial stats over valid output rows only.
    mr = mq_ref[ctr:ctr + m_cmp, :]                       # aligned slice
    ym = y * mr
    st1_ref[0:1, :] = jnp.sum(ym, axis=0, keepdims=True)
    st1_ref[1:2, :] = jnp.sum(ym * y, axis=0, keepdims=True)

    # Store conv1 output in padded-grid layout (row lead+q <-> grid cell q) so
    # phase B reuses the same tap offsets.  All stores dense + aligned.
    y1_ref[0:ctr, :] = jnp.zeros((ctr, cp), jnp.float32)
    y1_ref[ctr:ctr + m_cmp, :] = y
    tail = y1_ref.shape[0] - (ctr + m_cmp)
    if tail > 0:
        y1_ref[ctr + m_cmp:, :] = jnp.zeros((tail, cp), jnp.float32)


# --------------------------------------------------------------------------
# Phase B: bn1 + relu + conv2 + per-image BN2 partial statistics
# --------------------------------------------------------------------------
def _bn1_conv2_stats_kernel(y1_ref, mq_ref, sc1_ref, sh1_ref, w2_ref,
                            y2_ref, st2_ref, act_ref, *,
                            Wp, C, lead, tpg, n_groups, m_cmp, ctr):
    # bn1 + relu over the whole padded-grid block; ring / garbage rows are
    # forced to exactly zero (conv "SAME" padding) with a select.
    a1 = jnp.maximum(y1_ref[...] * sc1_ref[...] + sh1_ref[...], 0.0)
    act_ref[...] = jnp.where(mq_ref[...] > 0.5, a1, 0.0)

    load = lambda off, m: act_ref[off:off + m, :]
    y = _conv3x3_packed(load, w2_ref, m_rows=m_cmp, Wp=Wp, C=C, lead=lead,
                        tpg=tpg, n_groups=n_groups)

    mr = mq_ref[ctr:ctr + m_cmp, :]
    ym = y * mr
    st2_ref[0:1, :] = jnp.sum(ym, axis=0, keepdims=True)
    st2_ref[1:2, :] = jnp.sum(ym * y, axis=0, keepdims=True)
    y2_ref[...] = y


# --------------------------------------------------------------------------
# Phase C: bn2 + residual add + relu
# --------------------------------------------------------------------------
def _bn2_residual_kernel(y2_ref, x_ref, sc2_ref, sh2_ref, o_ref, *, m_cmp, ctr):
    res = x_ref[ctr:ctr + m_cmp, :]                        # aligned residual read
    out = y2_ref[...] * sc2_ref[...] + sh2_ref[...] + res
    o_ref[...] = jnp.maximum(out, 0.0)


# --------------------------------------------------------------------------
# Wrapper
# --------------------------------------------------------------------------
@jax.jit
def basic_block(x_nchw, w1, g1, b1, w2, g2, b2):
    """x_nchw: (N, C, H, W) f32; conv weights HWIO (3,3,C,C). Returns NCHW f32."""
    N, C, H, W = x_nchw.shape
    Hp, Wp = H + 2, W + 2
    Cp = _round_up(max(C, 128), 128)          # lane-dense channel padding
    eps = jnp.float32(1e-5)

    lead = (-(Wp + 1)) % 8                    # aligns centre tap / residual
    ctr = lead + Wp + 1                       # centre-tap offset (mult. of 8)
    R = Hp * Wp                               # padded-grid rows per image
    m_img = (H - 1) * Wp + W                  # last valid wide output row + 1
    m_cmp = _round_up(m_img, 8)               # rows computed per image
    R_blk = _round_up(max(lead + R, lead + 2 * Wp + 2 + m_cmp), 8)
    n_valid = N * H * W

    tpg = max(1, min(9, Cp // C))             # taps packed per matmul group
    n_groups = -(-9 // tpg)

    # ---- glue: NCHW -> NHWC, channel pad, spatial pad by 1, flatten per image
    # TODO(synk): fold this relayout into the kernel index_maps / in-kernel DMA.
    x_nhwc = jnp.transpose(x_nchw, (0, 2, 3, 1)).astype(jnp.float32)
    x_pad = jnp.pad(x_nhwc, ((0, 0), (1, 1), (1, 1), (0, Cp - C)))
    x_img = jnp.pad(x_pad.reshape(N, R, Cp),
                    ((0, 0), (lead, R_blk - lead - R), (0, 0)))
    x2 = x_img.reshape(N * R_blk, Cp)

    # Interior-cell mask in padded-grid layout (shared by all images).
    ih = (jnp.arange(Hp) >= 1) & (jnp.arange(Hp) <= H)
    iw = (jnp.arange(Wp) >= 1) & (jnp.arange(Wp) <= W)
    mq = (ih[:, None] & iw[None, :]).astype(jnp.float32).reshape(R, 1)
    mq = jnp.pad(mq, ((lead, R_blk - lead - R), (0, 0)))

    def pack_w(w):
        wf = w.astype(jnp.float32)
        wp = jnp.zeros((n_groups, Cp, Cp), jnp.float32)
        for t in range(9):
            g, tl = divmod(t, tpg)
            kh, kw = divmod(t, 3)
            wp = wp.at[g, tl * C:(tl + 1) * C, :C].set(wf[kh, kw])
        return wp.astype(jnp.bfloat16)

    def pad_vec(v):
        return jnp.pad(v.astype(jnp.float32), (0, Cp - C)).reshape(1, Cp)

    w1p, w2p = pack_w(w1), pack_w(w2)
    g1p, b1p, g2p, b2p = pad_vec(g1), pad_vec(b1), pad_vec(g2), pad_vec(b2)

    # ---- specs / compiler params ------------------------------------------
    def blk_rows(rows):
        return pl.BlockSpec((rows, Cp), lambda i: (i, 0))

    def full2(shape):
        return pl.BlockSpec(shape, lambda i: (0, 0))

    def full3(shape):
        return pl.BlockSpec(shape, lambda i: (0, 0, 0))

    st_spec = pl.BlockSpec((8, Cp), lambda i: (i, 0))
    st_shape = jax.ShapeDtypeStruct((N * 8, Cp), jnp.float32)

    def cparams(block_bytes):
        need = 2 * int(sum(block_bytes))            # double-buffered blocks
        limit = max(need + (8 << 20), 16 << 20)
        limit = min(limit, int(0.75 * _PHYS_VMEM))  # per-generation headroom
        return pltpu.CompilerParams(dimension_semantics=("parallel",),
                                    vmem_limit_bytes=limit)

    flops_conv = int(2 * N * m_cmp * n_groups * Cp * Cp)

    # ---- phase A: conv1 + bn1 partial stats --------------------------------
    kern_a = functools.partial(_conv1_stats_kernel, Wp=Wp, C=C, lead=lead,
                               tpg=tpg, n_groups=n_groups, m_cmp=m_cmp, ctr=ctr)
    bytes_a = int(2 * N * R_blk * Cp * 4 + mq.size * 4 + w1p.size * 2
                  + N * 8 * Cp * 4)
    y1, st1 = pl.pallas_call(
        kern_a,
        grid=(N,),
        in_specs=[blk_rows(R_blk), full2(mq.shape), full3(w1p.shape)],
        out_specs=(blk_rows(R_blk), st_spec),
        out_shape=(jax.ShapeDtypeStruct((N * R_blk, Cp), jnp.float32), st_shape),
        compiler_params=cparams([R_blk * Cp * 4, mq.size * 4, w1p.size * 2,
                                 R_blk * Cp * 4, 8 * Cp * 4]),
        cost_estimate=pl.CostEstimate(flops=flops_conv, transcendentals=0,
                                      bytes_accessed=bytes_a),
    )(x2, mq, w1p)

    # Two-phase BatchNorm: tiny cross-image reduction + rsqrt in the wrapper.
    def finalize(st, gamma, beta):
        st3 = st.reshape(N, 8, Cp)
        s = jnp.sum(st3[:, 0, :], axis=0, keepdims=True)
        ss = jnp.sum(st3[:, 1, :], axis=0, keepdims=True)
        mean = s / n_valid
        var = ss / n_valid - mean * mean
        scale = jax.lax.rsqrt(var + eps) * gamma
        shift = beta - mean * scale
        return scale, shift

    sc1, sh1 = finalize(st1, g1p, b1p)

    # ---- phase B: bn1 + relu + conv2 + bn2 partial stats --------------------
    kern_b = functools.partial(_bn1_conv2_stats_kernel, Wp=Wp, C=C, lead=lead,
                               tpg=tpg, n_groups=n_groups, m_cmp=m_cmp, ctr=ctr)
    bytes_b = int(N * R_blk * Cp * 4 + N * m_cmp * Cp * 4 + mq.size * 4
                  + w2p.size * 2 + N * 8 * Cp * 4)
    y2, st2 = pl.pallas_call(
        kern_b,
        grid=(N,),
        in_specs=[blk_rows(R_blk), full2(mq.shape), full2(sc1.shape),
                  full2(sh1.shape), full3(w2p.shape)],
        out_specs=(blk_rows(m_cmp), st_spec),
        out_shape=(jax.ShapeDtypeStruct((N * m_cmp, Cp), jnp.float32), st_shape),
        scratch_shapes=[pltpu.VMEM((R_blk, Cp), jnp.float32)],
        compiler_params=cparams([R_blk * Cp * 4, mq.size * 4, 2 * Cp * 4,
                                 w2p.size * 2, m_cmp * Cp * 4, 8 * Cp * 4,
                                 R_blk * Cp * 4]),
        cost_estimate=pl.CostEstimate(flops=flops_conv, transcendentals=0,
                                      bytes_accessed=bytes_b),
    )(y1, mq, sc1, sh1, w2p)

    sc2, sh2 = finalize(st2, g2p, b2p)

    # ---- phase C: bn2 + residual + relu -------------------------------------
    kern_c = functools.partial(_bn2_residual_kernel, m_cmp=m_cmp, ctr=ctr)
    bytes_c = int(N * m_cmp * Cp * 4 * 2 + N * R_blk * Cp * 4)
    out2 = pl.pallas_call(
        kern_c,
        grid=(N,),
        in_specs=[blk_rows(m_cmp), blk_rows(R_blk), full2(sc2.shape),
                  full2(sh2.shape)],
        out_specs=blk_rows(m_cmp),
        out_shape=jax.ShapeDtypeStruct((N * m_cmp, Cp), jnp.float32),
        compiler_params=cparams([m_cmp * Cp * 4, R_blk * Cp * 4, 2 * Cp * 4,
                                 m_cmp * Cp * 4]),
        cost_estimate=pl.CostEstimate(flops=int(3 * N * m_cmp * Cp),
                                      transcendentals=0, bytes_accessed=bytes_c),
    )(y2, x2, sc2, sh2)

    # ---- strip spatial/channel padding, NHWC -> NCHW ------------------------
    # TODO(synk): fuse this un-pad/transpose into the consumer.
    o = out2.reshape(N, m_cmp, Cp)
    if m_cmp < H * Wp:
        o = jnp.pad(o, ((0, 0), (0, H * Wp - m_cmp), (0, 0)))
    o = o[:, :H * Wp, :].reshape(N, H, Wp, Cp)[:, :, :W, :C]
    return jnp.transpose(o, (0, 3, 1, 2))


# --------------------------------------------------------------------------
# Pure-JAX reference (PyTorch training-mode semantics) for the correctness check
# --------------------------------------------------------------------------
def _reference(x_nchw, w1, g1, b1, w2, g2, b2):
    eps = 1e-5

    def conv(x, w):  # x NHWC, w HWIO, stride 1, SAME padding
        return jax.lax.conv_general_dilated(
            x, w, window_strides=(1, 1), padding="SAME",
            dimension_numbers=("NHWC", "HWIO", "NHWC"))

    def bn(x, g, b):
        mean = x.mean(axis=(0, 1, 2))
        var = ((x - mean) ** 2).mean(axis=(0, 1, 2))
        return (x - mean) * jax.lax.rsqrt(var + eps) * g + b

    x = jnp.transpose(x_nchw, (0, 2, 3, 1)).astype(jnp.float32)
    out = jnp.maximum(bn(conv(x, w1), g1, b1), 0.0)
    out = bn(conv(out, w2), g2, b2) + x
    out = jnp.maximum(out, 0.0)
    return jnp.transpose(out, (0, 3, 1, 2))


if __name__ == "__main__":
    # Small shapes: N=2, inplanes=planes=4, H=W=16 (stride=1, downsample=None).
    N, C, H, W = 2, 4, 16, 16

    key = jax.random.PRNGKey(0)
    kx, k1, k2 = jax.random.split(key, 3)

    x = jax.random.normal(kx, (N, C, H, W), dtype=jnp.float32)

    # Conv weights in HWIO layout (3, 3, Cin, Cout), deterministic init.
    fan_in = C * 3 * 3
    w1 = jax.random.normal(k1, (3, 3, C, C), dtype=jnp.float32) / np.sqrt(fan_in)
    w2 = jax.random.normal(k2, (3, 3, C, C), dtype=jnp.float32) / np.sqrt(fan_in)

    # BatchNorm2d default init: gamma=1, beta=0.
    g1 = jnp.ones((C,), jnp.float32)
    b1 = jnp.zeros((C,), jnp.float32)
    g2 = jnp.ones((C,), jnp.float32)
    b2 = jnp.zeros((C,), jnp.float32)

    out = basic_block(x, w1, g1, b1, w2, g2, b2)
    out = jax.block_until_ready(out)

    ref = jax.block_until_ready(_reference(x, w1, g1, b1, w2, g2, b2))
    # bf16 MXU operands (f32 accumulation) => compare at ~1e-2 level vs f32 ref.
    np.testing.assert_allclose(np.asarray(out), np.asarray(ref),
                               rtol=5e-2, atol=5e-2)

    print("KERNEL_OK")
</pallas_src>

<mosaic_0001>
module attributes {stable_mosaic.version = 11 : i64} {
  func.func @_conv1_stats_kernel(%arg0: i32, %arg1: memref<336x128xf32, #tpu.memory_space<vmem>>, %arg2: memref<336x1xf32, #tpu.memory_space<vmem>>, %arg3: memref<1x128x128xbf16, #tpu.memory_space<vmem>>, %arg4: memref<336x128xf32, #tpu.memory_space<vmem>>, %arg5: memref<8x128xf32, #tpu.memory_space<vmem>>) attributes {dimension_semantics = [#tpu.dimension_semantics<parallel>], iteration_bounds = array<i64: 2>, scalar_prefetch = 0 : i64, scratch_operands = 0 : i64, tpu.core_type = #tpu.core_type<tc>, window_params = [{transform_indices = @transform_0, window_bounds = array<i64: 336, 128>}, {pipeline_mode = #tpu.pipeline_mode<synchronous>, transform_indices = @transform_1, window_bounds = array<i64: 336, 1>}, {pipeline_mode = #tpu.pipeline_mode<synchronous>, transform_indices = @transform_2, window_bounds = array<i64: 1, 128, 128>}, {transform_indices = @transform_3, window_bounds = array<i64: 336, 128>}, {transform_indices = @transform_4, window_bounds = array<i64: 8, 128>}]} {
    %cst = arith.constant 0.000000e+00 : f32
    %0 = vector.broadcast %cst : f32 to vector<288x128xf32>
    %c5 = arith.constant 5 : index
    %c0 = arith.constant 0 : index
    %1 = vector.load %arg1[%c5, %c0] : memref<336x128xf32, #tpu.memory_space<vmem>>, vector<288x128xf32>
    %c6 = arith.constant 6 : index
    %c0_0 = arith.constant 0 : index
    %2 = vector.load %arg1[%c6, %c0_0] : memref<336x128xf32, #tpu.memory_space<vmem>>, vector<288x128xf32>
    %c4_i32 = arith.constant 4 : i32
    %3 = tpu.dynamic_rotate %2 by %c4_i32 dim 1 : vector<288x128xf32>, i32 -> vector<288x128xf32>
    %4 = arith.addf %1, %3 : vector<288x128xf32>
    %c7 = arith.constant 7 : index
    %c0_1 = arith.constant 0 : index
    %5 = vector.load %arg1[%c7, %c0_1] : memref<336x128xf32, #tpu.memory_space<vmem>>, vector<288x128xf32>
    %c8_i32 = arith.constant 8 : i32
    %6 = tpu.dynamic_rotate %5 by %c8_i32 dim 1 : vector<288x128xf32>, i32 -> vector<288x128xf32>
    %7 = arith.addf %4, %6 : vector<288x128xf32>
    %c23 = arith.constant 23 : index
    %c0_2 = arith.constant 0 : index
    %8 = vector.load %arg1[%c23, %c0_2] : memref<336x128xf32, #tpu.memory_space<vmem>>, vector<288x128xf32>
    %c12_i32 = arith.constant 12 : i32
    %9 = tpu.dynamic_rotate %8 by %c12_i32 dim 1 : vector<288x128xf32>, i32 -> vector<288x128xf32>
    %10 = arith.addf %7, %9 : vector<288x128xf32>
    %c24 = arith.constant 24 : index
    %c0_3 = arith.constant 0 : index
    %11 = vector.load %arg1[%c24, %c0_3] : memref<336x128xf32, #tpu.memory_space<vmem>>, vector<288x128xf32>
    %c16_i32 = arith.constant 16 : i32
    %12 = tpu.dynamic_rotate %11 by %c16_i32 dim 1 : vector<288x128xf32>, i32 -> vector<288x128xf32>
    %13 = arith.addf %10, %12 : vector<288x128xf32>
    %c25 = arith.constant 25 : index
    %c0_4 = arith.constant 0 : index
    %14 = vector.load %arg1[%c25, %c0_4] : memref<336x128xf32, #tpu.memory_space<vmem>>, vector<288x128xf32>
    %c20_i32 = arith.constant 20 : i32
    %15 = tpu.dynamic_rotate %14 by %c20_i32 dim 1 : vector<288x128xf32>, i32 -> vector<288x128xf32>
    %16 = arith.addf %13, %15 : vector<288x128xf32>
    %c41 = arith.constant 41 : index
    %c0_5 = arith.constant 0 : index
    %17 = vector.load %arg1[%c41, %c0_5] : memref<336x128xf32, #tpu.memory_space<vmem>>, vector<288x128xf32>
    %c24_i32 = arith.constant 24 : i32
    %18 = tpu.dynamic_rotate %17 by %c24_i32 dim 1 : vector<288x128xf32>, i32 -> vector<288x128xf32>
    %19 = arith.addf %16, %18 : vector<288x128xf32>
    %c42 = arith.constant 42 : index
    %c0_6 = arith.constant 0 : index
    %20 = vector.load %arg1[%c42, %c0_6] : memref<336x128xf32, #tpu.memory_space<vmem>>, vector<288x128xf32>
    %c28_i32 = arith.constant 28 : i32
    %21 = tpu.dynamic_rotate %20 by %c28_i32 dim 1 : vector<288x128xf32>, i32 -> vector<288x128xf32>
    %22 = arith.addf %19, %21 : vector<288x128xf32>
    %c43 = arith.constant 43 : index
    %c0_7 = arith.constant 0 : index
    %23 = vector.load %arg1[%c43, %c0_7] : memref<336x128xf32, #tpu.memory_space<vmem>>, vector<288x128xf32>
    %c32_i32 = arith.constant 32 : i32
    %24 = tpu.dynamic_rotate %23 by %c32_i32 dim 1 : vector<288x128xf32>, i32 -> vector<288x128xf32>
    %25 = arith.addf %22, %24 : vector<288x128xf32>
    %26 = arith.truncf %25 : vector<288x128xf32> to vector<288x128xbf16>
    %c0_8 = arith.constant 0 : index
    %c0_9 = arith.constant 0 : index
    %c0_10 = arith.constant 0 : index
    %27 = vector.load %arg3[%c0_8, %c0_9, %c0_10] : memref<1x128x128xbf16, #tpu.memory_space<vmem>>, vector<1x128x128xbf16>
    %28 = vector.shape_cast %27 : vector<1x128x128xbf16> to vector<128x128xbf16>
    %cst_11 = arith.constant dense<0.000000e+00> : vector<288x128xf32>
    %29 = tpu.matmul %26, %28, %cst_11 {dimension_numbers = #tpu.dot_dimension_numbers<[1], [0], [0], [1], [0, 0, 1, 1], [], []>} : vector<288x128xbf16>, vector<128x128xbf16>, vector<288x128xf32> -> vector<288x128xf32>
    %30 = arith.addf %0, %29 : vector<288x128xf32>
    %c24_12 = arith.constant 24 : index
    %c0_13 = arith.constant 0 : index
    %31 = vector.load %arg2[%c24_12, %c0_13] : memref<336x1xf32, #tpu.memory_space<vmem>>, vector<288x1xf32>
    %32 = vector.broadcast %31 : vector<288x1xf32> to vector<288x128xf32>
    %33 = arith.mulf %30, %32 : vector<288x128xf32>
    %cst_14 = arith.constant dense<0.000000e+00> : vector<128xf32>
    %34 = vector.multi_reduction <add>, %33, %cst_14 [0] : vector<288x128xf32> to vector<128xf32>
    %35 = vector.shape_cast %34 : vector<128xf32> to vector<1x128xf32>
    %c0_15 = arith.constant 0 : index
    %c0_16 = arith.constant 0 : index
    %36 = vector.load %arg5[%c0_15, %c0_16] : memref<8x128xf32, #tpu.memory_space<vmem>>, vector<1x128xf32>
    tpu.vector_store %arg5[%c0_15, %c0_16], %35 {strides = array<i32>} : memref<8x128xf32, #tpu.memory_space<vmem>>, vector<1x128xf32>,
    %37 = arith.mulf %33, %30 : vector<288x128xf32>
    %cst_17 = arith.constant dense<0.000000e+00> : vector<128xf32>
    %38 = vector.multi_reduction <add>, %37, %cst_17 [0] : vector<288x128xf32> to vector<128xf32>
    %39 = vector.shape_cast %38 : vector<128xf32> to vector<1x128xf32>
    %c1 = arith.constant 1 : index
    %c0_18 = arith.constant 0 : index
    %40 = vector.load %arg5[%c1, %c0_18] : memref<8x128xf32, #tpu.memory_space<vmem>>, vector<1x128xf32>
    tpu.vector_store %arg5[%c1, %c0_18], %39 {strides = array<i32>} : memref<8x128xf32, #tpu.memory_space<vmem>>, vector<1x128xf32>,
    %cst_19 = arith.constant 0.000000e+00 : f32
    %41 = vector.broadcast %cst_19 : f32 to vector<24x128xf32>
    %c0_20 = arith.constant 0 : index
    %c0_21 = arith.constant 0 : index
    %42 = vector.load %arg4[%c0_20, %c0_21] : memref<336x128xf32, #tpu.memory_space<vmem>>, vector<24x128xf32>
    tpu.vector_store %arg4[%c0_20, %c0_21], %41 {strides = array<i32>} : memref<336x128xf32, #tpu.memory_space<vmem>>, vector<24x128xf32>,
    %c24_22 = arith.constant 24 : index
    %c0_23 = arith.constant 0 : index
    %43 = vector.load %arg4[%c24_22, %c0_23] : memref<336x128xf32, #tpu.memory_space<vmem>>, vector<288x128xf32>
    tpu.vector_store %arg4[%c24_22, %c0_23], %30 {strides = array<i32>} : memref<336x128xf32, #tpu.memory_space<vmem>>, vector<288x128xf32>,
    %cst_24 = arith.constant 0.000000e+00 : f32
    %44 = vector.broadcast %cst_24 : f32 to vector<24x128xf32>
    %c312 = arith.constant 312 : index
    %c0_25 = arith.constant 0 : index
    %45 = vector.load %arg4[%c312, %c0_25] : memref<336x128xf32, #tpu.memory_space<vmem>>, vector<24x128xf32>
    tpu.vector_store %arg4[%c312, %c0_25], %44 {strides = array<i32>} : memref<336x128xf32, #tpu.memory_space<vmem>>, vector<24x128xf32>,
    return
  }
  func.func @transform_0(%arg0: i32) -> (i32, i32) {
    %c0_i32 = arith.constant 0 : i32
    %c0_i32_0 = arith.constant 0 : i32
    return %arg0, %c0_i32 : i32, i32
  }
  func.func @transform_1(%arg0: i32) -> (i32, i32) {
    %c0_i32 = arith.constant 0 : i32
    %c0_i32_0 = arith.constant 0 : i32
    %c0_i32_1 = arith.constant 0 : i32
    return %c0_i32, %c0_i32_0 : i32, i32
  }
  func.func @transform_2(%arg0: i32) -> (i32, i32, i32) {
    %c0_i32 = arith.constant 0 : i32
    %c0_i32_0 = arith.constant 0 : i32
    %c0_i32_1 = arith.constant 0 : i32
    %c0_i32_2 = arith.constant 0 : i32
    return %c0_i32, %c0_i32_0, %c0_i32_1 : i32, i32, i32
  }
  func.func @transform_3(%arg0: i32) -> (i32, i32) {
    %c0_i32 = arith.constant 0 : i32
    %c0_i32_0 = arith.constant 0 : i32
    return %arg0, %c0_i32 : i32, i32
  }
  func.func @transform_4(%arg0: i32) -> (i32, i32) {
    %c0_i32 = arith.constant 0 : i32
    %c0_i32_0 = arith.constant 0 : i32
    return %arg0, %c0_i32 : i32, i32
  }
}

module attributes {stable_mosaic.version = 11 : i64} {
  func.func @_bn2_residual_kernel(%arg0: i32, %arg1: memref<288x128xf32, #tpu.memory_space<vmem>>, %arg2: memref<336x128xf32, #tpu.memory_space<vmem>>, %arg3: memref<1x128xf32, #tpu.memory_space<vmem>>, %arg4: memref<1x128xf32, #tpu.memory_space<vmem>>, %arg5: memref<288x128xf32, #tpu.memory_space<vmem>>) attributes {dimension_semantics = [#tpu.dimension_semantics<parallel>], iteration_bounds = array<i64: 2>, scalar_prefetch = 0 : i64, scratch_operands = 0 : i64, tpu.core_type = #tpu.core_type<tc>, window_params = [{transform_indices = @transform_0, window_bounds = array<i64: 288, 128>}, {transform_indices = @transform_1, window_bounds = array<i64: 336, 128>}, {pipeline_mode = #tpu.pipeline_mode<synchronous>, transform_indices = @transform_2, window_bounds = array<i64: 1, 128>}, {pipeline_mode = #tpu.pipeline_mode<synchronous>, transform_indices = @transform_3, window_bounds = array<i64: 1, 128>}, {transform_indices = @transform_4, window_bounds = array<i64: 288, 128>}]} {
    %c24 = arith.constant 24 : index
    %c0 = arith.constant 0 : index
    %0 = vector.load %arg2[%c24, %c0] : memref<336x128xf32, #tpu.memory_space<vmem>>, vector<288x128xf32>
    %c0_0 = arith.constant 0 : index
    %c0_1 = arith.constant 0 : index
    %1 = vector.load %arg1[%c0_0, %c0_1] : memref<288x128xf32, #tpu.memory_space<vmem>>, vector<288x128xf32>
    %c0_2 = arith.constant 0 : index
    %c0_3 = arith.constant 0 : index
    %2 = vector.load %arg3[%c0_2, %c0_3] : memref<1x128xf32, #tpu.memory_space<vmem>>, vector<1x128xf32>
    %3 = vector.broadcast %2 : vector<1x128xf32> to vector<288x128xf32>
    %4 = arith.mulf %1, %3 : vector<288x128xf32>
    %c0_4 = arith.constant 0 : index
    %c0_5 = arith.constant 0 : index
    %5 = vector.load %arg4[%c0_4, %c0_5] : memref<1x128xf32, #tpu.memory_space<vmem>>, vector<1x128xf32>
    %6 = vector.broadcast %5 : vector<1x128xf32> to vector<288x128xf32>
    %7 = arith.addf %4, %6 : vector<288x128xf32>
    %8 = arith.addf %7, %0 : vector<288x128xf32>
    %cst = arith.constant 0.000000e+00 : f32
    %9 = vector.broadcast %cst : f32 to vector<288x128xf32>
    %10 = arith.maximumf %8, %9 : vector<288x128xf32>
    %c0_6 = arith.constant 0 : index
    %c0_7 = arith.constant 0 : index
    %11 = vector.load %arg5[%c0_6, %c0_7] : memref<288x128xf32, #tpu.memory_space<vmem>>, vector<288x128xf32>
    tpu.vector_store %arg5[%c0_6, %c0_7], %10 {strides = array<i32>} : memref<288x128xf32, #tpu.memory_space<vmem>>, vector<288x128xf32>,
    return
  }
  func.func @transform_0(%arg0: i32) -> (i32, i32) {
    %c0_i32 = arith.constant 0 : i32
    %c0_i32_0 = arith.constant 0 : i32
    return %arg0, %c0_i32 : i32, i32
  }
  func.func @transform_1(%arg0: i32) -> (i32, i32) {
    %c0_i32 = arith.constant 0 : i32
    %c0_i32_0 = arith.constant 0 : i32
    return %arg0, %c0_i32 : i32, i32
  }
  func.func @transform_2(%arg0: i32) -> (i32, i32) {
    %c0_i32 = arith.constant 0 : i32
    %c0_i32_0 = arith.constant 0 : i32
    %c0_i32_1 = arith.constant 0 : i32
    return %c0_i32, %c0_i32_0 : i32, i32
  }
  func.func @transform_3(%arg0: i32) -> (i32, i32) {
    %c0_i32 = arith.constant 0 : i32
    %c0_i32_0 = arith.constant 0 : i32
    %c0_i32_1 = arith.constant 0 : i32
    return %c0_i32, %c0_i32_0 : i32, i32
  }
  func.func @transform_4(%arg0: i32) -> (i32, i32) {
    %c0_i32 = arith.constant 0 : i32
    %c0_i32_0 = arith.constant 0 : i32
    return %arg0, %c0_i32 : i32, i32
  }
}

module attributes {stable_mosaic.version = 11 : i64} {
  func.func @_bn1_conv2_stats_kernel(%arg0: i32, %arg1: memref<336x128xf32, #tpu.memory_space<vmem>>, %arg2: memref<336x1xf32, #tpu.memory_space<vmem>>, %arg3: memref<1x128xf32, #tpu.memory_space<vmem>>, %arg4: memref<1x128xf32, #tpu.memory_space<vmem>>, %arg5: memref<1x128x128xbf16, #tpu.memory_space<vmem>>, %arg6: memref<288x128xf32, #tpu.memory_space<vmem>>, %arg7: memref<8x128xf32, #tpu.memory_space<vmem>>, %arg8: memref<336x128xf32, #tpu.memory_space<vmem>>) attributes {dimension_semantics = [#tpu.dimension_semantics<parallel>], iteration_bounds = array<i64: 2>, scalar_prefetch = 0 : i64, scratch_operands = 1 : i64, tpu.core_type = #tpu.core_type<tc>, window_params = [{transform_indices = @transform_0, window_bounds = array<i64: 336, 128>}, {pipeline_mode = #tpu.pipeline_mode<synchronous>, transform_indices = @transform_1, window_bounds = array<i64: 336, 1>}, {pipeline_mode = #tpu.pipeline_mode<synchronous>, transform_indices = @transform_2, window_bounds = array<i64: 1, 128>}, {pipeline_mode = #tpu.pipeline_mode<synchronous>, transform_indices = @transform_3, window_bounds = array<i64: 1, 128>}, {pipeline_mode = #tpu.pipeline_mode<synchronous>, transform_indices = @transform_4, window_bounds = array<i64: 1, 128, 128>}, {transform_indices = @transform_5, window_bounds = array<i64: 288, 128>}, {transform_indices = @transform_6, window_bounds = array<i64: 8, 128>}]} {
    %c0 = arith.constant 0 : index
    %c0_0 = arith.constant 0 : index
    %0 = vector.load %arg1[%c0, %c0_0] : memref<336x128xf32, #tpu.memory_space<vmem>>, vector<336x128xf32>
    %c0_1 = arith.constant 0 : index
    %c0_2 = arith.constant 0 : index
    %1 = vector.load %arg3[%c0_1, %c0_2] : memref<1x128xf32, #tpu.memory_space<vmem>>, vector<1x128xf32>
    %2 = vector.broadcast %1 : vector<1x128xf32> to vector<336x128xf32>
    %3 = arith.mulf %0, %2 : vector<336x128xf32>
    %c0_3 = arith.constant 0 : index
    %c0_4 = arith.constant 0 : index
    %4 = vector.load %arg4[%c0_3, %c0_4] : memref<1x128xf32, #tpu.memory_space<vmem>>, vector<1x128xf32>
    %5 = vector.broadcast %4 : vector<1x128xf32> to vector<336x128xf32>
    %6 = arith.addf %3, %5 : vector<336x128xf32>
    %cst = arith.constant 0.000000e+00 : f32
    %7 = vector.broadcast %cst : f32 to vector<336x128xf32>
    %8 = arith.maximumf %6, %7 : vector<336x128xf32>
    %c0_5 = arith.constant 0 : index
    %c0_6 = arith.constant 0 : index
    %9 = vector.load %arg2[%c0_5, %c0_6] : memref<336x1xf32, #tpu.memory_space<vmem>>, vector<336x1xf32>
    %cst_7 = arith.constant 5.000000e-01 : f32
    %10 = vector.broadcast %cst_7 : f32 to vector<336x1xf32>
    %11 = arith.cmpf ogt, %9, %10 : vector<336x1xf32>
    %cst_8 = arith.constant 0.000000e+00 : f32
    %12 = vector.shape_cast %11 : vector<336x1xi1> to vector<336x1xi1>
    %13 = vector.broadcast %12 : vector<336x1xi1> to vector<336x128xi1>
    %14 = vector.broadcast %cst_8 : f32 to vector<336x128xf32>
    %15 = arith.select %13, %8, %14 : vector<336x128xi1>, vector<336x128xf32>
    %c0_9 = arith.constant 0 : index
    %c0_10 = arith.constant 0 : index
    %16 = vector.load %arg8[%c0_9, %c0_10] : memref<336x128xf32, #tpu.memory_space<vmem>>, vector<336x128xf32>
    tpu.vector_store %arg8[%c0_9, %c0_10], %15 {strides = array<i32>} : memref<336x128xf32, #tpu.memory_space<vmem>>, vector<336x128xf32>,
    %cst_11 = arith.constant 0.000000e+00 : f32
    %17 = vector.broadcast %cst_11 : f32 to vector<288x128xf32>
    %c5 = arith.constant 5 : index
    %c0_12 = arith.constant 0 : index
    %18 = vector.load %arg8[%c5, %c0_12] : memref<336x128xf32, #tpu.memory_space<vmem>>, vector<288x128xf32>
    %c6 = arith.constant 6 : index
    %c0_13 = arith.constant 0 : index
    %19 = vector.load %arg8[%c6, %c0_13] : memref<336x128xf32, #tpu.memory_space<vmem>>, vector<288x128xf32>
    %c4_i32 = arith.constant 4 : i32
    %20 = tpu.dynamic_rotate %19 by %c4_i32 dim 1 : vector<288x128xf32>, i32 -> vector<288x128xf32>
    %21 = arith.addf %18, %20 : vector<288x128xf32>
    %c7 = arith.constant 7 : index
    %c0_14 = arith.constant 0 : index
    %22 = vector.load %arg8[%c7, %c0_14] : memref<336x128xf32, #tpu.memory_space<vmem>>, vector<288x128xf32>
    %c8_i32 = arith.constant 8 : i32
    %23 = tpu.dynamic_rotate %22 by %c8_i32 dim 1 : vector<288x128xf32>, i32 -> vector<288x128xf32>
    %24 = arith.addf %21, %23 : vector<288x128xf32>
    %c23 = arith.constant 23 : index
    %c0_15 = arith.constant 0 : index
    %25 = vector.load %arg8[%c23, %c0_15] : memref<336x128xf32, #tpu.memory_space<vmem>>, vector<288x128xf32>
    %c12_i32 = arith.constant 12 : i32
    %26 = tpu.dynamic_rotate %25 by %c12_i32 dim 1 : vector<288x128xf32>, i32 -> vector<288x128xf32>
    %27 = arith.addf %24, %26 : vector<288x128xf32>
    %c24 = arith.constant 24 : index
    %c0_16 = arith.constant 0 : index
    %28 = vector.load %arg8[%c24, %c0_16] : memref<336x128xf32, #tpu.memory_space<vmem>>, vector<288x128xf32>
    %c16_i32 = arith.constant 16 : i32
    %29 = tpu.dynamic_rotate %28 by %c16_i32 dim 1 : vector<288x128xf32>, i32 -> vector<288x128xf32>
    %30 = arith.addf %27, %29 : vector<288x128xf32>
    %c25 = arith.constant 25 : index
    %c0_17 = arith.constant 0 : index
    %31 = vector.load %arg8[%c25, %c0_17] : memref<336x128xf32, #tpu.memory_space<vmem>>, vector<288x128xf32>
    %c20_i32 = arith.constant 20 : i32
    %32 = tpu.dynamic_rotate %31 by %c20_i32 dim 1 : vector<288x128xf32>, i32 -> vector<288x128xf32>
    %33 = arith.addf %30, %32 : vector<288x128xf32>
    %c41 = arith.constant 41 : index
    %c0_18 = arith.constant 0 : index
    %34 = vector.load %arg8[%c41, %c0_18] : memref<336x128xf32, #tpu.memory_space<vmem>>, vector<288x128xf32>
    %c24_i32 = arith.constant 24 : i32
    %35 = tpu.dynamic_rotate %34 by %c24_i32 dim 1 : vector<288x128xf32>, i32 -> vector<288x128xf32>
    %36 = arith.addf %33, %35 : vector<288x128xf32>
    %c42 = arith.constant 42 : index
    %c0_19 = arith.constant 0 : index
    %37 = vector.load %arg8[%c42, %c0_19] : memref<336x128xf32, #tpu.memory_space<vmem>>, vector<288x128xf32>
    %c28_i32 = arith.constant 28 : i32
    %38 = tpu.dynamic_rotate %37 by %c28_i32 dim 1 : vector<288x128xf32>, i32 -> vector<288x128xf32>
    %39 = arith.addf %36, %38 : vector<288x128xf32>
    %c43 = arith.constant 43 : index
    %c0_20 = arith.constant 0 : index
    %40 = vector.load %arg8[%c43, %c0_20] : memref<336x128xf32, #tpu.memory_space<vmem>>, vector<288x128xf32>
    %c32_i32 = arith.constant 32 : i32
    %41 = tpu.dynamic_rotate %40 by %c32_i32 dim 1 : vector<288x128xf32>, i32 -> vector<288x128xf32>
    %42 = arith.addf %39, %41 : vector<288x128xf32>
    %43 = arith.truncf %42 : vector<288x128xf32> to vector<288x128xbf16>
    %c0_21 = arith.constant 0 : index
    %c0_22 = arith.constant 0 : index
    %c0_23 = arith.constant 0 : index
    %44 = vector.load %arg5[%c0_21, %c0_22, %c0_23] : memref<1x128x128xbf16, #tpu.memory_space<vmem>>, vector<1x128x128xbf16>
    %45 = vector.shape_cast %44 : vector<1x128x128xbf16> to vector<128x128xbf16>
    %cst_24 = arith.constant dense<0.000000e+00> : vector<288x128xf32>
    %46 = tpu.matmul %43, %45, %cst_24 {dimension_numbers = #tpu.dot_dimension_numbers<[1], [0], [0], [1], [0, 0, 1, 1], [], []>} : vector<288x128xbf16>, vector<128x128xbf16>, vector<288x128xf32> -> vector<288x128xf32>
    %47 = arith.addf %17, %46 : vector<288x128xf32>
    %c24_25 = arith.constant 24 : index
    %c0_26 = arith.constant 0 : index
    %48 = vector.load %arg2[%c24_25, %c0_26] : memref<336x1xf32, #tpu.memory_space<vmem>>, vector<288x1xf32>
    %49 = vector.broadcast %48 : vector<288x1xf32> to vector<288x128xf32>
    %50 = arith.mulf %47, %49 : vector<288x128xf32>
    %cst_27 = arith.constant dense<0.000000e+00> : vector<128xf32>
    %51 = vector.multi_reduction <add>, %50, %cst_27 [0] : vector<288x128xf32> to vector<128xf32>
    %52 = vector.shape_cast %51 : vector<128xf32> to vector<1x128xf32>
    %c0_28 = arith.constant 0 : index
    %c0_29 = arith.constant 0 : index
    %53 = vector.load %arg7[%c0_28, %c0_29] : memref<8x128xf32, #tpu.memory_space<vmem>>, vector<1x128xf32>
    tpu.vector_store %arg7[%c0_28, %c0_29], %52 {strides = array<i32>} : memref<8x128xf32, #tpu.memory_space<vmem>>, vector<1x128xf32>,
    %54 = arith.mulf %50, %47 : vector<288x128xf32>
    %cst_30 = arith.constant dense<0.000000e+00> : vector<128xf32>
    %55 = vector.multi_reduction <add>, %54, %cst_30 [0] : vector<288x128xf32> to vector<128xf32>
    %56 = vector.shape_cast %55 : vector<128xf32> to vector<1x128xf32>
    %c1 = arith.constant 1 : index
    %c0_31 = arith.constant 0 : index
    %57 = vector.load %arg7[%c1, %c0_31] : memref<8x128xf32, #tpu.memory_space<vmem>>, vector<1x128xf32>
    tpu.vector_store %arg7[%c1, %c0_31], %56 {strides = array<i32>} : memref<8x128xf32, #tpu.memory_space<vmem>>, vector<1x128xf32>,
    %c0_32 = arith.constant 0 : index
    %c0_33 = arith.constant 0 : index
    %58 = vector.load %arg6[%c0_32, %c0_33] : memref<288x128xf32, #tpu.memory_space<vmem>>, vector<288x128xf32>
    tpu.vector_store %arg6[%c0_32, %c0_33], %47 {strides = array<i32>} : memref<288x128xf32, #tpu.memory_space<vmem>>, vector<288x128xf32>,
    return
  }
  func.func @transform_0(%arg0: i32) -> (i32, i32) {
    %c0_i32 = arith.constant 0 : i32
    %c0_i32_0 = arith.constant 0 : i32
    return %arg0, %c0_i32 : i32, i32
  }
  func.func @transform_1(%arg0: i32) -> (i32, i32) {
    %c0_i32 = arith.constant 0 : i32
    %c0_i32_0 = arith.constant 0 : i32
    %c0_i32_1 = arith.constant 0 : i32
    return %c0_i32, %c0_i32_0 : i32, i32
  }
  func.func @transform_2(%arg0: i32) -> (i32, i32) {
    %c0_i32 = arith.constant 0 : i32
    %c0_i32_0 = arith.constant 0 : i32
    %c0_i32_1 = arith.constant 0 : i32
    return %c0_i32, %c0_i32_0 : i32, i32
  }
  func.func @transform_3(%arg0: i32) -> (i32, i32) {
    %c0_i32 = arith.constant 0 : i32
    %c0_i32_0 = arith.constant 0 : i32
    %c0_i32_1 = arith.constant 0 : i32
    return %c0_i32, %c0_i32_0 : i32, i32
  }
  func.func @transform_4(%arg0: i32) -> (i32, i32, i32) {
    %c0_i32 = arith.constant 0 : i32
    %c0_i32_0 = arith.constant 0 : i32
    %c0_i32_1 = arith.constant 0 : i32
    %c0_i32_2 = arith.constant 0 : i32
    return %c0_i32, %c0_i32_0, %c0_i32_1 : i32, i32, i32
  }
  func.func @transform_5(%arg0: i32) -> (i32, i32) {
    %c0_i32 = arith.constant 0 : i32
    %c0_i32_0 = arith.constant 0 : i32
    return %arg0, %c0_i32 : i32, i32
  }
  func.func @transform_6(%arg0: i32) -> (i32, i32) {
    %c0_i32 = arith.constant 0 : i32
    %c0_i32_0 = arith.constant 0 : i32
    return %arg0, %c0_i32 : i32, i32
  }
}

</mosaic_0001>

<llo_original>
// kernel: basic_block.5
$region0: #{basic_block.5}
  #allocation0 [shape = 'u32[]', space=smem, size = 0x4, offset = 0x4, fixed_abs, tag = 'smem constant byte address 0x4 - core index']
  #allocation1 [shape = 'u32[72,128]{1,0:T(1,128)}', space=vmem, size = 0x9000, scoped, tag = 'internal scratch']
  %s0 = inlined_call_operand.vmem [shape: f32[576,128], index: 0, kind: input, shape index: {}]
  %s1 = inlined_call_operand.vmem [shape: f32[672,128], index: 1, kind: input, shape index: {}]
  %s2 = inlined_call_operand.vmem [shape: f32[1,128], index: 2, kind: input, shape index: {}]
  %s3 = inlined_call_operand.vmem [shape: f32[1,128], index: 3, kind: input, shape index: {}]
  %s4 = inlined_call_operand.vmem [shape: f32[576,128], index: 4, kind: output, shape index: {}]
  %s5 = sld [smem:[#allocation0]]
  $region49: #{basic_block.5} parent=0
    _
  %s7 = ssub.s32 1, %s5
  %s8 = scalar_select 0, %s7, %s5
  loop: start=0, step=1, limit=4
  $region2: #{basic_block.5} parent=0 // loop_pre_header
    _
  $region3: #{basic_block.5} parent=0 // loop_header
    %s10 = sphi 0, %s14
    %p11 = scmp.ge.s32.totalorder %s10, 4
    %s20 = sphi 0, %s22
    %s23 = sphi 0, %s20
    %s24 = sphi 0, %s23
    %s40 = sphi 0, %s24
    %s46 = sphi 0, %s48
    %s49 = sphi 0, %s46
    %s50 = sphi 0, %s49
    %s66 = sphi 0, %s50
    %s70 = sphi 0, %s70
    %s72 = sphi 0, %s70
    %s73 = sphi 0, %s72
    %s87 = sphi 0, %s73
    %s91 = sphi 0, %s91
    %s93 = sphi 0, %s91
    %s94 = sphi 0, %s93
    %s108 = sphi 0, %s94
    %s114 = sphi 0, %s116
    %s117 = sphi 0, %s114
    %s118 = sphi 0, %s117
    %s134 = sphi 0, %s118
  $region4: #{basic_block.5} parent=0 // loop_header_branch
    %13 = sbr.rel (%p11) target = $region8
  $region5: #{basic_block.5} parent=0 // loop_body
    %s15 = ssub.s32 %s10, 1
    %s16 = ssub.s32 %s10, 2
    %s17 = sadd.s32 %s10, 1
    %s18 = ssub.s32 %s10, %s17
    %p19 = scmp.eq.s32.totalorder %s18, 0
    %s21 = sadd.s32 %s20, 1
    %s22 = scalar_select %p19, %s20, %s21
    %p25 = pneg %p19
    %p26 = scmp.eq.s32.totalorder %s10, 1
    %p27 = por %p25, %p26
    %p28 = scmp.ne.s32.totalorder %s20, %s23
    %p29 = scmp.eq.s32.totalorder %s10, 0
    %p30 = por %p28, %p29
    %p31 = scmp.ne.s32.totalorder %s20, %s23
    %p32 = scmp.eq.s32.totalorder %s15, 1
    %p33 = por %p31, %p32
    %p34 = scmp.ne.s32.totalorder %s23, %s24
    %p35 = scmp.eq.s32.totalorder %s15, 0
    %p36 = por %p34, %p35
    %p37 = scmp.ne.s32.totalorder %s23, %s24
    %p38 = scmp.eq.s32.totalorder %s16, 1
    %p39 = por %p37, %p38
    %p41 = scmp.ne.s32.totalorder %s24, %s40
    %p42 = scmp.eq.s32.totalorder %s16, 0
    %p43 = por %p41, %p42
    %s44 = ssub.s32 %s10, %s17
    %p45 = scmp.eq.s32.totalorder %s44, 0
    %s47 = sadd.s32 %s46, 1
    %s48 = scalar_select %p45, %s46, %s47
    %p51 = pneg %p45
    %p52 = scmp.eq.s32.totalorder %s10, 1
    %p53 = por %p51, %p52
    %p54 = scmp.ne.s32.totalorder %s46, %s49
    %p55 = scmp.eq.s32.totalorder %s10, 0
    %p56 = por %p54, %p55
    %p57 = scmp.ne.s32.totalorder %s46, %s49
    %p58 = scmp.eq.s32.totalorder %s15, 1
    %p59 = por %p57, %p58
    %p60 = scmp.ne.s32.totalorder %s49, %s50
    %p61 = scmp.eq.s32.totalorder %s15, 0
    %p62 = por %p60, %p61
    %p63 = scmp.ne.s32.totalorder %s49, %s50
    %p64 = scmp.eq.s32.totalorder %s16, 1
    %p65 = por %p63, %p64
    %p67 = scmp.ne.s32.totalorder %s50, %s66
    %p68 = scmp.eq.s32.totalorder %s16, 0
    %p69 = por %p67, %p68
    %s71 = sadd.s32 %s70, 1
    %p74 = scmp.eq.s32.totalorder %s10, 1
    %p75 = scmp.ne.s32.totalorder %s70, %s72
    %p76 = scmp.eq.s32.totalorder %s10, 0
    %p77 = por %p75, %p76
    %p78 = scmp.ne.s32.totalorder %s70, %s72
    %p79 = scmp.eq.s32.totalorder %s15, 1
    %p80 = por %p78, %p79
    %p81 = scmp.ne.s32.totalorder %s72, %s73
    %p82 = scmp.eq.s32.totalorder %s15, 0
    %p83 = por %p81, %p82
    %p84 = scmp.ne.s32.totalorder %s72, %s73
    %p85 = scmp.eq.s32.totalorder %s16, 1
    %p86 = por %p84, %p85
    %p88 = scmp.ne.s32.totalorder %s73, %s87
    %p89 = scmp.eq.s32.totalorder %s16, 0
    %p90 = por %p88, %p89
    %s92 = sadd.s32 %s91, 1
    %p95 = scmp.eq.s32.totalorder %s10, 1
    %p96 = scmp.ne.s32.totalorder %s91, %s93
    %p97 = scmp.eq.s32.totalorder %s10, 0
    %p98 = por %p96, %p97
    %p99 = scmp.ne.s32.totalorder %s91, %s93
    %p100 = scmp.eq.s32.totalorder %s15, 1
    %p101 = por %p99, %p100
    %p102 = scmp.ne.s32.totalorder %s93, %s94
    %p103 = scmp.eq.s32.totalorder %s15, 0
    %p104 = por %p102, %p103
    %p105 = scmp.ne.s32.totalorder %s93, %s94
    %p106 = scmp.eq.s32.totalorder %s16, 1
    %p107 = por %p105, %p106
    %p109 = scmp.ne.s32.totalorder %s94, %s108
    %p110 = scmp.eq.s32.totalorder %s16, 0
    %p111 = por %p109, %p110
    %s112 = ssub.s32 %s10, %s17
    %p113 = scmp.eq.s32.totalorder %s112, 0
    %s115 = sadd.s32 %s114, 1
    %s116 = scalar_select %p113, %s114, %s115
    %p119 = pneg %p113
    %p120 = scmp.eq.s32.totalorder %s10, 1
    %p121 = por %p119, %p120
    %p122 = scmp.ne.s32.totalorder %s114, %s117
    %p123 = scmp.eq.s32.totalorder %s10, 0
    %p124 = por %p122, %p123
    %p125 = scmp.ne.s32.totalorder %s114, %s117
    %p126 = scmp.eq.s32.totalorder %s15, 1
    %p127 = por %p125, %p126
    %p128 = scmp.ne.s32.totalorder %s117, %s118
    %p129 = scmp.eq.s32.totalorder %s15, 0
    %p130 = por %p128, %p129
    %p131 = scmp.ne.s32.totalorder %s117, %s118
    %p132 = scmp.eq.s32.totalorder %s16, 1
    %p133 = por %p131, %p132
    %p135 = scmp.ne.s32.totalorder %s118, %s134
    %p136 = scmp.eq.s32.totalorder %s16, 0
    %p137 = por %p135, %p136
    %p138 = scmp.le.s32.totalorder 1, %s10
    %p139 = scmp.lt.s32.totalorder %s10, 3
    %p140 = pnand %p138, %p139
    %p141 = pneg %p140
    // Predicated region
    $region9: #{basic_block.5} parent=5 // pred_check
      _
    $region10: #{basic_block.5} parent=5 // pred_check_branch
      %143 = sbr.rel (%p140) target = $region12
    $region11: #{basic_block.5} parent=5 // pred_region
      %s144 = ssub.s32 %s10, 1
      // Predicated region
      $region13: #{basic_block.5} parent=11 // pred_check
        %p145 = pneg %p83
      $region14: #{basic_block.5} parent=11 // pred_check_branch
        %147 = sbr.rel (%p145) target = $region16
      $region15: #{basic_block.5} parent=11 // pred_region
        _
      $region16: #{basic_block.5} parent=11 // pred_fallthru
        _
      // Predicated region
      $region17: #{basic_block.5} parent=11 // pred_check
        %p148 = pneg %p104
      $region18: #{basic_block.5} parent=11 // pred_check_branch
        %150 = sbr.rel (%p148) target = $region20
      $region19: #{basic_block.5} parent=11 // pred_region
        _
      $region20: #{basic_block.5} parent=11 // pred_fallthru
        _
    $region12: #{basic_block.5} parent=5 // pred_fallthru
      _
    %p151 = scmp.lt.s32.totalorder %s10, 2
    // Predicated region
    $region21: #{basic_block.5} parent=5 // pred_check
      %p152 = pneg %p151
    $region22: #{basic_block.5} parent=5 // pred_check_branch
      %154 = sbr.rel (%p152) target = $region24
    $region23: #{basic_block.5} parent=5 // pred_region
      // Predicated region
      $region25: #{basic_block.5} parent=23 // pred_check
        %p155 = pneg %p30
      $region26: #{basic_block.5} parent=23 // pred_check_branch
        %157 = sbr.rel (%p155) target = $region28
      $region27: #{basic_block.5} parent=23 // pred_region
        %s158 = smul.u32 36, %s10
        %p159 = scmp.lt.s32.totalorder %s158, 71
        %s160 = scalar_select %p159, %s158, 71
        %s161 = smul.addr %s160, 8
        %s162 = scalar_lea.vmem %s0, %s161
        %s163 = smul.u32 36, %s10
      $region28: #{basic_block.5} parent=23 // pred_fallthru
        _
      // Predicated region
      $region29: #{basic_block.5} parent=23 // pred_check
        %p164 = pneg %p56
      $region30: #{basic_block.5} parent=23 // pred_check_branch
        %166 = sbr.rel (%p164) target = $region32
      $region31: #{basic_block.5} parent=23 // pred_region
        %s167 = smul.u32 42, %s10
        %p168 = scmp.lt.s32.totalorder %s167, 83
        %s169 = scalar_select %p168, %s167, 83
        %s170 = smul.addr %s169, 8
        %s171 = scalar_lea.vmem %s1, %s170
        %s172 = smul.u32 42, %s10
      $region32: #{basic_block.5} parent=23 // pred_fallthru
        _
    $region24: #{basic_block.5} parent=5 // pred_fallthru
      _
    %p173 = scmp.le.s32.totalorder 1, %s10
    %p174 = scmp.lt.s32.totalorder %s10, 3
    %p175 = pnand %p173, %p174
    %p176 = pneg %p175
    // Predicated region
    $region33: #{basic_block.5} parent=5 // pred_check
      _
    $region34: #{basic_block.5} parent=5 // pred_check_branch
      %178 = sbr.rel (%p175) target = $region36
    $region35: #{basic_block.5} parent=5 // pred_region
      %s179 = ssub.s32 %s10, 1
      %s180 = smul.u32 36, %s15
      %p181 = scmp.lt.s32.totalorder %s180, 71
      %s182 = scalar_select %p181, %s180, 71
      %s183 = smul.addr %s182, 8
      %s184 = scalar_lea.vmem %s0, %s183
      %p185 = pneg %p36
      %p186 = pneg %p33
      %s187 = smul.u32 42, %s15
      %p188 = scmp.lt.s32.totalorder %s187, 83
      %s189 = scalar_select %p188, %s187, 83
      %s190 = smul.addr %s189, 8
      %s191 = scalar_lea.vmem %s1, %s190
      %p192 = pneg %p62
      %p193 = pneg %p59
      %p194 = pneg %p83
      %p195 = pneg %p80
      %p196 = pneg %p104
      %p197 = pneg %p101
      %p198 = pneg %p130
      %p199 = pneg %p127
      %s200 = smul.u32 36, %s15
      %p201 = scmp.lt.s32.totalorder %s200, 71
      %s202 = scalar_select %p201, %s200, 71
      %s203 = smul.addr %s202, 8
      %s204 = scalar_lea.vmem %s4, %s203
      %s205 = smul.u32 36, %s15
      %p206 = scmp.lt.s32.totalorder %s205, 71
      %s207 = scalar_select %p206, %s205, 71
      %s208 = smul.addr %s207, 8
      %s209 = scalar_lea.vmem %s0, %s208
      %s210 = smul.u32 36, %s15
      %s211 = smul.u32 42, %s15
      %p212 = scmp.lt.s32.totalorder %s211, 83
      %s213 = scalar_select %p212, %s211, 83
      %s214 = smul.addr %s213, 8
      %s215 = scalar_lea.vmem %s1, %s214
      %s216 = smul.u32 42, %s15
      %s217 = smul.u32 36, %s15
      %p218 = scmp.lt.s32.totalorder %s217, 71
      %s219 = scalar_select %p218, %s217, 71
      %s220 = smul.addr %s219, 8
      %s221 = scalar_lea.vmem %s4, %s220
      %s222 = smul.u32 36, %s15
      %v223 = vld [vmem:[%s215 + $0x18] sm:$0xff]
      %v224 = vld [vmem:[%s215 + $0x20] sm:$0xff]
      %v225 = vld [vmem:[%s215 + $0x28] sm:$0xff]
      %v226 = vld [vmem:[%s215 + $0x30] sm:$0xff]
      %v227 = vld [vmem:[%s215 + $0x38] sm:$0xff]
      %v228 = vld [vmem:[%s215 + $0x40] sm:$0xff]
      %v229 = vld [vmem:[%s215 + $0x48] sm:$0xff]
      %v230 = vld [vmem:[%s215 + $0x50] sm:$0xff]
      %v231 = vld [vmem:[%s215 + $0x58] sm:$0xff]
      %v232 = vld [vmem:[%s215 + $0x60] sm:$0xff]
      %v233 = vld [vmem:[%s215 + $0x68] sm:$0xff]
      %v234 = vld [vmem:[%s215 + $0x70] sm:$0xff]
      %v235 = vld [vmem:[%s215 + $0x78] sm:$0xff]
      %v236 = vld [vmem:[%s215 + $0x80] sm:$0xff]
      %v237 = vld [vmem:[%s215 + $0x88] sm:$0xff]
      %v238 = vld [vmem:[%s215 + $0x90] sm:$0xff]
      %v239 = vld [vmem:[%s215 + $0x98] sm:$0xff]
      %v240 = vld [vmem:[%s215 + $0xa0] sm:$0xff]
      %v241 = vld [vmem:[%s215 + $0xa8] sm:$0xff]
      %v242 = vld [vmem:[%s215 + $0xb0] sm:$0xff]
      %v243 = vld [vmem:[%s215 + $0xb8] sm:$0xff]
      %v244 = vld [vmem:[%s215 + $0xc0] sm:$0xff]
      %v245 = vld [vmem:[%s215 + $0xc8] sm:$0xff]
      %v246 = vld [vmem:[%s215 + $0xd0] sm:$0xff]
      %v247 = vld [vmem:[%s215 + $0xd8] sm:$0xff]
      %v248 = vld [vmem:[%s215 + $0xe0] sm:$0xff]
      %v249 = vld [vmem:[%s215 + $0xe8] sm:$0xff]
      %v250 = vld [vmem:[%s215 + $0xf0] sm:$0xff]
      %v251 = vld [vmem:[%s215 + $0xf8] sm:$0xff]
      %v252 = vld [vmem:[%s215 + $0x100] sm:$0xff]
      %v253 = vld [vmem:[%s215 + $0x108] sm:$0xff]
      %v254 = vld [vmem:[%s215 + $0x110] sm:$0xff]
      %v255 = vld [vmem:[%s215 + $0x118] sm:$0xff]
      %v256 = vld [vmem:[%s215 + $0x120] sm:$0xff]
      %v257 = vld [vmem:[%s215 + $0x128] sm:$0xff]
      %v258 = vld [vmem:[%s215 + $0x130] sm:$0xff]
      %v259 = vld [vmem:[%s209] sm:$0xff]
      %v260 = vld [vmem:[%s209 + $0x8] sm:$0xff]
      %v261 = vld [vmem:[%s209 + $0x10] sm:$0xff]
      %v262 = vld [vmem:[%s209 + $0x18] sm:$0xff]
      %v263 = vld [vmem:[%s209 + $0x20] sm:$0xff]
      %v264 = vld [vmem:[%s209 + $0x28] sm:$0xff]
      %v265 = vld [vmem:[%s209 + $0x30] sm:$0xff]
      %v266 = vld [vmem:[%s209 + $0x38] sm:$0xff]
      %v267 = vld [vmem:[%s209 + $0x40] sm:$0xff]
      %v268 = vld [vmem:[%s209 + $0x48] sm:$0xff]
      %v269 = vld [vmem:[%s209 + $0x50] sm:$0xff]
      %v270 = vld [vmem:[%s209 + $0x58] sm:$0xff]
      %v271 = vld [vmem:[%s209 + $0x60] sm:$0xff]
      %v272 = vld [vmem:[%s209 + $0x68] sm:$0xff]
      %v273 = vld [vmem:[%s209 + $0x70] sm:$0xff]
      %v274 = vld [vmem:[%s209 + $0x78] sm:$0xff]
      %v275 = vld [vmem:[%s209 + $0x80] sm:$0xff]
      %v276 = vld [vmem:[%s209 + $0x88] sm:$0xff]
      %v277 = vld [vmem:[%s209 + $0x90] sm:$0xff]
      %v278 = vld [vmem:[%s209 + $0x98] sm:$0xff]
      %v279 = vld [vmem:[%s209 + $0xa0] sm:$0xff]
      %v280 = vld [vmem:[%s209 + $0xa8] sm:$0xff]
      %v281 = vld [vmem:[%s209 + $0xb0] sm:$0xff]
      %v282 = vld [vmem:[%s209 + $0xb8] sm:$0xff]
      %v283 = vld [vmem:[%s209 + $0xc0] sm:$0xff]
      %v284 = vld [vmem:[%s209 + $0xc8] sm:$0xff]
      %v285 = vld [vmem:[%s209 + $0xd0] sm:$0xff]
      %v286 = vld [vmem:[%s209 + $0xd8] sm:$0xff]
      %v287 = vld [vmem:[%s209 + $0xe0] sm:$0xff]
      %v288 = vld [vmem:[%s209 + $0xe8] sm:$0xff]
      %v289 = vld [vmem:[%s209 + $0xf0] sm:$0xff]
      %v290 = vld [vmem:[%s209 + $0xf8] sm:$0xff]
      %v291 = vld [vmem:[%s209 + $0x100] sm:$0xff]
      %v292 = vld [vmem:[%s209 + $0x108] sm:$0xff]
      %v293 = vld [vmem:[%s209 + $0x110] sm:$0xff]
      %v294 = vld [vmem:[%s209 + $0x118] sm:$0xff]
      %v295 = vld [vmem:[%s2] sm:$0x1]
      %v297 = vperm.slane %v295, 0
      %v299 = vmul.f32 %v259, %v297
      %v300 = vmul.f32 %v260, %v297
      %v301 = vmul.f32 %v261, %v297
      %v302 = vmul.f32 %v262, %v297
      %v303 = vmul.f32 %v263, %v297
      %v304 = vmul.f32 %v264, %v297
      %v305 = vmul.f32 %v265, %v297
      %v306 = vmul.f32 %v266, %v297
      %v307 = vmul.f32 %v267, %v297
      %v308 = vmul.f32 %v268, %v297
      %v309 = vmul.f32 %v269, %v297
      %v310 = vmul.f32 %v270, %v297
      %v311 = vmul.f32 %v271, %v297
      %v312 = vmul.f32 %v272, %v297
      %v313 = vmul.f32 %v273, %v297
      %v314 = vmul.f32 %v274, %v297
      %v315 = vmul.f32 %v275, %v297
      %v316 = vmul.f32 %v276, %v297
      %v317 = vmul.f32 %v277, %v297
      %v318 = vmul.f32 %v278, %v297
      %v319 = vmul.f32 %v279, %v297
      %v320 = vmul.f32 %v280, %v297
      %v321 = vmul.f32 %v281, %v297
      %v322 = vmul.f32 %v282, %v297
      %v323 = vmul.f32 %v283, %v297
      %v324 = vmul.f32 %v284, %v297
      %v325 = vmul.f32 %v285, %v297
      %v326 = vmul.f32 %v286, %v297
      %v327 = vmul.f32 %v287, %v297
      %v328 = vmul.f32 %v288, %v297
      %v329 = vmul.f32 %v289, %v297
      %v330 = vmul.f32 %v290, %v297
      %v331 = vmul.f32 %v291, %v297
      %v332 = vmul.f32 %v292, %v297
      %v333 = vmul.f32 %v293, %v297
      %v334 = vmul.f32 %v294, %v297
      %v335 = vld [vmem:[%s3] sm:$0x1]
      %v337 = vperm.slane %v335, 0
      %v339 = vadd.f32 %v299, %v337
      %v340 = vadd.f32 %v300, %v337
      %v341 = vadd.f32 %v301, %v337
      %v342 = vadd.f32 %v302, %v337
      %v343 = vadd.f32 %v303, %v337
      %v344 = vadd.f32 %v304, %v337
      %v345 = vadd.f32 %v305, %v337
      %v346 = vadd.f32 %v306, %v337
      %v347 = vadd.f32 %v307, %v337
      %v348 = vadd.f32 %v308, %v337
      %v349 = vadd.f32 %v309, %v337
      %v350 = vadd.f32 %v310, %v337
      %v351 = vadd.f32 %v311, %v337
      %v352 = vadd.f32 %v312, %v337
      %v353 = vadd.f32 %v313, %v337
      %v354 = vadd.f32 %v314, %v337
      %v355 = vadd.f32 %v315, %v337
      %v356 = vadd.f32 %v316, %v337
      %v357 = vadd.f32 %v317, %v337
      %v358 = vadd.f32 %v318, %v337
      %v359 = vadd.f32 %v319, %v337
      %v360 = vadd.f32 %v320, %v337
      %v361 = vadd.f32 %v321, %v337
      %v362 = vadd.f32 %v322, %v337
      %v363 = vadd.f32 %v323, %v337
      %v364 = vadd.f32 %v324, %v337
      %v365 = vadd.f32 %v325, %v337
      %v366 = vadd.f32 %v326, %v337
      %v367 = vadd.f32 %v327, %v337
      %v368 = vadd.f32 %v328, %v337
      %v369 = vadd.f32 %v329, %v337
      %v370 = vadd.f32 %v330, %v337
      %v371 = vadd.f32 %v331, %v337
      %v372 = vadd.f32 %v332, %v337
      %v373 = vadd.f32 %v333, %v337
      %v374 = vadd.f32 %v334, %v337
      %v375 = vadd.f32 %v339, %v223
      %v376 = vadd.f32 %v340, %v224
      %v377 = vadd.f32 %v341, %v225
      %v378 = vadd.f32 %v342, %v226
      %v379 = vadd.f32 %v343, %v227
      %v380 = vadd.f32 %v344, %v228
      %v381 = vadd.f32 %v345, %v229
      %v382 = vadd.f32 %v346, %v230
      %v383 = vadd.f32 %v347, %v231
      %v384 = vadd.f32 %v348, %v232
      %v385 = vadd.f32 %v349, %v233
      %v386 = vadd.f32 %v350, %v234
      %v387 = vadd.f32 %v351, %v235
      %v388 = vadd.f32 %v352, %v236
      %v389 = vadd.f32 %v353, %v237
      %v390 = vadd.f32 %v354, %v238
      %v391 = vadd.f32 %v355, %v239
      %v392 = vadd.f32 %v356, %v240
      %v393 = vadd.f32 %v357, %v241
      %v394 = vadd.f32 %v358, %v242
      %v395 = vadd.f32 %v359, %v243
      %v396 = vadd.f32 %v360, %v244
      %v397 = vadd.f32 %v361, %v245
      %v398 = vadd.f32 %v362, %v246
      %v399 = vadd.f32 %v363, %v247
      %v400 = vadd.f32 %v364, %v248
      %v401 = vadd.f32 %v365, %v249
      %v402 = vadd.f32 %v366, %v250
      %v403 = vadd.f32 %v367, %v251
      %v404 = vadd.f32 %v368, %v252
      %v405 = vadd.f32 %v369, %v253
      %v406 = vadd.f32 %v370, %v254
      %v407 = vadd.f32 %v371, %v255
      %v408 = vadd.f32 %v372, %v256
      %v409 = vadd.f32 %v373, %v257
      %v410 = vadd.f32 %v374, %v258
      %v411 = vmax.f32 %v375, 0.0
      %v412 = vmax.f32 %v376, 0.0
      %v413 = vmax.f32 %v377, 0.0
      %v414 = vmax.f32 %v378, 0.0
      %v415 = vmax.f32 %v379, 0.0
      %v416 = vmax.f32 %v380, 0.0
      %v417 = vmax.f32 %v381, 0.0
      %v418 = vmax.f32 %v382, 0.0
      %v419 = vmax.f32 %v383, 0.0
      %v420 = vmax.f32 %v384, 0.0
      %v421 = vmax.f32 %v385, 0.0
      %v422 = vmax.f32 %v386, 0.0
      %v423 = vmax.f32 %v387, 0.0
      %v424 = vmax.f32 %v388, 0.0
      %v425 = vmax.f32 %v389, 0.0
      %v426 = vmax.f32 %v390, 0.0
      %v427 = vmax.f32 %v391, 0.0
      %v428 = vmax.f32 %v392, 0.0
      %v429 = vmax.f32 %v393, 0.0
      %v430 = vmax.f32 %v394, 0.0
      %v431 = vmax.f32 %v395, 0.0
      %v432 = vmax.f32 %v396, 0.0
      %v433 = vmax.f32 %v397, 0.0
      %v434 = vmax.f32 %v398, 0.0
      %v435 = vmax.f32 %v399, 0.0
      %v436 = vmax.f32 %v400, 0.0
      %v437 = vmax.f32 %v401, 0.0
      %v438 = vmax.f32 %v402, 0.0
      %v439 = vmax.f32 %v403, 0.0
      %v440 = vmax.f32 %v404, 0.0
      %v441 = vmax.f32 %v405, 0.0
      %v442 = vmax.f32 %v406, 0.0
      %v443 = vmax.f32 %v407, 0.0
      %v444 = vmax.f32 %v408, 0.0
      %v445 = vmax.f32 %v409, 0.0
      %v446 = vmax.f32 %v410, 0.0
      %447 = vst [vmem:[%s221] sm:$0xff] %v411
      %448 = vst [vmem:[%s221 + $0x8] sm:$0xff] %v412
      %449 = vst [vmem:[%s221 + $0x10] sm:$0xff] %v413
      %450 = vst [vmem:[%s221 + $0x18] sm:$0xff] %v414
      %451 = vst [vmem:[%s221 + $0x20] sm:$0xff] %v415
      %452 = vst [vmem:[%s221 + $0x28] sm:$0xff] %v416
      %453 = vst [vmem:[%s221 + $0x30] sm:$0xff] %v417
      %454 = vst [vmem:[%s221 + $0x38] sm:$0xff] %v418
      %455 = vst [vmem:[%s221 + $0x40] sm:$0xff] %v419
      %456 = vst [vmem:[%s221 + $0x48] sm:$0xff] %v420
      %457 = vst [vmem:[%s221 + $0x50] sm:$0xff] %v421
      %458 = vst [vmem:[%s221 + $0x58] sm:$0xff] %v422
      %459 = vst [vmem:[%s221 + $0x60] sm:$0xff] %v423
      %460 = vst [vmem:[%s221 + $0x68] sm:$0xff] %v424
      %461 = vst [vmem:[%s221 + $0x70] sm:$0xff] %v425
      %462 = vst [vmem:[%s221 + $0x78] sm:$0xff] %v426
      %463 = vst [vmem:[%s221 + $0x80] sm:$0xff] %v427
      %464 = vst [vmem:[%s221 + $0x88] sm:$0xff] %v428
      %465 = vst [vmem:[%s221 + $0x90] sm:$0xff] %v429
      %466 = vst [vmem:[%s221 + $0x98] sm:$0xff] %v430
      %467 = vst [vmem:[%s221 + $0xa0] sm:$0xff] %v431
      %468 = vst [vmem:[%s221 + $0xa8] sm:$0xff] %v432
      %469 = vst [vmem:[%s221 + $0xb0] sm:$0xff] %v433
      %470 = vst [vmem:[%s221 + $0xb8] sm:$0xff] %v434
      %471 = vst [vmem:[%s221 + $0xc0] sm:$0xff] %v435
      %472 = vst [vmem:[%s221 + $0xc8] sm:$0xff] %v436
      %473 = vst [vmem:[%s221 + $0xd0] sm:$0xff] %v437
      %474 = vst [vmem:[%s221 + $0xd8] sm:$0xff] %v438
      %475 = vst [vmem:[%s221 + $0xe0] sm:$0xff] %v439
      %476 = vst [vmem:[%s221 + $0xe8] sm:$0xff] %v440
      %477 = vst [vmem:[%s221 + $0xf0] sm:$0xff] %v441
      %478 = vst [vmem:[%s221 + $0xf8] sm:$0xff] %v442
      %479 = vst [vmem:[%s221 + $0x100] sm:$0xff] %v443
      %480 = vst [vmem:[%s221 + $0x108] sm:$0xff] %v444
      %481 = vst [vmem:[%s221 + $0x110] sm:$0xff] %v445
      %482 = vst [vmem:[%s221 + $0x118] sm:$0xff] %v446
      %s483 = smul.u32 36, %s15
      %p484 = scmp.lt.s32.totalorder %s483, 71
      %s485 = scalar_select %p484, %s483, 71
      %s486 = smul.addr %s485, 8
      %s487 = scalar_lea.vmem %s4, %s486
      // Predicated region
      $region37: #{basic_block.5} parent=35 // pred_check
        %p488 = pneg %p127
      $region38: #{basic_block.5} parent=35 // pred_check_branch
        %490 = sbr.rel (%p488) target = $region40
      $region39: #{basic_block.5} parent=35 // pred_region
        %s491 = smul.u32 36, %s15
      $region40: #{basic_block.5} parent=35 // pred_fallthru
        _
    $region36: #{basic_block.5} parent=5 // pred_fallthru
      _
    %p492 = scmp.le.s32.totalorder 2, %s10
    // Predicated region
    $region41: #{basic_block.5} parent=5 // pred_check
      %p493 = pneg %p492
    $region42: #{basic_block.5} parent=5 // pred_check_branch
      %495 = sbr.rel (%p493) target = $region44
    $region43: #{basic_block.5} parent=5 // pred_region
      %s496 = ssub.s32 %s10, 2
      // Predicated region
      $region45: #{basic_block.5} parent=43 // pred_check
        %p497 = pneg %p133
      $region46: #{basic_block.5} parent=43 // pred_check_branch
        %499 = sbr.rel (%p497) target = $region48
      $region47: #{basic_block.5} parent=43 // pred_region
        %s500 = smul.u32 36, %s16
        %p501 = scmp.lt.s32.totalorder %s500, 71
        %s502 = scalar_select %p501, %s500, 71
        %s503 = smul.addr %s502, 8
        %s504 = scalar_lea.vmem %s4, %s503
      $region48: #{basic_block.5} parent=43 // pred_fallthru
        _
    $region44: #{basic_block.5} parent=5 // pred_fallthru
      _
  $region6: #{basic_block.5} parent=0 // loop_footer
    %s14 = sadd.s32 1, %s10
  $region7: #{basic_block.5} parent=0 // loop_footer_branch
    %9 = sbr.rel target = $region3
  $region8: #{basic_block.5} parent=0 // loop_exit
    _

// kernel: basic_block.3
$region0: #{basic_block.3}
  #allocation0 [shape = 'u32[]', space=smem, size = 0x4, offset = 0x4, fixed_abs, tag = 'smem constant byte address 0x4 - core index']
  #allocation1 [shape = 'u32[72,128]{1,0:T(1,128)}', space=vmem, size = 0x9000, scoped, tag = 'internal scratch']
  %s0 = inlined_call_operand.vmem [shape: f32[672,128], index: 0, kind: input, shape index: {}]
  %s1 = inlined_call_operand.vmem [shape: f32[336,1], index: 1, kind: input, shape index: {}]
  %s2 = inlined_call_operand.vmem [shape: bf16[1,128,128], index: 2, kind: input, shape index: {}]
  %s3 = inlined_call_operand.vmem [shape: f32[672,128], index: 3, kind: output, shape index: {0}]
  %s4 = inlined_call_operand.vmem [shape: f32[16,128], index: 4, kind: output, shape index: {1}]
  %5 = xla_tuple %s3, %s4
  %s6 = sld [smem:[#allocation0]]
  $region53: #{basic_block.3} parent=0
    _
  %s8 = ssub.s32 1, %s6
  %s9 = scalar_select 0, %s8, %s6
  loop: start=0, step=1, limit=4
  $region2: #{basic_block.3} parent=0 // loop_pre_header
    _
  $region3: #{basic_block.3} parent=0 // loop_header
    %s11 = sphi 0, %s15
    %p12 = scmp.ge.s32.totalorder %s11, 4
    %s21 = sphi 0, %s23
    %s24 = sphi 0, %s21
    %s25 = sphi 0, %s24
    %s41 = sphi 0, %s25
    %s45 = sphi 0, %s45
    %s47 = sphi 0, %s45
    %s48 = sphi 0, %s47
    %s62 = sphi 0, %s48
    %s66 = sphi 0, %s66
    %s68 = sphi 0, %s66
    %s69 = sphi 0, %s68
    %s83 = sphi 0, %s69
    %s89 = sphi 0, %s91
    %s92 = sphi 0, %s89
    %s93 = sphi 0, %s92
    %s109 = sphi 0, %s93
    %s115 = sphi 0, %s117
    %s118 = sphi 0, %s115
    %s119 = sphi 0, %s118
    %s135 = sphi 0, %s119
  $region4: #{basic_block.3} parent=0 // loop_header_branch
    %14 = sbr.rel (%p12) target = $region8
  $region5: #{basic_block.3} parent=0 // loop_body
    %s16 = ssub.s32 %s11, 1
    %s17 = ssub.s32 %s11, 2
    %s18 = sadd.s32 %s11, 1
    %s19 = ssub.s32 %s11, %s18
    %p20 = scmp.eq.s32.totalorder %s19, 0
    %s22 = sadd.s32 %s21, 1
    %s23 = scalar_select %p20, %s21, %s22
    %p26 = pneg %p20
    %p27 = scmp.eq.s32.totalorder %s11, 1
    %p28 = por %p26, %p27
    %p29 = scmp.ne.s32.totalorder %s21, %s24
    %p30 = scmp.eq.s32.totalorder %s11, 0
    %p31 = por %p29, %p30
    %p32 = scmp.ne.s32.totalorder %s21, %s24
    %p33 = scmp.eq.s32.totalorder %s16, 1
    %p34 = por %p32, %p33
    %p35 = scmp.ne.s32.totalorder %s24, %s25
    %p36 = scmp.eq.s32.totalorder %s16, 0
    %p37 = por %p35, %p36
    %p38 = scmp.ne.s32.totalorder %s24, %s25
    %p39 = scmp.eq.s32.totalorder %s17, 1
    %p40 = por %p38, %p39
    %p42 = scmp.ne.s32.totalorder %s25, %s41
    %p43 = scmp.eq.s32.totalorder %s17, 0
    %p44 = por %p42, %p43
    %s46 = sadd.s32 %s45, 1
    %p49 = scmp.eq.s32.totalorder %s11, 1
    %p50 = scmp.ne.s32.totalorder %s45, %s47
    %p51 = scmp.eq.s32.totalorder %s11, 0
    %p52 = por %p50, %p51
    %p53 = scmp.ne.s32.totalorder %s45, %s47
    %p54 = scmp.eq.s32.totalorder %s16, 1
    %p55 = por %p53, %p54
    %p56 = scmp.ne.s32.totalorder %s47, %s48
    %p57 = scmp.eq.s32.totalorder %s16, 0
    %p58 = por %p56, %p57
    %p59 = scmp.ne.s32.totalorder %s47, %s48
    %p60 = scmp.eq.s32.totalorder %s17, 1
    %p61 = por %p59, %p60
    %p63 = scmp.ne.s32.totalorder %s48, %s62
    %p64 = scmp.eq.s32.totalorder %s17, 0
    %p65 = por %p63, %p64
    %s67 = sadd.s32 %s66, 1
    %p70 = scmp.eq.s32.totalorder %s11, 1
    %p71 = scmp.ne.s32.totalorder %s66, %s68
    %p72 = scmp.eq.s32.totalorder %s11, 0
    %p73 = por %p71, %p72
    %p74 = scmp.ne.s32.totalorder %s66, %s68
    %p75 = scmp.eq.s32.totalorder %s16, 1
    %p76 = por %p74, %p75
    %p77 = scmp.ne.s32.totalorder %s68, %s69
    %p78 = scmp.eq.s32.totalorder %s16, 0
    %p79 = por %p77, %p78
    %p80 = scmp.ne.s32.totalorder %s68, %s69
    %p81 = scmp.eq.s32.totalorder %s17, 1
    %p82 = por %p80, %p81
    %p84 = scmp.ne.s32.totalorder %s69, %s83
    %p85 = scmp.eq.s32.totalorder %s17, 0
    %p86 = por %p84, %p85
    %s87 = ssub.s32 %s11, %s18
    %p88 = scmp.eq.s32.totalorder %s87, 0
    %s90 = sadd.s32 %s89, 1
    %s91 = scalar_select %p88, %s89, %s90
    %p94 = pneg %p88
    %p95 = scmp.eq.s32.totalorder %s11, 1
    %p96 = por %p94, %p95
    %p97 = scmp.ne.s32.totalorder %s89, %s92
    %p98 = scmp.eq.s32.totalorder %s11, 0
    %p99 = por %p97, %p98
    %p100 = scmp.ne.s32.totalorder %s89, %s92
    %p101 = scmp.eq.s32.totalorder %s16, 1
    %p102 = por %p100, %p101
    %p103 = scmp.ne.s32.totalorder %s92, %s93
    %p104 = scmp.eq.s32.totalorder %s16, 0
    %p105 = por %p103, %p104
    %p106 = scmp.ne.s32.totalorder %s92, %s93
    %p107 = scmp.eq.s32.totalorder %s17, 1
    %p108 = por %p106, %p107
    %p110 = scmp.ne.s32.totalorder %s93, %s109
    %p111 = scmp.eq.s32.totalorder %s17, 0
    %p112 = por %p110, %p111
    %s113 = ssub.s32 %s11, %s18
    %p114 = scmp.eq.s32.totalorder %s113, 0
    %s116 = sadd.s32 %s115, 1
    %s117 = scalar_select %p114, %s115, %s116
    %p120 = pneg %p114
    %p121 = scmp.eq.s32.totalorder %s11, 1
    %p122 = por %p120, %p121
    %p123 = scmp.ne.s32.totalorder %s115, %s118
    %p124 = scmp.eq.s32.totalorder %s11, 0
    %p125 = por %p123, %p124
    %p126 = scmp.ne.s32.totalorder %s115, %s118
    %p127 = scmp.eq.s32.totalorder %s16, 1
    %p128 = por %p126, %p127
    %p129 = scmp.ne.s32.totalorder %s118, %s119
    %p130 = scmp.eq.s32.totalorder %s16, 0
    %p131 = por %p129, %p130
    %p132 = scmp.ne.s32.totalorder %s118, %s119
    %p133 = scmp.eq.s32.totalorder %s17, 1
    %p134 = por %p132, %p133
    %p136 = scmp.ne.s32.totalorder %s119, %s135
    %p137 = scmp.eq.s32.totalorder %s17, 0
    %p138 = por %p136, %p137
    %p139 = scmp.le.s32.totalorder 1, %s11
    %p140 = scmp.lt.s32.totalorder %s11, 3
    %p141 = pnand %p139, %p140
    %p142 = pneg %p141
    // Predicated region
    $region9: #{basic_block.3} parent=5 // pred_check
      _
    $region10: #{basic_block.3} parent=5 // pred_check_branch
      %144 = sbr.rel (%p141) target = $region12
    $region11: #{basic_block.3} parent=5 // pred_region
      %s145 = ssub.s32 %s11, 1
      // Predicated region
      $region13: #{basic_block.3} parent=11 // pred_check
        %p146 = pneg %p58
      $region14: #{basic_block.3} parent=11 // pred_check_branch
        %148 = sbr.rel (%p146) target = $region16
      $region15: #{basic_block.3} parent=11 // pred_region
        _
      $region16: #{basic_block.3} parent=11 // pred_fallthru
        _
      // Predicated region
      $region17: #{basic_block.3} parent=11 // pred_check
        %p149 = pneg %p79
      $region18: #{basic_block.3} parent=11 // pred_check_branch
        %151 = sbr.rel (%p149) target = $region20
      $region19: #{basic_block.3} parent=11 // pred_region
        _
      $region20: #{basic_block.3} parent=11 // pred_fallthru
        _
    $region12: #{basic_block.3} parent=5 // pred_fallthru
      _
    %p152 = scmp.lt.s32.totalorder %s11, 2
    // Predicated region
    $region21: #{basic_block.3} parent=5 // pred_check
      %p153 = pneg %p152
    $region22: #{basic_block.3} parent=5 // pred_check_branch
      %155 = sbr.rel (%p153) target = $region24
    $region23: #{basic_block.3} parent=5 // pred_region
      // Predicated region
      $region25: #{basic_block.3} parent=23 // pred_check
        %p156 = pneg %p31
      $region26: #{basic_block.3} parent=23 // pred_check_branch
        %158 = sbr.rel (%p156) target = $region28
      $region27: #{basic_block.3} parent=23 // pred_region
        %s159 = smul.u32 42, %s11
        %p160 = scmp.lt.s32.totalorder %s159, 83
        %s161 = scalar_select %p160, %s159, 83
        %s162 = smul.addr %s161, 8
        %s163 = scalar_lea.vmem %s0, %s162
        %s164 = smul.u32 42, %s11
      $region28: #{basic_block.3} parent=23 // pred_fallthru
        _
    $region24: #{basic_block.3} parent=5 // pred_fallthru
      _
    %p165 = scmp.le.s32.totalorder 1, %s11
    %p166 = scmp.lt.s32.totalorder %s11, 3
    %p167 = pnand %p165, %p166
    %p168 = pneg %p167
    // Predicated region
    $region29: #{basic_block.3} parent=5 // pred_check
      _
    $region30: #{basic_block.3} parent=5 // pred_check_branch
      %170 = sbr.rel (%p167) target = $region32
    $region31: #{basic_block.3} parent=5 // pred_region
      %s171 = ssub.s32 %s11, 1
      %s172 = smul.u32 42, %s16
      %p173 = scmp.lt.s32.totalorder %s172, 83
      %s174 = scalar_select %p173, %s172, 83
      %s175 = smul.addr %s174, 8
      %s176 = scalar_lea.vmem %s0, %s175
      %p177 = pneg %p37
      %p178 = pneg %p34
      %p179 = pneg %p58
      %p180 = pneg %p55
      %p181 = pneg %p79
      %p182 = pneg %p76
      %p183 = pneg %p105
      %p184 = pneg %p102
      %s185 = smul.u32 42, %s16
      %p186 = scmp.lt.s32.totalorder %s185, 83
      %s187 = scalar_select %p186, %s185, 83
      %s188 = smul.addr %s187, 8
      %s189 = scalar_lea.vmem %s3, %s188
      %p190 = pneg %p131
      %p191 = pneg %p128
      %p192 = scmp.lt.s32.totalorder %s16, 1
      %s193 = scalar_select %p192, %s16, 1
      %s194 = smul.addr %s193, 8
      %s195 = scalar_lea.vmem %s4, %s194
      %s196 = smul.u32 42, %s16
      %p197 = scmp.lt.s32.totalorder %s196, 83
      %s198 = scalar_select %p197, %s196, 83
      %s199 = smul.addr %s198, 8
      %s200 = scalar_lea.vmem %s0, %s199
      %s201 = smul.u32 42, %s16
      %s202 = smul.u32 42, %s16
      %p203 = scmp.lt.s32.totalorder %s202, 83
      %s204 = scalar_select %p203, %s202, 83
      %s205 = smul.addr %s204, 8
      %s206 = scalar_lea.vmem %s3, %s205
      %s207 = smul.u32 42, %s16
      %p208 = scmp.lt.s32.totalorder %s16, 1
      %s209 = scalar_select %p208, %s16, 1
      %s210 = smul.addr %s209, 8
      %s211 = scalar_lea.vmem %s4, %s210
      %v212 = vld [vmem:[%s200 + $0x5] sm:$0xff]
      %v213 = vld [vmem:[%s200 + $0xd] sm:$0xff]
      %v214 = vld [vmem:[%s200 + $0x15] sm:$0xff]
      %v215 = vld [vmem:[%s200 + $0x1d] sm:$0xff]
      %v216 = vld [vmem:[%s200 + $0x25] sm:$0xff]
      %v217 = vld [vmem:[%s200 + $0x2d] sm:$0xff]
      %v218 = vld [vmem:[%s200 + $0x35] sm:$0xff]
      %v219 = vld [vmem:[%s200 + $0x3d] sm:$0xff]
      %v220 = vld [vmem:[%s200 + $0x45] sm:$0xff]
      %v221 = vld [vmem:[%s200 + $0x4d] sm:$0xff]
      %v222 = vld [vmem:[%s200 + $0x55] sm:$0xff]
      %v223 = vld [vmem:[%s200 + $0x5d] sm:$0xff]
      %v224 = vld [vmem:[%s200 + $0x65] sm:$0xff]
      %v225 = vld [vmem:[%s200 + $0x6d] sm:$0xff]
      %v226 = vld [vmem:[%s200 + $0x75] sm:$0xff]
      %v227 = vld [vmem:[%s200 + $0x7d] sm:$0xff]
      %v228 = vld [vmem:[%s200 + $0x85] sm:$0xff]
      %v229 = vld [vmem:[%s200 + $0x8d] sm:$0xff]
      %v230 = vld [vmem:[%s200 + $0x95] sm:$0xff]
      %v231 = vld [vmem:[%s200 + $0x9d] sm:$0xff]
      %v232 = vld [vmem:[%s200 + $0xa5] sm:$0xff]
      %v233 = vld [vmem:[%s200 + $0xad] sm:$0xff]
      %v234 = vld [vmem:[%s200 + $0xb5] sm:$0xff]
      %v235 = vld [vmem:[%s200 + $0xbd] sm:$0xff]
      %v236 = vld [vmem:[%s200 + $0xc5] sm:$0xff]
      %v237 = vld [vmem:[%s200 + $0xcd] sm:$0xff]
      %v238 = vld [vmem:[%s200 + $0xd5] sm:$0xff]
      %v239 = vld [vmem:[%s200 + $0xdd] sm:$0xff]
      %v240 = vld [vmem:[%s200 + $0xe5] sm:$0xff]
      %v241 = vld [vmem:[%s200 + $0xed] sm:$0xff]
      %v242 = vld [vmem:[%s200 + $0xf5] sm:$0xff]
      %v243 = vld [vmem:[%s200 + $0xfd] sm:$0xff]
      %v244 = vld [vmem:[%s200 + $0x105] sm:$0xff]
      %v245 = vld [vmem:[%s200 + $0x10d] sm:$0xff]
      %v246 = vld [vmem:[%s200 + $0x115] sm:$0xff]
      %v247 = vld [vmem:[%s200 + $0x11d] sm:$0xff]
      %v248 = vld [vmem:[%s200 + $0x6] sm:$0xff]
      %v249 = vld [vmem:[%s200 + $0xe] sm:$0xff]
      %v250 = vld [vmem:[%s200 + $0x16] sm:$0xff]
      %v251 = vld [vmem:[%s200 + $0x1e] sm:$0xff]
      %v252 = vld [vmem:[%s200 + $0x26] sm:$0xff]
      %v253 = vld [vmem:[%s200 + $0x2e] sm:$0xff]
      %v254 = vld [vmem:[%s200 + $0x36] sm:$0xff]
      %v255 = vld [vmem:[%s200 + $0x3e] sm:$0xff]
      %v256 = vld [vmem:[%s200 + $0x46] sm:$0xff]
      %v257 = vld [vmem:[%s200 + $0x4e] sm:$0xff]
      %v258 = vld [vmem:[%s200 + $0x56] sm:$0xff]
      %v259 = vld [vmem:[%s200 + $0x5e] sm:$0xff]
      %v260 = vld [vmem:[%s200 + $0x66] sm:$0xff]
      %v261 = vld [vmem:[%s200 + $0x6e] sm:$0xff]
      %v262 = vld [vmem:[%s200 + $0x76] sm:$0xff]
      %v263 = vld [vmem:[%s200 + $0x7e] sm:$0xff]
      %v264 = vld [vmem:[%s200 + $0x86] sm:$0xff]
      %v265 = vld [vmem:[%s200 + $0x8e] sm:$0xff]
      %v266 = vld [vmem:[%s200 + $0x96] sm:$0xff]
      %v267 = vld [vmem:[%s200 + $0x9e] sm:$0xff]
      %v268 = vld [vmem:[%s200 + $0xa6] sm:$0xff]
      %v269 = vld [vmem:[%s200 + $0xae] sm:$0xff]
      %v270 = vld [vmem:[%s200 + $0xb6] sm:$0xff]
      %v271 = vld [vmem:[%s200 + $0xbe] sm:$0xff]
      %v272 = vld [vmem:[%s200 + $0xc6] sm:$0xff]
      %v273 = vld [vmem:[%s200 + $0xce] sm:$0xff]
      %v274 = vld [vmem:[%s200 + $0xd6] sm:$0xff]
      %v275 = vld [vmem:[%s200 + $0xde] sm:$0xff]
      %v276 = vld [vmem:[%s200 + $0xe6] sm:$0xff]
      %v277 = vld [vmem:[%s200 + $0xee] sm:$0xff]
      %v278 = vld [vmem:[%s200 + $0xf6] sm:$0xff]
      %v279 = vld [vmem:[%s200 + $0xfe] sm:$0xff]
      %v280 = vld [vmem:[%s200 + $0x106] sm:$0xff]
      %v281 = vld [vmem:[%s200 + $0x10e] sm:$0xff]
      %v282 = vld [vmem:[%s200 + $0x116] sm:$0xff]
      %v283 = vld [vmem:[%s200 + $0x11e] sm:$0xff]
      %284 = vrot.lane.b32.xlu0 %v248, 4
      %v285 = vpop.permute.xlu0 %284
      %286 = vrot.lane.b32.xlu0 %v249, 4
      %v287 = vpop.permute.xlu0 %286
      %288 = vrot.lane.b32.xlu0 %v250, 4
      %v289 = vpop.permute.xlu0 %288
      %290 = vrot.lane.b32.xlu0 %v251, 4
      %v291 = vpop.permute.xlu0 %290
      %292 = vrot.lane.b32.xlu0 %v252, 4
      %v293 = vpop.permute.xlu0 %292
      %294 = vrot.lane.b32.xlu0 %v253, 4
      %v295 = vpop.permute.xlu0 %294
      %296 = vrot.lane.b32.xlu0 %v254, 4
      %v297 = vpop.permute.xlu0 %296
      %298 = vrot.lane.b32.xlu0 %v255, 4
      %v299 = vpop.permute.xlu0 %298
      %300 = vrot.lane.b32.xlu0 %v256, 4
      %v301 = vpop.permute.xlu0 %300
      %302 = vrot.lane.b32.xlu0 %v257, 4
      %v303 = vpop.permute.xlu0 %302
      %304 = vrot.lane.b32.xlu0 %v258, 4
      %v305 = vpop.permute.xlu0 %304
      %306 = vrot.lane.b32.xlu0 %v259, 4
      %v307 = vpop.permute.xlu0 %306
      %308 = vrot.lane.b32.xlu0 %v260, 4
      %v309 = vpop.permute.xlu0 %308
      %310 = vrot.lane.b32.xlu0 %v261, 4
      %v311 = vpop.permute.xlu0 %310
      %312 = vrot.lane.b32.xlu0 %v262, 4
      %v313 = vpop.permute.xlu0 %312
      %314 = vrot.lane.b32.xlu0 %v263, 4
      %v315 = vpop.permute.xlu0 %314
      %316 = vrot.lane.b32.xlu0 %v264, 4
      %v317 = vpop.permute.xlu0 %316
      %318 = vrot.lane.b32.xlu0 %v265, 4
      %v319 = vpop.permute.xlu0 %318
      %320 = vrot.lane.b32.xlu0 %v266, 4
      %v321 = vpop.permute.xlu0 %320
      %322 = vrot.lane.b32.xlu0 %v267, 4
      %v323 = vpop.permute.xlu0 %322
      %324 = vrot.lane.b32.xlu0 %v268, 4
      %v325 = vpop.permute.xlu0 %324
      %326 = vrot.lane.b32.xlu0 %v269, 4
      %v327 = vpop.permute.xlu0 %326
      %328 = vrot.lane.b32.xlu0 %v270, 4
      %v329 = vpop.permute.xlu0 %328
      %330 = vrot.lane.b32.xlu0 %v271, 4
      %v331 = vpop.permute.xlu0 %330
      %332 = vrot.lane.b32.xlu0 %v272, 4
      %v333 = vpop.permute.xlu0 %332
      %334 = vrot.lane.b32.xlu0 %v273, 4
      %v335 = vpop.permute.xlu0 %334
      %336 = vrot.lane.b32.xlu0 %v274, 4
      %v337 = vpop.permute.xlu0 %336
      %338 = vrot.lane.b32.xlu0 %v275, 4
      %v339 = vpop.permute.xlu0 %338
      %340 = vrot.lane.b32.xlu0 %v276, 4
      %v341 = vpop.permute.xlu0 %340
      %342 = vrot.lane.b32.xlu0 %v277, 4
      %v343 = vpop.permute.xlu0 %342
      %344 = vrot.lane.b32.xlu0 %v278, 4
      %v345 = vpop.permute.xlu0 %344
      %346 = vrot.lane.b32.xlu0 %v279, 4
      %v347 = vpop.permute.xlu0 %346
      %348 = vrot.lane.b32.xlu0 %v280, 4
      %v349 = vpop.permute.xlu0 %348
      %350 = vrot.lane.b32.xlu0 %v281, 4
      %v351 = vpop.permute.xlu0 %350
      %352 = vrot.lane.b32.xlu0 %v282, 4
      %v353 = vpop.permute.xlu0 %352
      %354 = vrot.lane.b32.xlu0 %v283, 4
      %v355 = vpop.permute.xlu0 %354
      %v356 = vadd.f32 %v212, %v285
      %v357 = vadd.f32 %v213, %v287
      %v358 = vadd.f32 %v214, %v289
      %v359 = vadd.f32 %v215, %v291
      %v360 = vadd.f32 %v216, %v293
      %v361 = vadd.f32 %v217, %v295
      %v362 = vadd.f32 %v218, %v297
      %v363 = vadd.f32 %v219, %v299
      %v364 = vadd.f32 %v220, %v301
      %v365 = vadd.f32 %v221, %v303
      %v366 = vadd.f32 %v222, %v305
      %v367 = vadd.f32 %v223, %v307
      %v368 = vadd.f32 %v224, %v309
      %v369 = vadd.f32 %v225, %v311
      %v370 = vadd.f32 %v226, %v313
      %v371 = vadd.f32 %v227, %v315
      %v372 = vadd.f32 %v228, %v317
      %v373 = vadd.f32 %v229, %v319
      %v374 = vadd.f32 %v230, %v321
      %v375 = vadd.f32 %v231, %v323
      %v376 = vadd.f32 %v232, %v325
      %v377 = vadd.f32 %v233, %v327
      %v378 = vadd.f32 %v234, %v329
      %v379 = vadd.f32 %v235, %v331
      %v380 = vadd.f32 %v236, %v333
      %v381 = vadd.f32 %v237, %v335
      %v382 = vadd.f32 %v238, %v337
      %v383 = vadd.f32 %v239, %v339
      %v384 = vadd.f32 %v240, %v341
      %v385 = vadd.f32 %v241, %v343
      %v386 = vadd.f32 %v242, %v345
      %v387 = vadd.f32 %v243, %v347
      %v388 = vadd.f32 %v244, %v349
      %v389 = vadd.f32 %v245, %v351
      %v390 = vadd.f32 %v246, %v353
      %v391 = vadd.f32 %v247, %v355
      %v392 = vld [vmem:[%s200 + $0x7] sm:$0xff]
      %v393 = vld [vmem:[%s200 + $0xf] sm:$0xff]
      %v394 = vld [vmem:[%s200 + $0x17] sm:$0xff]
      %v395 = vld [vmem:[%s200 + $0x1f] sm:$0xff]
      %v396 = vld [vmem:[%s200 + $0x27] sm:$0xff]
      %v397 = vld [vmem:[%s200 + $0x2f] sm:$0xff]
      %v398 = vld [vmem:[%s200 + $0x37] sm:$0xff]
      %v399 = vld [vmem:[%s200 + $0x3f] sm:$0xff]
      %v400 = vld [vmem:[%s200 + $0x47] sm:$0xff]
      %v401 = vld [vmem:[%s200 + $0x4f] sm:$0xff]
      %v402 = vld [vmem:[%s200 + $0x57] sm:$0xff]
      %v403 = vld [vmem:[%s200 + $0x5f] sm:$0xff]
      %v404 = vld [vmem:[%s200 + $0x67] sm:$0xff]
      %v405 = vld [vmem:[%s200 + $0x6f] sm:$0xff]
      %v406 = vld [vmem:[%s200 + $0x77] sm:$0xff]
      %v407 = vld [vmem:[%s200 + $0x7f] sm:$0xff]
      %v408 = vld [vmem:[%s200 + $0x87] sm:$0xff]
      %v409 = vld [vmem:[%s200 + $0x8f] sm:$0xff]
      %v410 = vld [vmem:[%s200 + $0x97] sm:$0xff]
      %v411 = vld [vmem:[%s200 + $0x9f] sm:$0xff]
      %v412 = vld [vmem:[%s200 + $0xa7] sm:$0xff]
      %v413 = vld [vmem:[%s200 + $0xaf] sm:$0xff]
      %v414 = vld [vmem:[%s200 + $0xb7] sm:$0xff]
      %v415 = vld [vmem:[%s200 + $0xbf] sm:$0xff]
      %v416 = vld [vmem:[%s200 + $0xc7] sm:$0xff]
      %v417 = vld [vmem:[%s200 + $0xcf] sm:$0xff]
      %v418 = vld [vmem:[%s200 + $0xd7] sm:$0xff]
      %v419 = vld [vmem:[%s200 + $0xdf] sm:$0xff]
      %v420 = vld [vmem:[%s200 + $0xe7] sm:$0xff]
      %v421 = vld [vmem:[%s200 + $0xef] sm:$0xff]
      %v422 = vld [vmem:[%s200 + $0xf7] sm:$0xff]
      %v423 = vld [vmem:[%s200 + $0xff] sm:$0xff]
      %v424 = vld [vmem:[%s200 + $0x107] sm:$0xff]
      %v425 = vld [vmem:[%s200 + $0x10f] sm:$0xff]
      %v426 = vld [vmem:[%s200 + $0x117] sm:$0xff]
      %v427 = vld [vmem:[%s200 + $0x11f] sm:$0xff]
      %428 = vrot.lane.b32.xlu0 %v392, 8
      %v429 = vpop.permute.xlu0 %428
      %430 = vrot.lane.b32.xlu0 %v393, 8
      %v431 = vpop.permute.xlu0 %430
      %432 = vrot.lane.b32.xlu0 %v394, 8
      %v433 = vpop.permute.xlu0 %432
      %434 = vrot.lane.b32.xlu0 %v395, 8
      %v435 = vpop.permute.xlu0 %434
      %436 = vrot.lane.b32.xlu0 %v396, 8
      %v437 = vpop.permute.xlu0 %436
      %438 = vrot.lane.b32.xlu0 %v397, 8
      %v439 = vpop.permute.xlu0 %438
      %440 = vrot.lane.b32.xlu0 %v398, 8
      %v441 = vpop.permute.xlu0 %440
      %442 = vrot.lane.b32.xlu0 %v399, 8
      %v443 = vpop.permute.xlu0 %442
      %444 = vrot.lane.b32.xlu0 %v400, 8
      %v445 = vpop.permute.xlu0 %444
      %446 = vrot.lane.b32.xlu0 %v401, 8
      %v447 = vpop.permute.xlu0 %446
      %448 = vrot.lane.b32.xlu0 %v402, 8
      %v449 = vpop.permute.xlu0 %448
      %450 = vrot.lane.b32.xlu0 %v403, 8
      %v451 = vpop.permute.xlu0 %450
      %452 = vrot.lane.b32.xlu0 %v404, 8
      %v453 = vpop.permute.xlu0 %452
      %454 = vrot.lane.b32.xlu0 %v405, 8
      %v455 = vpop.permute.xlu0 %454
      %456 = vrot.lane.b32.xlu0 %v406, 8
      %v457 = vpop.permute.xlu0 %456
      %458 = vrot.lane.b32.xlu0 %v407, 8
      %v459 = vpop.permute.xlu0 %458
      %460 = vrot.lane.b32.xlu0 %v408, 8
      %v461 = vpop.permute.xlu0 %460
      %462 = vrot.lane.b32.xlu0 %v409, 8
      %v463 = vpop.permute.xlu0 %462
      %464 = vrot.lane.b32.xlu0 %v410, 8
      %v465 = vpop.permute.xlu0 %464
      %466 = vrot.lane.b32.xlu0 %v411, 8
      %v467 = vpop.permute.xlu0 %466
      %468 = vrot.lane.b32.xlu0 %v412, 8
      %v469 = vpop.permute.xlu0 %468
      %470 = vrot.lane.b32.xlu0 %v413, 8
      %v471 = vpop.permute.xlu0 %470
      %472 = vrot.lane.b32.xlu0 %v414, 8
      %v473 = vpop.permute.xlu0 %472
      %474 = vrot.lane.b32.xlu0 %v415, 8
      %v475 = vpop.permute.xlu0 %474
      %476 = vrot.lane.b32.xlu0 %v416, 8
      %v477 = vpop.permute.xlu0 %476
      %478 = vrot.lane.b32.xlu0 %v417, 8
      %v479 = vpop.permute.xlu0 %478
      %480 = vrot.lane.b32.xlu0 %v418, 8
      %v481 = vpop.permute.xlu0 %480
      %482 = vrot.lane.b32.xlu0 %v419, 8
      %v483 = vpop.permute.xlu0 %482
      %484 = vrot.lane.b32.xlu0 %v420, 8
      %v485 = vpop.permute.xlu0 %484
      %486 = vrot.lane.b32.xlu0 %v421, 8
      %v487 = vpop.permute.xlu0 %486
      %488 = vrot.lane.b32.xlu0 %v422, 8
      %v489 = vpop.permute.xlu0 %488
      %490 = vrot.lane.b32.xlu0 %v423, 8
      %v491 = vpop.permute.xlu0 %490
      %492 = vrot.lane.b32.xlu0 %v424, 8
      %v493 = vpop.permute.xlu0 %492
      %494 = vrot.lane.b32.xlu0 %v425, 8
      %v495 = vpop.permute.xlu0 %494
      %496 = vrot.lane.b32.xlu0 %v426, 8
      %v497 = vpop.permute.xlu0 %496
      %498 = vrot.lane.b32.xlu0 %v427, 8
      %v499 = vpop.permute.xlu0 %498
      %v500 = vadd.f32 %v356, %v429
      %v501 = vadd.f32 %v357, %v431
      %v502 = vadd.f32 %v358, %v433
      %v503 = vadd.f32 %v359, %v435
      %v504 = vadd.f32 %v360, %v437
      %v505 = vadd.f32 %v361, %v439
      %v506 = vadd.f32 %v362, %v441
      %v507 = vadd.f32 %v363, %v443
      %v508 = vadd.f32 %v364, %v445
      %v509 = vadd.f32 %v365, %v447
      %v510 = vadd.f32 %v366, %v449
      %v511 = vadd.f32 %v367, %v451
      %v512 = vadd.f32 %v368, %v453
      %v513 = vadd.f32 %v369, %v455
      %v514 = vadd.f32 %v370, %v457
      %v515 = vadd.f32 %v371, %v459
      %v516 = vadd.f32 %v372, %v461
      %v517 = vadd.f32 %v373, %v463
      %v518 = vadd.f32 %v374, %v465
      %v519 = vadd.f32 %v375, %v467
      %v520 = vadd.f32 %v376, %v469
      %v521 = vadd.f32 %v377, %v471
      %v522 = vadd.f32 %v378, %v473
      %v523 = vadd.f32 %v379, %v475
      %v524 = vadd.f32 %v380, %v477
      %v525 = vadd.f32 %v381, %v479
      %v526 = vadd.f32 %v382, %v481
      %v527 = vadd.f32 %v383, %v483
      %v528 = vadd.f32 %v384, %v485
      %v529 = vadd.f32 %v385, %v487
      %v530 = vadd.f32 %v386, %v489
      %v531 = vadd.f32 %v387, %v491
      %v532 = vadd.f32 %v388, %v493
      %v533 = vadd.f32 %v389, %v495
      %v534 = vadd.f32 %v390, %v497
      %v535 = vadd.f32 %v391, %v499
      %v536 = vld [vmem:[%s200 + $0x127] sm:$0xff]
      %v537 = vld [vmem:[%s200 + $0x12f] sm:$0xff]
      %538 = vrot.lane.b32.xlu0 %v394, 12
      %v539 = vpop.permute.xlu0 %538
      %540 = vrot.lane.b32.xlu0 %v395, 12
      %v541 = vpop.permute.xlu0 %540
      %542 = vrot.lane.b32.xlu0 %v396, 12
      %v543 = vpop.permute.xlu0 %542
      %544 = vrot.lane.b32.xlu0 %v397, 12
      %v545 = vpop.permute.xlu0 %544
      %546 = vrot.lane.b32.xlu0 %v398, 12
      %v547 = vpop.permute.xlu0 %546
      %548 = vrot.lane.b32.xlu0 %v399, 12
      %v549 = vpop.permute.xlu0 %548
      %550 = vrot.lane.b32.xlu0 %v400, 12
      %v551 = vpop.permute.xlu0 %550
      %552 = vrot.lane.b32.xlu0 %v401, 12
      %v553 = vpop.permute.xlu0 %552
      %554 = vrot.lane.b32.xlu0 %v402, 12
      %v555 = vpop.permute.xlu0 %554
      %556 = vrot.lane.b32.xlu0 %v403, 12
      %v557 = vpop.permute.xlu0 %556
      %558 = vrot.lane.b32.xlu0 %v404, 12
      %v559 = vpop.permute.xlu0 %558
      %560 = vrot.lane.b32.xlu0 %v405, 12
      %v561 = vpop.permute.xlu0 %560
      %562 = vrot.lane.b32.xlu0 %v406, 12
      %v563 = vpop.permute.xlu0 %562
      %564 = vrot.lane.b32.xlu0 %v407, 12
      %v565 = vpop.permute.xlu0 %564
      %566 = vrot.lane.b32.xlu0 %v408, 12
      %v567 = vpop.permute.xlu0 %566
      %568 = vrot.lane.b32.xlu0 %v409, 12
      %v569 = vpop.permute.xlu0 %568
      %570 = vrot.lane.b32.xlu0 %v410, 12
      %v571 = vpop.permute.xlu0 %570
      %572 = vrot.lane.b32.xlu0 %v411, 12
      %v573 = vpop.permute.xlu0 %572
      %574 = vrot.lane.b32.xlu0 %v412, 12
      %v575 = vpop.permute.xlu0 %574
      %576 = vrot.lane.b32.xlu0 %v413, 12
      %v577 = vpop.permute.xlu0 %576
      %578 = vrot.lane.b32.xlu0 %v414, 12
      %v579 = vpop.permute.xlu0 %578
      %580 = vrot.lane.b32.xlu0 %v415, 12
      %v581 = vpop.permute.xlu0 %580
      %582 = vrot.lane.b32.xlu0 %v416, 12
      %v583 = vpop.permute.xlu0 %582
      %584 = vrot.lane.b32.xlu0 %v417, 12
      %v585 = vpop.permute.xlu0 %584
      %586 = vrot.lane.b32.xlu0 %v418, 12
      %v587 = vpop.permute.xlu0 %586
      %588 = vrot.lane.b32.xlu0 %v419, 12
      %v589 = vpop.permute.xlu0 %588
      %590 = vrot.lane.b32.xlu0 %v420, 12
      %v591 = vpop.permute.xlu0 %590
      %592 = vrot.lane.b32.xlu0 %v421, 12
      %v593 = vpop.permute.xlu0 %592
      %594 = vrot.lane.b32.xlu0 %v422, 12
      %v595 = vpop.permute.xlu0 %594
      %596 = vrot.lane.b32.xlu0 %v423, 12
      %v597 = vpop.permute.xlu0 %596
      %598 = vrot.lane.b32.xlu0 %v424, 12
      %v599 = vpop.permute.xlu0 %598
      %600 = vrot.lane.b32.xlu0 %v425, 12
      %v601 = vpop.permute.xlu0 %600
      %602 = vrot.lane.b32.xlu0 %v426, 12
      %v603 = vpop.permute.xlu0 %602
      %604 = vrot.lane.b32.xlu0 %v427, 12
      %v605 = vpop.permute.xlu0 %604
      %606 = vrot.lane.b32.xlu0 %v536, 12
      %v607 = vpop.permute.xlu0 %606
      %608 = vrot.lane.b32.xlu0 %v537, 12
      %v609 = vpop.permute.xlu0 %608
      %v610 = vadd.f32 %v500, %v539
      %v611 = vadd.f32 %v501, %v541
      %v612 = vadd.f32 %v502, %v543
      %v613 = vadd.f32 %v503, %v545
      %v614 = vadd.f32 %v504, %v547
      %v615 = vadd.f32 %v505, %v549
      %v616 = vadd.f32 %v506, %v551
      %v617 = vadd.f32 %v507, %v553
      %v618 = vadd.f32 %v508, %v555
      %v619 = vadd.f32 %v509, %v557
      %v620 = vadd.f32 %v510, %v559
      %v621 = vadd.f32 %v511, %v561
      %v622 = vadd.f32 %v512, %v563
      %v623 = vadd.f32 %v513, %v565
      %v624 = vadd.f32 %v514, %v567
      %v625 = vadd.f32 %v515, %v569
      %v626 = vadd.f32 %v516, %v571
      %v627 = vadd.f32 %v517, %v573
      %v628 = vadd.f32 %v518, %v575
      %v629 = vadd.f32 %v519, %v577
      %v630 = vadd.f32 %v520, %v579
      %v631 = vadd.f32 %v521, %v581
      %v632 = vadd.f32 %v522, %v583
      %v633 = vadd.f32 %v523, %v585
      %v634 = vadd.f32 %v524, %v587
      %v635 = vadd.f32 %v525, %v589
      %v636 = vadd.f32 %v526, %v591
      %v637 = vadd.f32 %v527, %v593
      %v638 = vadd.f32 %v528, %v595
      %v639 = vadd.f32 %v529, %v597
      %v640 = vadd.f32 %v530, %v599
      %v641 = vadd.f32 %v531, %v601
      %v642 = vadd.f32 %v532, %v603
      %v643 = vadd.f32 %v533, %v605
      %v644 = vadd.f32 %v534, %v607
      %v645 = vadd.f32 %v535, %v609
      %v646 = vld [vmem:[%s200 + $0x18] sm:$0xff]
      %v647 = vld [vmem:[%s200 + $0x20] sm:$0xff]
      %v648 = vld [vmem:[%s200 + $0x28] sm:$0xff]
      %v649 = vld [vmem:[%s200 + $0x30] sm:$0xff]
      %v650 = vld [vmem:[%s200 + $0x38] sm:$0xff]
      %v651 = vld [vmem:[%s200 + $0x40] sm:$0xff]
      %v652 = vld [vmem:[%s200 + $0x48] sm:$0xff]
      %v653 = vld [vmem:[%s200 + $0x50] sm:$0xff]
      %v654 = vld [vmem:[%s200 + $0x58] sm:$0xff]
      %v655 = vld [vmem:[%s200 + $0x60] sm:$0xff]
      %v656 = vld [vmem:[%s200 + $0x68] sm:$0xff]
      %v657 = vld [vmem:[%s200 + $0x70] sm:$0xff]
      %v658 = vld [vmem:[%s200 + $0x78] sm:$0xff]
      %v659 = vld [vmem:[%s200 + $0x80] sm:$0xff]
      %v660 = vld [vmem:[%s200 + $0x88] sm:$0xff]
      %v661 = vld [vmem:[%s200 + $0x90] sm:$0xff]
      %v662 = vld [vmem:[%s200 + $0x98] sm:$0xff]
      %v663 = vld [vmem:[%s200 + $0xa0] sm:$0xff]
      %v664 = vld [vmem:[%s200 + $0xa8] sm:$0xff]
      %v665 = vld [vmem:[%s200 + $0xb0] sm:$0xff]
      %v666 = vld [vmem:[%s200 + $0xb8] sm:$0xff]
      %v667 = vld [vmem:[%s200 + $0xc0] sm:$0xff]
      %v668 = vld [vmem:[%s200 + $0xc8] sm:$0xff]
      %v669 = vld [vmem:[%s200 + $0xd0] sm:$0xff]
      %v670 = vld [vmem:[%s200 + $0xd8] sm:$0xff]
      %v671 = vld [vmem:[%s200 + $0xe0] sm:$0xff]
      %v672 = vld [vmem:[%s200 + $0xe8] sm:$0xff]
      %v673 = vld [vmem:[%s200 + $0xf0] sm:$0xff]
      %v674 = vld [vmem:[%s200 + $0xf8] sm:$0xff]
      %v675 = vld [vmem:[%s200 + $0x100] sm:$0xff]
      %v676 = vld [vmem:[%s200 + $0x108] sm:$0xff]
      %v677 = vld [vmem:[%s200 + $0x110] sm:$0xff]
      %v678 = vld [vmem:[%s200 + $0x118] sm:$0xff]
      %v679 = vld [vmem:[%s200 + $0x120] sm:$0xff]
      %v680 = vld [vmem:[%s200 + $0x128] sm:$0xff]
      %v681 = vld [vmem:[%s200 + $0x130] sm:$0xff]
      %682 = vrot.lane.b32.xlu0 %v646, 16
      %v683 = vpop.permute.xlu0 %682
      %684 = vrot.lane.b32.xlu0 %v647, 16
      %v685 = vpop.permute.xlu0 %684
      %686 = vrot.lane.b32.xlu0 %v648, 16
      %v687 = vpop.permute.xlu0 %686
      %688 = vrot.lane.b32.xlu0 %v649, 16
      %v689 = vpop.permute.xlu0 %688
      %690 = vrot.lane.b32.xlu0 %v650, 16
      %v691 = vpop.permute.xlu0 %690
      %692 = vrot.lane.b32.xlu0 %v651, 16
      %v693 = vpop.permute.xlu0 %692
      %694 = vrot.lane.b32.xlu0 %v652, 16
      %v695 = vpop.permute.xlu0 %694
      %696 = vrot.lane.b32.xlu0 %v653, 16
      %v697 = vpop.permute.xlu0 %696
      %698 = vrot.lane.b32.xlu0 %v654, 16
      %v699 = vpop.permute.xlu0 %698
      %700 = vrot.lane.b32.xlu0 %v655, 16
      %v701 = vpop.permute.xlu0 %700
      %702 = vrot.lane.b32.xlu0 %v656, 16
      %v703 = vpop.permute.xlu0 %702
      %704 = vrot.lane.b32.xlu0 %v657, 16
      %v705 = vpop.permute.xlu0 %704
      %706 = vrot.lane.b32.xlu0 %v658, 16
      %v707 = vpop.permute.xlu0 %706
      %708 = vrot.lane.b32.xlu0 %v659, 16
      %v709 = vpop.permute.xlu0 %708
      %710 = vrot.lane.b32.xlu0 %v660, 16
      %v711 = vpop.permute.xlu0 %710
      %712 = vrot.lane.b32.xlu0 %v661, 16
      %v713 = vpop.permute.xlu0 %712
      %714 = vrot.lane.b32.xlu0 %v662, 16
      %v715 = vpop.permute.xlu0 %714
      %716 = vrot.lane.b32.xlu0 %v663, 16
      %v717 = vpop.permute.xlu0 %716
      %718 = vrot.lane.b32.xlu0 %v664, 16
      %v719 = vpop.permute.xlu0 %718
      %720 = vrot.lane.b32.xlu0 %v665, 16
      %v721 = vpop.permute.xlu0 %720
      %722 = vrot.lane.b32.xlu0 %v666, 16
      %v723 = vpop.permute.xlu0 %722
      %724 = vrot.lane.b32.xlu0 %v667, 16
      %v725 = vpop.permute.xlu0 %724
      %726 = vrot.lane.b32.xlu0 %v668, 16
      %v727 = vpop.permute.xlu0 %726
      %728 = vrot.lane.b32.xlu0 %v669, 16
      %v729 = vpop.permute.xlu0 %728
      %730 = vrot.lane.b32.xlu0 %v670, 16
      %v731 = vpop.permute.xlu0 %730
      %732 = vrot.lane.b32.xlu0 %v671, 16
      %v733 = vpop.permute.xlu0 %732
      %734 = vrot.lane.b32.xlu0 %v672, 16
      %v735 = vpop.permute.xlu0 %734
      %736 = vrot.lane.b32.xlu0 %v673, 16
      %v737 = vpop.permute.xlu0 %736
      %738 = vrot.lane.b32.xlu0 %v674, 16
      %v739 = vpop.permute.xlu0 %738
      %740 = vrot.lane.b32.xlu0 %v675, 16
      %v741 = vpop.permute.xlu0 %740
      %742 = vrot.lane.b32.xlu0 %v676, 16
      %v743 = vpop.permute.xlu0 %742
      %744 = vrot.lane.b32.xlu0 %v677, 16
      %v745 = vpop.permute.xlu0 %744
      %746 = vrot.lane.b32.xlu0 %v678, 16
      %v747 = vpop.permute.xlu0 %746
      %748 = vrot.lane.b32.xlu0 %v679, 16
      %v749 = vpop.permute.xlu0 %748
      %750 = vrot.lane.b32.xlu0 %v680, 16
      %v751 = vpop.permute.xlu0 %750
      %752 = vrot.lane.b32.xlu0 %v681, 16
      %v753 = vpop.permute.xlu0 %752
      %v754 = vadd.f32 %v610, %v683
      %v755 = vadd.f32 %v611, %v685
      %v756 = vadd.f32 %v612, %v687
      %v757 = vadd.f32 %v613, %v689
      %v758 = vadd.f32 %v614, %v691
      %v759 = vadd.f32 %v615, %v693
      %v760 = vadd.f32 %v616, %v695
      %v761 = vadd.f32 %v617, %v697
      %v762 = vadd.f32 %v618, %v699
      %v763 = vadd.f32 %v619, %v701
      %v764 = vadd.f32 %v620, %v703
      %v765 = vadd.f32 %v621, %v705
      %v766 = vadd.f32 %v622, %v707
      %v767 = vadd.f32 %v623, %v709
      %v768 = vadd.f32 %v624, %v711
      %v769 = vadd.f32 %v625, %v713
      %v770 = vadd.f32 %v626, %v715
      %v771 = vadd.f32 %v627, %v717
      %v772 = vadd.f32 %v628, %v719
      %v773 = vadd.f32 %v629, %v721
      %v774 = vadd.f32 %v630, %v723
      %v775 = vadd.f32 %v631, %v725
      %v776 = vadd.f32 %v632, %v727
      %v777 = vadd.f32 %v633, %v729
      %v778 = vadd.f32 %v634, %v731
      %v779 = vadd.f32 %v635, %v733
      %v780 = vadd.f32 %v636, %v735
      %v781 = vadd.f32 %v637, %v737
      %v782 = vadd.f32 %v638, %v739
      %v783 = vadd.f32 %v639, %v741
      %v784 = vadd.f32 %v640, %v743
      %v785 = vadd.f32 %v641, %v745
      %v786 = vadd.f32 %v642, %v747
      %v787 = vadd.f32 %v643, %v749
      %v788 = vadd.f32 %v644, %v751
      %v789 = vadd.f32 %v645, %v753
      %v790 = vld [vmem:[%s200 + $0x19] sm:$0xff]
      %v791 = vld [vmem:[%s200 + $0x21] sm:$0xff]
      %v792 = vld [vmem:[%s200 + $0x29] sm:$0xff]
      %v793 = vld [vmem:[%s200 + $0x31] sm:$0xff]
      %v794 = vld [vmem:[%s200 + $0x39] sm:$0xff]
      %v795 = vld [vmem:[%s200 + $0x41] sm:$0xff]
      %v796 = vld [vmem:[%s200 + $0x49] sm:$0xff]
      %v797 = vld [vmem:[%s200 + $0x51] sm:$0xff]
      %v798 = vld [vmem:[%s200 + $0x59] sm:$0xff]
      %v799 = vld [vmem:[%s200 + $0x61] sm:$0xff]
      %v800 = vld [vmem:[%s200 + $0x69] sm:$0xff]
      %v801 = vld [vmem:[%s200 + $0x71] sm:$0xff]
      %v802 = vld [vmem:[%s200 + $0x79] sm:$0xff]
      %v803 = vld [vmem:[%s200 + $0x81] sm:$0xff]
      %v804 = vld [vmem:[%s200 + $0x89] sm:$0xff]
      %v805 = vld [vmem:[%s200 + $0x91] sm:$0xff]
      %v806 = vld [vmem:[%s200 + $0x99] sm:$0xff]
      %v807 = vld [vmem:[%s200 + $0xa1] sm:$0xff]
      %v808 = vld [vmem:[%s200 + $0xa9] sm:$0xff]
      %v809 = vld [vmem:[%s200 + $0xb1] sm:$0xff]
      %v810 = vld [vmem:[%s200 + $0xb9] sm:$0xff]
      %v811 = vld [vmem:[%s200 + $0xc1] sm:$0xff]
      %v812 = vld [vmem:[%s200 + $0xc9] sm:$0xff]
      %v813 = vld [vmem:[%s200 + $0xd1] sm:$0xff]
      %v814 = vld [vmem:[%s200 + $0xd9] sm:$0xff]
      %v815 = vld [vmem:[%s200 + $0xe1] sm:$0xff]
      %v816 = vld [vmem:[%s200 + $0xe9] sm:$0xff]
      %v817 = vld [vmem:[%s200 + $0xf1] sm:$0xff]
      %v818 = vld [vmem:[%s200 + $0xf9] sm:$0xff]
      %v819 = vld [vmem:[%s200 + $0x101] sm:$0xff]
      %v820 = vld [vmem:[%s200 + $0x109] sm:$0xff]
      %v821 = vld [vmem:[%s200 + $0x111] sm:$0xff]
      %v822 = vld [vmem:[%s200 + $0x119] sm:$0xff]
      %v823 = vld [vmem:[%s200 + $0x121] sm:$0xff]
      %v824 = vld [vmem:[%s200 + $0x129] sm:$0xff]
      %v825 = vld [vmem:[%s200 + $0x131] sm:$0xff]
      %826 = vrot.lane.b32.xlu0 %v790, 20
      %v827 = vpop.permute.xlu0 %826
      %828 = vrot.lane.b32.xlu0 %v791, 20
      %v829 = vpop.permute.xlu0 %828
      %830 = vrot.lane.b32.xlu0 %v792, 20
      %v831 = vpop.permute.xlu0 %830
      %832 = vrot.lane.b32.xlu0 %v793, 20
      %v833 = vpop.permute.xlu0 %832
      %834 = vrot.lane.b32.xlu0 %v794, 20
      %v835 = vpop.permute.xlu0 %834
      %836 = vrot.lane.b32.xlu0 %v795, 20
      %v837 = vpop.permute.xlu0 %836
      %838 = vrot.lane.b32.xlu0 %v796, 20
      %v839 = vpop.permute.xlu0 %838
      %840 = vrot.lane.b32.xlu0 %v797, 20
      %v841 = vpop.permute.xlu0 %840
      %842 = vrot.lane.b32.xlu0 %v798, 20
      %v843 = vpop.permute.xlu0 %842
      %844 = vrot.lane.b32.xlu0 %v799, 20
      %v845 = vpop.permute.xlu0 %844
      %846 = vrot.lane.b32.xlu0 %v800, 20
      %v847 = vpop.permute.xlu0 %846
      %848 = vrot.lane.b32.xlu0 %v801, 20
      %v849 = vpop.permute.xlu0 %848
      %850 = vrot.lane.b32.xlu0 %v802, 20
      %v851 = vpop.permute.xlu0 %850
      %852 = vrot.lane.b32.xlu0 %v803, 20
      %v853 = vpop.permute.xlu0 %852
      %854 = vrot.lane.b32.xlu0 %v804, 20
      %v855 = vpop.permute.xlu0 %854
      %856 = vrot.lane.b32.xlu0 %v805, 20
      %v857 = vpop.permute.xlu0 %856
      %858 = vrot.lane.b32.xlu0 %v806, 20
      %v859 = vpop.permute.xlu0 %858
      %860 = vrot.lane.b32.xlu0 %v807, 20
      %v861 = vpop.permute.xlu0 %860
      %862 = vrot.lane.b32.xlu0 %v808, 20
      %v863 = vpop.permute.xlu0 %862
      %864 = vrot.lane.b32.xlu0 %v809, 20
      %v865 = vpop.permute.xlu0 %864
      %866 = vrot.lane.b32.xlu0 %v810, 20
      %v867 = vpop.permute.xlu0 %866
      %868 = vrot.lane.b32.xlu0 %v811, 20
      %v869 = vpop.permute.xlu0 %868
      %870 = vrot.lane.b32.xlu0 %v812, 20
      %v871 = vpop.permute.xlu0 %870
      %872 = vrot.lane.b32.xlu0 %v813, 20
      %v873 = vpop.permute.xlu0 %872
      %874 = vrot.lane.b32.xlu0 %v814, 20
      %v875 = vpop.permute.xlu0 %874
      %876 = vrot.lane.b32.xlu0 %v815, 20
      %v877 = vpop.permute.xlu0 %876
      %878 = vrot.lane.b32.xlu0 %v816, 20
      %v879 = vpop.permute.xlu0 %878
      %880 = vrot.lane.b32.xlu0 %v817, 20
      %v881 = vpop.permute.xlu0 %880
      %882 = vrot.lane.b32.xlu0 %v818, 20
      %v883 = vpop.permute.xlu0 %882
      %884 = vrot.lane.b32.xlu0 %v819, 20
      %v885 = vpop.permute.xlu0 %884
      %886 = vrot.lane.b32.xlu0 %v820, 20
      %v887 = vpop.permute.xlu0 %886
      %888 = vrot.lane.b32.xlu0 %v821, 20
      %v889 = vpop.permute.xlu0 %888
      %890 = vrot.lane.b32.xlu0 %v822, 20
      %v891 = vpop.permute.xlu0 %890
      %892 = vrot.lane.b32.xlu0 %v823, 20
      %v893 = vpop.permute.xlu0 %892
      %894 = vrot.lane.b32.xlu0 %v824, 20
      %v895 = vpop.permute.xlu0 %894
      %896 = vrot.lane.b32.xlu0 %v825, 20
      %v897 = vpop.permute.xlu0 %896
      %v898 = vadd.f32 %v754, %v827
      %v899 = vadd.f32 %v755, %v829
      %v900 = vadd.f32 %v756, %v831
      %v901 = vadd.f32 %v757, %v833
      %v902 = vadd.f32 %v758, %v835
      %v903 = vadd.f32 %v759, %v837
      %v904 = vadd.f32 %v760, %v839
      %v905 = vadd.f32 %v761, %v841
      %v906 = vadd.f32 %v762, %v843
      %v907 = vadd.f32 %v763, %v845
      %v908 = vadd.f32 %v764, %v847
      %v909 = vadd.f32 %v765, %v849
      %v910 = vadd.f32 %v766, %v851
      %v911 = vadd.f32 %v767, %v853
      %v912 = vadd.f32 %v768, %v855
      %v913 = vadd.f32 %v769, %v857
      %v914 = vadd.f32 %v770, %v859
      %v915 = vadd.f32 %v771, %v861
      %v916 = vadd.f32 %v772, %v863
      %v917 = vadd.f32 %v773, %v865
      %v918 = vadd.f32 %v774, %v867
      %v919 = vadd.f32 %v775, %v869
      %v920 = vadd.f32 %v776, %v871
      %v921 = vadd.f32 %v777, %v873
      %v922 = vadd.f32 %v778, %v875
      %v923 = vadd.f32 %v779, %v877
      %v924 = vadd.f32 %v780, %v879
      %v925 = vadd.f32 %v781, %v881
      %v926 = vadd.f32 %v782, %v883
      %v927 = vadd.f32 %v783, %v885
      %v928 = vadd.f32 %v784, %v887
      %v929 = vadd.f32 %v785, %v889
      %v930 = vadd.f32 %v786, %v891
      %v931 = vadd.f32 %v787, %v893
      %v932 = vadd.f32 %v788, %v895
      %v933 = vadd.f32 %v789, %v897
      %v934 = vld [vmem:[%s200 + $0x139] sm:$0xff]
      %v935 = vld [vmem:[%s200 + $0x141] sm:$0xff]
      %936 = vrot.lane.b32.xlu0 %v792, 24
      %v937 = vpop.permute.xlu0 %936
      %938 = vrot.lane.b32.xlu0 %v793, 24
      %v939 = vpop.permute.xlu0 %938
      %940 = vrot.lane.b32.xlu0 %v794, 24
      %v941 = vpop.permute.xlu0 %940
      %942 = vrot.lane.b32.xlu0 %v795, 24
      %v943 = vpop.permute.xlu0 %942
      %944 = vrot.lane.b32.xlu0 %v796, 24
      %v945 = vpop.permute.xlu0 %944
      %946 = vrot.lane.b32.xlu0 %v797, 24
      %v947 = vpop.permute.xlu0 %946
      %948 = vrot.lane.b32.xlu0 %v798, 24
      %v949 = vpop.permute.xlu0 %948
      %950 = vrot.lane.b32.xlu0 %v799, 24
      %v951 = vpop.permute.xlu0 %950
      %952 = vrot.lane.b32.xlu0 %v800, 24
      %v953 = vpop.permute.xlu0 %952
      %954 = vrot.lane.b32.xlu0 %v801, 24
      %v955 = vpop.permute.xlu0 %954
      %956 = vrot.lane.b32.xlu0 %v802, 24
      %v957 = vpop.permute.xlu0 %956
      %958 = vrot.lane.b32.xlu0 %v803, 24
      %v959 = vpop.permute.xlu0 %958
      %960 = vrot.lane.b32.xlu0 %v804, 24
      %v961 = vpop.permute.xlu0 %960
      %962 = vrot.lane.b32.xlu0 %v805, 24
      %v963 = vpop.permute.xlu0 %962
      %964 = vrot.lane.b32.xlu0 %v806, 24
      %v965 = vpop.permute.xlu0 %964
      %966 = vrot.lane.b32.xlu0 %v807, 24
      %v967 = vpop.permute.xlu0 %966
      %968 = vrot.lane.b32.xlu0 %v808, 24
      %v969 = vpop.permute.xlu0 %968
      %970 = vrot.lane.b32.xlu0 %v809, 24
      %v971 = vpop.permute.xlu0 %970
      %972 = vrot.lane.b32.xlu0 %v810, 24
      %v973 = vpop.permute.xlu0 %972
      %974 = vrot.lane.b32.xlu0 %v811, 24
      %v975 = vpop.permute.xlu0 %974
      %976 = vrot.lane.b32.xlu0 %v812, 24
      %v977 = vpop.permute.xlu0 %976
      %978 = vrot.lane.b32.xlu0 %v813, 24
      %v979 = vpop.permute.xlu0 %978
      %980 = vrot.lane.b32.xlu0 %v814, 24
      %v981 = vpop.permute.xlu0 %980
      %982 = vrot.lane.b32.xlu0 %v815, 24
      %v983 = vpop.permute.xlu0 %982
      %984 = vrot.lane.b32.xlu0 %v816, 24
      %v985 = vpop.permute.xlu0 %984
      %986 = vrot.lane.b32.xlu0 %v817, 24
      %v987 = vpop.permute.xlu0 %986
      %988 = vrot.lane.b32.xlu0 %v818, 24
      %v989 = vpop.permute.xlu0 %988
      %990 = vrot.lane.b32.xlu0 %v819, 24
      %v991 = vpop.permute.xlu0 %990
      %992 = vrot.lane.b32.xlu0 %v820, 24
      %v993 = vpop.permute.xlu0 %992
      %994 = vrot.lane.b32.xlu0 %v821, 24
      %v995 = vpop.permute.xlu0 %994
      %996 = vrot.lane.b32.xlu0 %v822, 24
      %v997 = vpop.permute.xlu0 %996
      %998 = vrot.lane.b32.xlu0 %v823, 24
      %v999 = vpop.permute.xlu0 %998
      %1000 = vrot.lane.b32.xlu0 %v824, 24
      %v1001 = vpop.permute.xlu0 %1000
      %1002 = vrot.lane.b32.xlu0 %v825, 24
      %v1003 = vpop.permute.xlu0 %1002
      %1004 = vrot.lane.b32.xlu0 %v934, 24
      %v1005 = vpop.permute.xlu0 %1004
      %1006 = vrot.lane.b32.xlu0 %v935, 24
      %v1007 = vpop.permute.xlu0 %1006
      %v1008 = vadd.f32 %v898, %v937
      %v1009 = vadd.f32 %v899, %v939
      %v1010 = vadd.f32 %v900, %v941
      %v1011 = vadd.f32 %v901, %v943
      %v1012 = vadd.f32 %v902, %v945
      %v1013 = vadd.f32 %v903, %v947
      %v1014 = vadd.f32 %v904, %v949
      %v1015 = vadd.f32 %v905, %v951
      %v1016 = vadd.f32 %v906, %v953
      %v1017 = vadd.f32 %v907, %v955
      %v1018 = vadd.f32 %v908, %v957
      %v1019 = vadd.f32 %v909, %v959
      %v1020 = vadd.f32 %v910, %v961
      %v1021 = vadd.f32 %v911, %v963
      %v1022 = vadd.f32 %v912, %v965
      %v1023 = vadd.f32 %v913, %v967
      %v1024 = vadd.f32 %v914, %v969
      %v1025 = vadd.f32 %v915, %v971
      %v1026 = vadd.f32 %v916, %v973
      %v1027 = vadd.f32 %v917, %v975
      %v1028 = vadd.f32 %v918, %v977
      %v1029 = vadd.f32 %v919, %v979
      %v1030 = vadd.f32 %v920, %v981
      %v1031 = vadd.f32 %v921, %v983
      %v1032 = vadd.f32 %v922, %v985
      %v1033 = vadd.f32 %v923, %v987
      %v1034 = vadd.f32 %v924, %v989
      %v1035 = vadd.f32 %v925, %v991
      %v1036 = vadd.f32 %v926, %v993
      %v1037 = vadd.f32 %v927, %v995
      %v1038 = vadd.f32 %v928, %v997
      %v1039 = vadd.f32 %v929, %v999
      %v1040 = vadd.f32 %v930, %v1001
      %v1041 = vadd.f32 %v931, %v1003
      %v1042 = vadd.f32 %v932, %v1005
      %v1043 = vadd.f32 %v933, %v1007
      %v1044 = vld [vmem:[%s200 + $0x2a] sm:$0xff]
      %v1045 = vld [vmem:[%s200 + $0x32] sm:$0xff]
      %v1046 = vld [vmem:[%s200 + $0x3a] sm:$0xff]
      %v1047 = vld [vmem:[%s200 + $0x42] sm:$0xff]
      %v1048 = vld [vmem:[%s200 + $0x4a] sm:$0xff]
      %v1049 = vld [vmem:[%s200 + $0x52] sm:$0xff]
      %v1050 = vld [vmem:[%s200 + $0x5a] sm:$0xff]
      %v1051 = vld [vmem:[%s200 + $0x62] sm:$0xff]
      %v1052 = vld [vmem:[%s200 + $0x6a] sm:$0xff]
      %v1053 = vld [vmem:[%s200 + $0x72] sm:$0xff]
      %v1054 = vld [vmem:[%s200 + $0x7a] sm:$0xff]
      %v1055 = vld [vmem:[%s200 + $0x82] sm:$0xff]
      %v1056 = vld [vmem:[%s200 + $0x8a] sm:$0xff]
      %v1057 = vld [vmem:[%s200 + $0x92] sm:$0xff]
      %v1058 = vld [vmem:[%s200 + $0x9a] sm:$0xff]
      %v1059 = vld [vmem:[%s200 + $0xa2] sm:$0xff]
      %v1060 = vld [vmem:[%s200 + $0xaa] sm:$0xff]
      %v1061 = vld [vmem:[%s200 + $0xb2] sm:$0xff]
      %v1062 = vld [vmem:[%s200 + $0xba] sm:$0xff]
      %v1063 = vld [vmem:[%s200 + $0xc2] sm:$0xff]
      %v1064 = vld [vmem:[%s200 + $0xca] sm:$0xff]
      %v1065 = vld [vmem:[%s200 + $0xd2] sm:$0xff]
      %v1066 = vld [vmem:[%s200 + $0xda] sm:$0xff]
      %v1067 = vld [vmem:[%s200 + $0xe2] sm:$0xff]
      %v1068 = vld [vmem:[%s200 + $0xea] sm:$0xff]
      %v1069 = vld [vmem:[%s200 + $0xf2] sm:$0xff]
      %v1070 = vld [vmem:[%s200 + $0xfa] sm:$0xff]
      %v1071 = vld [vmem:[%s200 + $0x102] sm:$0xff]
      %v1072 = vld [vmem:[%s200 + $0x10a] sm:$0xff]
      %v1073 = vld [vmem:[%s200 + $0x112] sm:$0xff]
      %v1074 = vld [vmem:[%s200 + $0x11a] sm:$0xff]
      %v1075 = vld [vmem:[%s200 + $0x122] sm:$0xff]
      %v1076 = vld [vmem:[%s200 + $0x12a] sm:$0xff]
      %v1077 = vld [vmem:[%s200 + $0x132] sm:$0xff]
      %v1078 = vld [vmem:[%s200 + $0x13a] sm:$0xff]
      %v1079 = vld [vmem:[%s200 + $0x142] sm:$0xff]
      %1080 = vrot.lane.b32.xlu0 %v1044, 28
      %v1081 = vpop.permute.xlu0 %1080
      %1082 = vrot.lane.b32.xlu0 %v1045, 28
      %v1083 = vpop.permute.xlu0 %1082
      %1084 = vrot.lane.b32.xlu0 %v1046, 28
      %v1085 = vpop.permute.xlu0 %1084
      %1086 = vrot.lane.b32.xlu0 %v1047, 28
      %v1087 = vpop.permute.xlu0 %1086
      %1088 = vrot.lane.b32.xlu0 %v1048, 28
      %v1089 = vpop.permute.xlu0 %1088
      %1090 = vrot.lane.b32.xlu0 %v1049, 28
      %v1091 = vpop.permute.xlu0 %1090
      %1092 = vrot.lane.b32.xlu0 %v1050, 28
      %v1093 = vpop.permute.xlu0 %1092
      %1094 = vrot.lane.b32.xlu0 %v1051, 28
      %v1095 = vpop.permute.xlu0 %1094
      %1096 = vrot.lane.b32.xlu0 %v1052, 28
      %v1097 = vpop.permute.xlu0 %1096
      %1098 = vrot.lane.b32.xlu0 %v1053, 28
      %v1099 = vpop.permute.xlu0 %1098
      %1100 = vrot.lane.b32.xlu0 %v1054, 28
      %v1101 = vpop.permute.xlu0 %1100
      %1102 = vrot.lane.b32.xlu0 %v1055, 28
      %v1103 = vpop.permute.xlu0 %1102
      %1104 = vrot.lane.b32.xlu0 %v1056, 28
      %v1105 = vpop.permute.xlu0 %1104
      %1106 = vrot.lane.b32.xlu0 %v1057, 28
      %v1107 = vpop.permute.xlu0 %1106
      %1108 = vrot.lane.b32.xlu0 %v1058, 28
      %v1109 = vpop.permute.xlu0 %1108
      %1110 = vrot.lane.b32.xlu0 %v1059, 28
      %v1111 = vpop.permute.xlu0 %1110
      %1112 = vrot.lane.b32.xlu0 %v1060, 28
      %v1113 = vpop.permute.xlu0 %1112
      %1114 = vrot.lane.b32.xlu0 %v1061, 28
      %v1115 = vpop.permute.xlu0 %1114
      %1116 = vrot.lane.b32.xlu0 %v1062, 28
      %v1117 = vpop.permute.xlu0 %1116
      %1118 = vrot.lane.b32.xlu0 %v1063, 28
      %v1119 = vpop.permute.xlu0 %1118
      %1120 = vrot.lane.b32.xlu0 %v1064, 28
      %v1121 = vpop.permute.xlu0 %1120
      %1122 = vrot.lane.b32.xlu0 %v1065, 28
      %v1123 = vpop.permute.xlu0 %1122
      %1124 = vrot.lane.b32.xlu0 %v1066, 28
      %v1125 = vpop.permute.xlu0 %1124
      %1126 = vrot.lane.b32.xlu0 %v1067, 28
      %v1127 = vpop.permute.xlu0 %1126
      %1128 = vrot.lane.b32.xlu0 %v1068, 28
      %v1129 = vpop.permute.xlu0 %1128
      %1130 = vrot.lane.b32.xlu0 %v1069, 28
      %v1131 = vpop.permute.xlu0 %1130
      %1132 = vrot.lane.b32.xlu0 %v1070, 28
      %v1133 = vpop.permute.xlu0 %1132
      %1134 = vrot.lane.b32.xlu0 %v1071, 28
      %v1135 = vpop.permute.xlu0 %1134
      %1136 = vrot.lane.b32.xlu0 %v1072, 28
      %v1137 = vpop.permute.xlu0 %1136
      %1138 = vrot.lane.b32.xlu0 %v1073, 28
      %v1139 = vpop.permute.xlu0 %1138
      %1140 = vrot.lane.b32.xlu0 %v1074, 28
      %v1141 = vpop.permute.xlu0 %1140
      %1142 = vrot.lane.b32.xlu0 %v1075, 28
      %v1143 = vpop.permute.xlu0 %1142
      %1144 = vrot.lane.b32.xlu0 %v1076, 28
      %v1145 = vpop.permute.xlu0 %1144
      %1146 = vrot.lane.b32.xlu0 %v1077, 28
      %v1147 = vpop.permute.xlu0 %1146
      %1148 = vrot.lane.b32.xlu0 %v1078, 28
      %v1149 = vpop.permute.xlu0 %1148
      %1150 = vrot.lane.b32.xlu0 %v1079, 28
      %v1151 = vpop.permute.xlu0 %1150
      %v1152 = vadd.f32 %v1008, %v1081
      %v1153 = vadd.f32 %v1009, %v1083
      %v1154 = vadd.f32 %v1010, %v1085
      %v1155 = vadd.f32 %v1011, %v1087
      %v1156 = vadd.f32 %v1012, %v1089
      %v1157 = vadd.f32 %v1013, %v1091
      %v1158 = vadd.f32 %v1014, %v1093
      %v1159 = vadd.f32 %v1015, %v1095
      %v1160 = vadd.f32 %v1016, %v1097
      %v1161 = vadd.f32 %v1017, %v1099
      %v1162 = vadd.f32 %v1018, %v1101
      %v1163 = vadd.f32 %v1019, %v1103
      %v1164 = vadd.f32 %v1020, %v1105
      %v1165 = vadd.f32 %v1021, %v1107
      %v1166 = vadd.f32 %v1022, %v1109
      %v1167 = vadd.f32 %v1023, %v1111
      %v1168 = vadd.f32 %v1024, %v1113
      %v1169 = vadd.f32 %v1025, %v1115
      %v1170 = vadd.f32 %v1026, %v1117
      %v1171 = vadd.f32 %v1027, %v1119
      %v1172 = vadd.f32 %v1028, %v1121
      %v1173 = vadd.f32 %v1029, %v1123
      %v1174 = vadd.f32 %v1030, %v1125
      %v1175 = vadd.f32 %v1031, %v1127
      %v1176 = vadd.f32 %v1032, %v1129
      %v1177 = vadd.f32 %v1033, %v1131
      %v1178 = vadd.f32 %v1034, %v1133
      %v1179 = vadd.f32 %v1035, %v1135
      %v1180 = vadd.f32 %v1036, %v1137
      %v1181 = vadd.f32 %v1037, %v1139
      %v1182 = vadd.f32 %v1038, %v1141
      %v1183 = vadd.f32 %v1039, %v1143
      %v1184 = vadd.f32 %v1040, %v1145
      %v1185 = vadd.f32 %v1041, %v1147
      %v1186 = vadd.f32 %v1042, %v1149
      %v1187 = vadd.f32 %v1043, %v1151
      %v1188 = vld [vmem:[%s200 + $0x2b] sm:$0xff]
      %v1189 = vld [vmem:[%s200 + $0x33] sm:$0xff]
      %v1190 = vld [vmem:[%s200 + $0x3b] sm:$0xff]
      %v1191 = vld [vmem:[%s200 + $0x43] sm:$0xff]
      %v1192 = vld [vmem:[%s200 + $0x4b] sm:$0xff]
      %v1193 = vld [vmem:[%s200 + $0x53] sm:$0xff]
      %v1194 = vld [vmem:[%s200 + $0x5b] sm:$0xff]
      %v1195 = vld [vmem:[%s200 + $0x63] sm:$0xff]
      %v1196 = vld [vmem:[%s200 + $0x6b] sm:$0xff]
      %v1197 = vld [vmem:[%s200 + $0x73] sm:$0xff]
      %v1198 = vld [vmem:[%s200 + $0x7b] sm:$0xff]
      %v1199 = vld [vmem:[%s200 + $0x83] sm:$0xff]
      %v1200 = vld [vmem:[%s200 + $0x8b] sm:$0xff]
      %v1201 = vld [vmem:[%s200 + $0x93] sm:$0xff]
      %v1202 = vld [vmem:[%s200 + $0x9b] sm:$0xff]
      %v1203 = vld [vmem:[%s200 + $0xa3] sm:$0xff]
      %v1204 = vld [vmem:[%s200 + $0xab] sm:$0xff]
      %v1205 = vld [vmem:[%s200 + $0xb3] sm:$0xff]
      %v1206 = vld [vmem:[%s200 + $0xbb] sm:$0xff]
      %v1207 = vld [vmem:[%s200 + $0xc3] sm:$0xff]
      %v1208 = vld [vmem:[%s200 + $0xcb] sm:$0xff]
      %v1209 = vld [vmem:[%s200 + $0xd3] sm:$0xff]
      %v1210 = vld [vmem:[%s200 + $0xdb] sm:$0xff]
      %v1211 = vld [vmem:[%s200 + $0xe3] sm:$0xff]
      %v1212 = vld [vmem:[%s200 + $0xeb] sm:$0xff]
      %v1213 = vld [vmem:[%s200 + $0xf3] sm:$0xff]
      %v1214 = vld [vmem:[%s200 + $0xfb] sm:$0xff]
      %v1215 = vld [vmem:[%s200 + $0x103] sm:$0xff]
      %v1216 = vld [vmem:[%s200 + $0x10b] sm:$0xff]
      %v1217 = vld [vmem:[%s200 + $0x113] sm:$0xff]
      %v1218 = vld [vmem:[%s200 + $0x11b] sm:$0xff]
      %v1219 = vld [vmem:[%s200 + $0x123] sm:$0xff]
      %v1220 = vld [vmem:[%s200 + $0x12b] sm:$0xff]
      %v1221 = vld [vmem:[%s200 + $0x133] sm:$0xff]
      %v1222 = vld [vmem:[%s200 + $0x13b] sm:$0xff]
      %v1223 = vld [vmem:[%s200 + $0x143] sm:$0xff]
      %1224 = vrot.lane.b32.xlu0 %v1188, 32
      %v1225 = vpop.permute.xlu0 %1224
      %1226 = vrot.lane.b32.xlu0 %v1189, 32
      %v1227 = vpop.permute.xlu0 %1226
      %1228 = vrot.lane.b32.xlu0 %v1190, 32
      %v1229 = vpop.permute.xlu0 %1228
      %1230 = vrot.lane.b32.xlu0 %v1191, 32
      %v1231 = vpop.permute.xlu0 %1230
      %1232 = vrot.lane.b32.xlu0 %v1192, 32
      %v1233 = vpop.permute.xlu0 %1232
      %1234 = vrot.lane.b32.xlu0 %v1193, 32
      %v1235 = vpop.permute.xlu0 %1234
      %1236 = vrot.lane.b32.xlu0 %v1194, 32
      %v1237 = vpop.permute.xlu0 %1236
      %1238 = vrot.lane.b32.xlu0 %v1195, 32
      %v1239 = vpop.permute.xlu0 %1238
      %1240 = vrot.lane.b32.xlu0 %v1196, 32
      %v1241 = vpop.permute.xlu0 %1240
      %1242 = vrot.lane.b32.xlu0 %v1197, 32
      %v1243 = vpop.permute.xlu0 %1242
      %1244 = vrot.lane.b32.xlu0 %v1198, 32
      %v1245 = vpop.permute.xlu0 %1244
      %1246 = vrot.lane.b32.xlu0 %v1199, 32
      %v1247 = vpop.permute.xlu0 %1246
      %1248 = vrot.lane.b32.xlu0 %v1200, 32
      %v1249 = vpop.permute.xlu0 %1248
      %1250 = vrot.lane.b32.xlu0 %v1201, 32
      %v1251 = vpop.permute.xlu0 %1250
      %1252 = vrot.lane.b32.xlu0 %v1202, 32
      %v1253 = vpop.permute.xlu0 %1252
      %1254 = vrot.lane.b32.xlu0 %v1203, 32
      %v1255 = vpop.permute.xlu0 %1254
      %1256 = vrot.lane.b32.xlu0 %v1204, 32
      %v1257 = vpop.permute.xlu0 %1256
      %1258 = vrot.lane.b32.xlu0 %v1205, 32
      %v1259 = vpop.permute.xlu0 %1258
      %1260 = vrot.lane.b32.xlu0 %v1206, 32
      %v1261 = vpop.permute.xlu0 %1260
      %1262 = vrot.lane.b32.xlu0 %v1207, 32
      %v1263 = vpop.permute.xlu0 %1262
      %1264 = vrot.lane.b32.xlu0 %v1208, 32
      %v1265 = vpop.permute.xlu0 %1264
      %1266 = vrot.lane.b32.xlu0 %v1209, 32
      %v1267 = vpop.permute.xlu0 %1266
      %1268 = vrot.lane.b32.xlu0 %v1210, 32
      %v1269 = vpop.permute.xlu0 %1268
      %1270 = vrot.lane.b32.xlu0 %v1211, 32
      %v1271 = vpop.permute.xlu0 %1270
      %1272 = vrot.lane.b32.xlu0 %v1212, 32
      %v1273 = vpop.permute.xlu0 %1272
      %1274 = vrot.lane.b32.xlu0 %v1213, 32
      %v1275 = vpop.permute.xlu0 %1274
      %1276 = vrot.lane.b32.xlu0 %v1214, 32
      %v1277 = vpop.permute.xlu0 %1276
      %1278 = vrot.lane.b32.xlu0 %v1215, 32
      %v1279 = vpop.permute.xlu0 %1278
      %1280 = vrot.lane.b32.xlu0 %v1216, 32
      %v1281 = vpop.permute.xlu0 %1280
      %1282 = vrot.lane.b32.xlu0 %v1217, 32
      %v1283 = vpop.permute.xlu0 %1282
      %1284 = vrot.lane.b32.xlu0 %v1218, 32
      %v1285 = vpop.permute.xlu0 %1284
      %1286 = vrot.lane.b32.xlu0 %v1219, 32
      %v1287 = vpop.permute.xlu0 %1286
      %1288 = vrot.lane.b32.xlu0 %v1220, 32
      %v1289 = vpop.permute.xlu0 %1288
      %1290 = vrot.lane.b32.xlu0 %v1221, 32
      %v1291 = vpop.permute.xlu0 %1290
      %1292 = vrot.lane.b32.xlu0 %v1222, 32
      %v1293 = vpop.permute.xlu0 %1292
      %1294 = vrot.lane.b32.xlu0 %v1223, 32
      %v1295 = vpop.permute.xlu0 %1294
      %v1296 = vadd.f32 %v1152, %v1225
      %v1297 = vadd.f32 %v1153, %v1227
      %v1298 = vadd.f32 %v1154, %v1229
      %v1299 = vadd.f32 %v1155, %v1231
      %v1300 = vadd.f32 %v1156, %v1233
      %v1301 = vadd.f32 %v1157, %v1235
      %v1302 = vadd.f32 %v1158, %v1237
      %v1303 = vadd.f32 %v1159, %v1239
      %v1304 = vadd.f32 %v1160, %v1241
      %v1305 = vadd.f32 %v1161, %v1243
      %v1306 = vadd.f32 %v1162, %v1245
      %v1307 = vadd.f32 %v1163, %v1247
      %v1308 = vadd.f32 %v1164, %v1249
      %v1309 = vadd.f32 %v1165, %v1251
      %v1310 = vadd.f32 %v1166, %v1253
      %v1311 = vadd.f32 %v1167, %v1255
      %v1312 = vadd.f32 %v1168, %v1257
      %v1313 = vadd.f32 %v1169, %v1259
      %v1314 = vadd.f32 %v1170, %v1261
      %v1315 = vadd.f32 %v1171, %v1263
      %v1316 = vadd.f32 %v1172, %v1265
      %v1317 = vadd.f32 %v1173, %v1267
      %v1318 = vadd.f32 %v1174, %v1269
      %v1319 = vadd.f32 %v1175, %v1271
      %v1320 = vadd.f32 %v1176, %v1273
      %v1321 = vadd.f32 %v1177, %v1275
      %v1322 = vadd.f32 %v1178, %v1277
      %v1323 = vadd.f32 %v1179, %v1279
      %v1324 = vadd.f32 %v1180, %v1281
      %v1325 = vadd.f32 %v1181, %v1283
      %v1326 = vadd.f32 %v1182, %v1285
      %v1327 = vadd.f32 %v1183, %v1287
      %v1328 = vadd.f32 %v1184, %v1289
      %v1329 = vadd.f32 %v1185, %v1291
      %v1330 = vadd.f32 %v1186, %v1293
      %v1331 = vadd.f32 %v1187, %v1295
      %v1332 = vpack.c.bf16 %v1297, %v1296
      %v1333 = vpack.c.bf16 %v1299, %v1298
      %v1334 = vpack.c.bf16 %v1301, %v1300
      %v1335 = vpack.c.bf16 %v1303, %v1302
      %v1336 = vpack.c.bf16 %v1305, %v1304
      %v1337 = vpack.c.bf16 %v1307, %v1306
      %v1338 = vpack.c.bf16 %v1309, %v1308
      %v1339 = vpack.c.bf16 %v1311, %v1310
      %v1340 = vpack.c.bf16 %v1313, %v1312
      %v1341 = vpack.c.bf16 %v1315, %v1314
      %v1342 = vpack.c.bf16 %v1317, %v1316
      %v1343 = vpack.c.bf16 %v1319, %v1318
      %v1344 = vpack.c.bf16 %v1321, %v1320
      %v1345 = vpack.c.bf16 %v1323, %v1322
      %v1346 = vpack.c.bf16 %v1325, %v1324
      %v1347 = vpack.c.bf16 %v1327, %v1326
      %v1348 = vpack.c.bf16 %v1329, %v1328
      %v1349 = vpack.c.bf16 %v1331, %v1330
      %v1350 = vld [vmem:[%s2] sm:$0xf]
      %v1351 = vld [vmem:[%s2 + $0x4] sm:$0xf]
      %v1352 = vld [vmem:[%s2 + $0x8] sm:$0xf]
      %v1353 = vld [vmem:[%s2 + $0xc] sm:$0xf]
      %v1354 = vld [vmem:[%s2 + $0x10] sm:$0xf]
      %v1355 = vld [vmem:[%s2 + $0x14] sm:$0xf]
      %v1356 = vld [vmem:[%s2 + $0x18] sm:$0xf]
      %v1357 = vld [vmem:[%s2 + $0x1c] sm:$0xf]
      %v1358 = vld [vmem:[%s2 + $0x20] sm:$0xf]
      %v1359 = vld [vmem:[%s2 + $0x24] sm:$0xf]
      %v1360 = vld [vmem:[%s2 + $0x28] sm:$0xf]
      %v1361 = vld [vmem:[%s2 + $0x2c] sm:$0xf]
      %v1362 = vld [vmem:[%s2 + $0x30] sm:$0xf]
      %v1363 = vld [vmem:[%s2 + $0x34] sm:$0xf]
      %v1364 = vld [vmem:[%s2 + $0x38] sm:$0xf]
      %v1365 = vld [vmem:[%s2 + $0x3c] sm:$0xf]
      %v1382 = vunpack.c.l.b16 %v1350
      %v1383 = vunpack.c.l.b16 %v1351
      %v1384 = vunpack.c.l.b16 %v1352
      %v1385 = vunpack.c.l.b16 %v1353
      %v1386 = vunpack.c.l.b16 %v1354
      %v1387 = vunpack.c.l.b16 %v1355
      %v1388 = vunpack.c.l.b16 %v1356
      %v1389 = vunpack.c.l.b16 %v1357
      %v1390 = vunpack.c.l.b16 %v1358
      %v1391 = vunpack.c.l.b16 %v1359
      %v1392 = vunpack.c.l.b16 %v1360
      %v1393 = vunpack.c.l.b16 %v1361
      %v1394 = vunpack.c.l.b16 %v1362
      %v1395 = vunpack.c.l.b16 %v1363
      %v1396 = vunpack.c.l.b16 %v1364
      %v1397 = vunpack.c.l.b16 %v1365
      %v1398 = vpack.c.b16 %v1383, %v1382
      %v1399 = vpack.c.b16 %v1385, %v1384
      %v1400 = vpack.c.b16 %v1387, %v1386
      %v1401 = vpack.c.b16 %v1389, %v1388
      %v1402 = vpack.c.b16 %v1391, %v1390
      %v1403 = vpack.c.b16 %v1393, %v1392
      %v1404 = vpack.c.b16 %v1395, %v1394
      %v1405 = vpack.c.b16 %v1397, %v1396
      %1414 = vmatpush.bf16.msra.mxu0 %v1405
      %1415 = vmatpush.bf16.msra.mxu0 %v1404
      %1416 = vmatpush.bf16.msra.mxu0 %v1403
      %1417 = vmatpush.bf16.msra.mxu0 %v1402
      %1418 = vmatpush.bf16.msra.mxu0 %v1401
      %1419 = vmatpush.bf16.msra.mxu0 %v1400
      %1420 = vmatpush.bf16.msra.mxu0 %v1399
      %1421 = vmatpush.bf16.msra.mxu0 %v1398
      %1422 = vmatmul.bf16.gmra.mxu0 %v1332
      %v1423 = vpop.f32.mrf.mxu0
      %v1424 = vadd.f32 0.0, %v1423
      %v1425 = vpop.f32.mrf.mxu0
      %v1426 = vadd.f32 0.0, %v1425
      %1427 = vmatmul.bf16.gmra.mxu0 %v1333
      %v1428 = vpop.f32.mrf.mxu0
      %v1429 = vadd.f32 0.0, %v1428
      %v1430 = vpop.f32.mrf.mxu0
      %v1431 = vadd.f32 0.0, %v1430
      %1432 = vmatmul.bf16.gmra.mxu0 %v1334
      %v1433 = vpop.f32.mrf.mxu0
      %v1434 = vadd.f32 0.0, %v1433
      %v1435 = vpop.f32.mrf.mxu0
      %v1436 = vadd.f32 0.0, %v1435
      %1437 = vmatmul.bf16.gmra.mxu0 %v1335
      %v1438 = vpop.f32.mrf.mxu0
      %v1439 = vadd.f32 0.0, %v1438
      %v1440 = vpop.f32.mrf.mxu0
      %v1441 = vadd.f32 0.0, %v1440
      %1442 = vmatmul.bf16.gmra.mxu0 %v1336
      %v1443 = vpop.f32.mrf.mxu0
      %v1444 = vadd.f32 0.0, %v1443
      %v1445 = vpop.f32.mrf.mxu0
      %v1446 = vadd.f32 0.0, %v1445
      %1447 = vmatmul.bf16.gmra.mxu0 %v1337
      %v1448 = vpop.f32.mrf.mxu0
      %v1449 = vadd.f32 0.0, %v1448
      %v1450 = vpop.f32.mrf.mxu0
      %v1451 = vadd.f32 0.0, %v1450
      %1452 = vmatmul.bf16.gmra.mxu0 %v1338
      %v1453 = vpop.f32.mrf.mxu0
      %v1454 = vadd.f32 0.0, %v1453
      %v1455 = vpop.f32.mrf.mxu0
      %v1456 = vadd.f32 0.0, %v1455
      %1457 = vmatmul.bf16.gmra.mxu0 %v1339
      %v1458 = vpop.f32.mrf.mxu0
      %v1459 = vadd.f32 0.0, %v1458
      %v1460 = vpop.f32.mrf.mxu0
      %v1461 = vadd.f32 0.0, %v1460
      %1462 = vmatmul.bf16.gmra.mxu0 %v1340
      %v1463 = vpop.f32.mrf.mxu0
      %v1464 = vadd.f32 0.0, %v1463
      %v1465 = vpop.f32.mrf.mxu0
      %v1466 = vadd.f32 0.0, %v1465
      %1467 = vmatmul.bf16.gmra.mxu0 %v1341
      %v1468 = vpop.f32.mrf.mxu0
      %v1469 = vadd.f32 0.0, %v1468
      %v1470 = vpop.f32.mrf.mxu0
      %v1471 = vadd.f32 0.0, %v1470
      %1472 = vmatmul.bf16.gmra.mxu0 %v1342
      %v1473 = vpop.f32.mrf.mxu0
      %v1474 = vadd.f32 0.0, %v1473
      %v1475 = vpop.f32.mrf.mxu0
      %v1476 = vadd.f32 0.0, %v1475
      %1477 = vmatmul.bf16.gmra.mxu0 %v1343
      %v1478 = vpop.f32.mrf.mxu0
      %v1479 = vadd.f32 0.0, %v1478
      %v1480 = vpop.f32.mrf.mxu0
      %v1481 = vadd.f32 0.0, %v1480
      %1482 = vmatmul.bf16.gmra.mxu0 %v1344
      %v1483 = vpop.f32.mrf.mxu0
      %v1484 = vadd.f32 0.0, %v1483
      %v1485 = vpop.f32.mrf.mxu0
      %v1486 = vadd.f32 0.0, %v1485
      %1487 = vmatmul.bf16.gmra.mxu0 %v1345
      %v1488 = vpop.f32.mrf.mxu0
      %v1489 = vadd.f32 0.0, %v1488
      %v1490 = vpop.f32.mrf.mxu0
      %v1491 = vadd.f32 0.0, %v1490
      %1492 = vmatmul.bf16.gmra.mxu0 %v1346
      %v1493 = vpop.f32.mrf.mxu0
      %v1494 = vadd.f32 0.0, %v1493
      %v1495 = vpop.f32.mrf.mxu0
      %v1496 = vadd.f32 0.0, %v1495
      %1497 = vmatmul.bf16.gmra.mxu0 %v1347
      %v1498 = vpop.f32.mrf.mxu0
      %v1499 = vadd.f32 0.0, %v1498
      %v1500 = vpop.f32.mrf.mxu0
      %v1501 = vadd.f32 0.0, %v1500
      %1502 = vmatmul.bf16.gmra.mxu0 %v1348
      %v1503 = vpop.f32.mrf.mxu0
      %v1504 = vadd.f32 0.0, %v1503
      %v1505 = vpop.f32.mrf.mxu0
      %v1506 = vadd.f32 0.0, %v1505
      %1507 = vmatmul.bf16.gmra.mxu0 %v1349
      %v1508 = vpop.f32.mrf.mxu0
      %v1509 = vadd.f32 0.0, %v1508
      %v1510 = vpop.f32.mrf.mxu0
      %v1511 = vadd.f32 0.0, %v1510
      %1512 = vdwg.mxu0
      %v1513 = vld [vmem:[%s1 + $0x18] sm:$0xff]
      %v1514 = vld [vmem:[%s1 + $0x20] sm:$0xff]
      %v1515 = vld [vmem:[%s1 + $0x28] sm:$0xff]
      %v1516 = vld [vmem:[%s1 + $0x30] sm:$0xff]
      %v1517 = vld [vmem:[%s1 + $0x38] sm:$0xff]
      %v1518 = vld [vmem:[%s1 + $0x40] sm:$0xff]
      %v1519 = vld [vmem:[%s1 + $0x48] sm:$0xff]
      %v1520 = vld [vmem:[%s1 + $0x50] sm:$0xff]
      %v1521 = vld [vmem:[%s1 + $0x58] sm:$0xff]
      %v1522 = vld [vmem:[%s1 + $0x60] sm:$0xff]
      %v1523 = vld [vmem:[%s1 + $0x68] sm:$0xff]
      %v1524 = vld [vmem:[%s1 + $0x70] sm:$0xff]
      %v1525 = vld [vmem:[%s1 + $0x78] sm:$0xff]
      %v1526 = vld [vmem:[%s1 + $0x80] sm:$0xff]
      %v1527 = vld [vmem:[%s1 + $0x88] sm:$0xff]
      %v1528 = vld [vmem:[%s1 + $0x90] sm:$0xff]
      %v1529 = vld [vmem:[%s1 + $0x98] sm:$0xff]
      %v1530 = vld [vmem:[%s1 + $0xa0] sm:$0xff]
      %v1531 = vld [vmem:[%s1 + $0xa8] sm:$0xff]
      %v1532 = vld [vmem:[%s1 + $0xb0] sm:$0xff]
      %v1533 = vld [vmem:[%s1 + $0xb8] sm:$0xff]
      %v1534 = vld [vmem:[%s1 + $0xc0] sm:$0xff]
      %v1535 = vld [vmem:[%s1 + $0xc8] sm:$0xff]
      %v1536 = vld [vmem:[%s1 + $0xd0] sm:$0xff]
      %v1537 = vld [vmem:[%s1 + $0xd8] sm:$0xff]
      %v1538 = vld [vmem:[%s1 + $0xe0] sm:$0xff]
      %v1539 = vld [vmem:[%s1 + $0xe8] sm:$0xff]
      %v1540 = vld [vmem:[%s1 + $0xf0] sm:$0xff]
      %v1541 = vld [vmem:[%s1 + $0xf8] sm:$0xff]
      %v1542 = vld [vmem:[%s1 + $0x100] sm:$0xff]
      %v1543 = vld [vmem:[%s1 + $0x108] sm:$0xff]
      %v1544 = vld [vmem:[%s1 + $0x110] sm:$0xff]
      %v1545 = vld [vmem:[%s1 + $0x118] sm:$0xff]
      %v1546 = vld [vmem:[%s1 + $0x120] sm:$0xff]
      %v1547 = vld [vmem:[%s1 + $0x128] sm:$0xff]
      %v1548 = vld [vmem:[%s1 + $0x130] sm:$0xff]
      %1550 = vset.pattern.permute.xlu0 0
      %1551 = vperm.xlu0 %1550, %v1513
      %v1552 = vpop.permute.xlu0 %1551
      %1555 = vset.pattern.permute.xlu0 0
      %1556 = vperm.xlu0 %1555, %v1514
      %v1557 = vpop.permute.xlu0 %1556
      %1560 = vset.pattern.permute.xlu0 0
      %1561 = vperm.xlu0 %1560, %v1515
      %v1562 = vpop.permute.xlu0 %1561
      %1565 = vset.pattern.permute.xlu0 0
      %1566 = vperm.xlu0 %1565, %v1516
      %v1567 = vpop.permute.xlu0 %1566
      %1570 = vset.pattern.permute.xlu0 0
      %1571 = vperm.xlu0 %1570, %v1517
      %v1572 = vpop.permute.xlu0 %1571
      %1575 = vset.pattern.permute.xlu0 0
      %1576 = vperm.xlu0 %1575, %v1518
      %v1577 = vpop.permute.xlu0 %1576
      %1580 = vset.pattern.permute.xlu0 0
      %1581 = vperm.xlu0 %1580, %v1519
      %v1582 = vpop.permute.xlu0 %1581
      %1585 = vset.pattern.permute.xlu0 0
      %1586 = vperm.xlu0 %1585, %v1520
      %v1587 = vpop.permute.xlu0 %1586
      %1590 = vset.pattern.permute.xlu0 0
      %1591 = vperm.xlu0 %1590, %v1521
      %v1592 = vpop.permute.xlu0 %1591
      %1595 = vset.pattern.permute.xlu0 0
      %1596 = vperm.xlu0 %1595, %v1522
      %v1597 = vpop.permute.xlu0 %1596
      %1600 = vset.pattern.permute.xlu0 0
      %1601 = vperm.xlu0 %1600, %v1523
      %v1602 = vpop.permute.xlu0 %1601
      %1605 = vset.pattern.permute.xlu0 0
      %1606 = vperm.xlu0 %1605, %v1524
      %v1607 = vpop.permute.xlu0 %1606
      %1610 = vset.pattern.permute.xlu0 0
      %1611 = vperm.xlu0 %1610, %v1525
      %v1612 = vpop.permute.xlu0 %1611
      %1615 = vset.pattern.permute.xlu0 0
      %1616 = vperm.xlu0 %1615, %v1526
      %v1617 = vpop.permute.xlu0 %1616
      %1620 = vset.pattern.permute.xlu0 0
      %1621 = vperm.xlu0 %1620, %v1527
      %v1622 = vpop.permute.xlu0 %1621
      %1625 = vset.pattern.permute.xlu0 0
      %1626 = vperm.xlu0 %1625, %v1528
      %v1627 = vpop.permute.xlu0 %1626
      %1630 = vset.pattern.permute.xlu0 0
      %1631 = vperm.xlu0 %1630, %v1529
      %v1632 = vpop.permute.xlu0 %1631
      %1635 = vset.pattern.permute.xlu0 0
      %1636 = vperm.xlu0 %1635, %v1530
      %v1637 = vpop.permute.xlu0 %1636
      %1640 = vset.pattern.permute.xlu0 0
      %1641 = vperm.xlu0 %1640, %v1531
      %v1642 = vpop.permute.xlu0 %1641
      %1645 = vset.pattern.permute.xlu0 0
      %1646 = vperm.xlu0 %1645, %v1532
      %v1647 = vpop.permute.xlu0 %1646
      %1650 = vset.pattern.permute.xlu0 0
      %1651 = vperm.xlu0 %1650, %v1533
      %v1652 = vpop.permute.xlu0 %1651
      %1655 = vset.pattern.permute.xlu0 0
      %1656 = vperm.xlu0 %1655, %v1534
      %v1657 = vpop.permute.xlu0 %1656
      %1660 = vset.pattern.permute.xlu0 0
      %1661 = vperm.xlu0 %1660, %v1535
      %v1662 = vpop.permute.xlu0 %1661
      %1665 = vset.pattern.permute.xlu0 0
      %1666 = vperm.xlu0 %1665, %v1536
      %v1667 = vpop.permute.xlu0 %1666
      %1670 = vset.pattern.permute.xlu0 0
      %1671 = vperm.xlu0 %1670, %v1537
      %v1672 = vpop.permute.xlu0 %1671
      %1675 = vset.pattern.permute.xlu0 0
      %1676 = vperm.xlu0 %1675, %v1538
      %v1677 = vpop.permute.xlu0 %1676
      %1680 = vset.pattern.permute.xlu0 0
      %1681 = vperm.xlu0 %1680, %v1539
      %v1682 = vpop.permute.xlu0 %1681
      %1685 = vset.pattern.permute.xlu0 0
      %1686 = vperm.xlu0 %1685, %v1540
      %v1687 = vpop.permute.xlu0 %1686
      %1690 = vset.pattern.permute.xlu0 0
      %1691 = vperm.xlu0 %1690, %v1541
      %v1692 = vpop.permute.xlu0 %1691
      %1695 = vset.pattern.permute.xlu0 0
      %1696 = vperm.xlu0 %1695, %v1542
      %v1697 = vpop.permute.xlu0 %1696
      %1700 = vset.pattern.permute.xlu0 0
      %1701 = vperm.xlu0 %1700, %v1543
      %v1702 = vpop.permute.xlu0 %1701
      %1705 = vset.pattern.permute.xlu0 0
      %1706 = vperm.xlu0 %1705, %v1544
      %v1707 = vpop.permute.xlu0 %1706
      %1710 = vset.pattern.permute.xlu0 0
      %1711 = vperm.xlu0 %1710, %v1545
      %v1712 = vpop.permute.xlu0 %1711
      %1715 = vset.pattern.permute.xlu0 0
      %1716 = vperm.xlu0 %1715, %v1546
      %v1717 = vpop.permute.xlu0 %1716
      %1720 = vset.pattern.permute.xlu0 0
      %1721 = vperm.xlu0 %1720, %v1547
      %v1722 = vpop.permute.xlu0 %1721
      %1725 = vset.pattern.permute.xlu0 0
      %1726 = vperm.xlu0 %1725, %v1548
      %v1727 = vpop.permute.xlu0 %1726
      %v1729 = vmul.f32 %v1424, %v1552
      %v1730 = vmul.f32 %v1426, %v1557
      %v1731 = vmul.f32 %v1429, %v1562
      %v1732 = vmul.f32 %v1431, %v1567
      %v1733 = vmul.f32 %v1434, %v1572
      %v1734 = vmul.f32 %v1436, %v1577
      %v1735 = vmul.f32 %v1439, %v1582
      %v1736 = vmul.f32 %v1441, %v1587
      %v1737 = vmul.f32 %v1444, %v1592
      %v1738 = vmul.f32 %v1446, %v1597
      %v1739 = vmul.f32 %v1449, %v1602
      %v1740 = vmul.f32 %v1451, %v1607
      %v1741 = vmul.f32 %v1454, %v1612
      %v1742 = vmul.f32 %v1456, %v1617
      %v1743 = vmul.f32 %v1459, %v1622
      %v1744 = vmul.f32 %v1461, %v1627
      %v1745 = vmul.f32 %v1464, %v1632
      %v1746 = vmul.f32 %v1466, %v1637
      %v1747 = vmul.f32 %v1469, %v1642
      %v1748 = vmul.f32 %v1471, %v1647
      %v1749 = vmul.f32 %v1474, %v1652
      %v1750 = vmul.f32 %v1476, %v1657
      %v1751 = vmul.f32 %v1479, %v1662
      %v1752 = vmul.f32 %v1481, %v1667
      %v1753 = vmul.f32 %v1484, %v1672
      %v1754 = vmul.f32 %v1486, %v1677
      %v1755 = vmul.f32 %v1489, %v1682
      %v1756 = vmul.f32 %v1491, %v1687
      %v1757 = vmul.f32 %v1494, %v1692
      %v1758 = vmul.f32 %v1496, %v1697
      %v1759 = vmul.f32 %v1499, %v1702
      %v1760 = vmul.f32 %v1501, %v1707
      %v1761 = vmul.f32 %v1504, %v1712
      %v1762 = vmul.f32 %v1506, %v1717
      %v1763 = vmul.f32 %v1509, %v1722
      %v1764 = vmul.f32 %v1511, %v1727
      %v1765 = vadd.f32 %v1729, %v1730
      %v1766 = vadd.f32 %v1765, %v1731
      %v1767 = vadd.f32 %v1766, %v1732
      %v1768 = vadd.f32 %v1767, %v1733
      %v1769 = vadd.f32 %v1768, %v1734
      %v1770 = vadd.f32 %v1769, %v1735
      %v1771 = vadd.f32 %v1770, %v1736
      %v1772 = vadd.f32 %v1771, %v1737
      %v1773 = vadd.f32 %v1772, %v1738
      %v1774 = vadd.f32 %v1773, %v1739
      %v1775 = vadd.f32 %v1774, %v1740
      %v1776 = vadd.f32 %v1775, %v1741
      %v1777 = vadd.f32 %v1776, %v1742
      %v1778 = vadd.f32 %v1777, %v1743
      %v1779 = vadd.f32 %v1778, %v1744
      %v1780 = vadd.f32 %v1779, %v1745
      %v1781 = vadd.f32 %v1780, %v1746
      %v1782 = vadd.f32 %v1781, %v1747
      %v1783 = vadd.f32 %v1782, %v1748
      %v1784 = vadd.f32 %v1783, %v1749
      %v1785 = vadd.f32 %v1784, %v1750
      %v1786 = vadd.f32 %v1785, %v1751
      %v1787 = vadd.f32 %v1786, %v1752
      %v1788 = vadd.f32 %v1787, %v1753
      %v1789 = vadd.f32 %v1788, %v1754
      %v1790 = vadd.f32 %v1789, %v1755
      %v1791 = vadd.f32 %v1790, %v1756
      %v1792 = vadd.f32 %v1791, %v1757
      %v1793 = vadd.f32 %v1792, %v1758
      %v1794 = vadd.f32 %v1793, %v1759
      %v1795 = vadd.f32 %v1794, %v1760
      %v1796 = vadd.f32 %v1795, %v1761
      %v1797 = vadd.f32 %v1796, %v1762
      %v1798 = vadd.f32 %v1797, %v1763
      %v1799 = vadd.f32 %v1798, %v1764
      %v1800 = vrot.slane %v1799, 4
      %v1801 = vadd.f32 %v1799, %v1800
      %v1802 = vrot.slane %v1801, 2
      %v1803 = vadd.f32 %v1801, %v1802
      %v1804 = vrot.slane %v1803, 1
      %v1805 = vadd.f32 %v1803, %v1804
      %1806 = vst [vmem:[%s211] sm:$0x1] %v1805
      %v1807 = vmul.f32 %v1729, %v1424
      %v1808 = vmul.f32 %v1730, %v1426
      %v1809 = vmul.f32 %v1731, %v1429
      %v1810 = vmul.f32 %v1732, %v1431
      %v1811 = vmul.f32 %v1733, %v1434
      %v1812 = vmul.f32 %v1734, %v1436
      %v1813 = vmul.f32 %v1735, %v1439
      %v1814 = vmul.f32 %v1736, %v1441
      %v1815 = vmul.f32 %v1737, %v1444
      %v1816 = vmul.f32 %v1738, %v1446
      %v1817 = vmul.f32 %v1739, %v1449
      %v1818 = vmul.f32 %v1740, %v1451
      %v1819 = vmul.f32 %v1741, %v1454
      %v1820 = vmul.f32 %v1742, %v1456
      %v1821 = vmul.f32 %v1743, %v1459
      %v1822 = vmul.f32 %v1744, %v1461
      %v1823 = vmul.f32 %v1745, %v1464
      %v1824 = vmul.f32 %v1746, %v1466
      %v1825 = vmul.f32 %v1747, %v1469
      %v1826 = vmul.f32 %v1748, %v1471
      %v1827 = vmul.f32 %v1749, %v1474
      %v1828 = vmul.f32 %v1750, %v1476
      %v1829 = vmul.f32 %v1751, %v1479
      %v1830 = vmul.f32 %v1752, %v1481
      %v1831 = vmul.f32 %v1753, %v1484
      %v1832 = vmul.f32 %v1754, %v1486
      %v1833 = vmul.f32 %v1755, %v1489
      %v1834 = vmul.f32 %v1756, %v1491
      %v1835 = vmul.f32 %v1757, %v1494
      %v1836 = vmul.f32 %v1758, %v1496
      %v1837 = vmul.f32 %v1759, %v1499
      %v1838 = vmul.f32 %v1760, %v1501
      %v1839 = vmul.f32 %v1761, %v1504
      %v1840 = vmul.f32 %v1762, %v1506
      %v1841 = vmul.f32 %v1763, %v1509
      %v1842 = vmul.f32 %v1764, %v1511
      %v1843 = vadd.f32 %v1807, %v1808
      %v1844 = vadd.f32 %v1843, %v1809
      %v1845 = vadd.f32 %v1844, %v1810
      %v1846 = vadd.f32 %v1845, %v1811
      %v1847 = vadd.f32 %v1846, %v1812
      %v1848 = vadd.f32 %v1847, %v1813
      %v1849 = vadd.f32 %v1848, %v1814
      %v1850 = vadd.f32 %v1849, %v1815
      %v1851 = vadd.f32 %v1850, %v1816
      %v1852 = vadd.f32 %v1851, %v1817
      %v1853 = vadd.f32 %v1852, %v1818
      %v1854 = vadd.f32 %v1853, %v1819
      %v1855 = vadd.f32 %v1854, %v1820
      %v1856 = vadd.f32 %v1855, %v1821
      %v1857 = vadd.f32 %v1856, %v1822
      %v1858 = vadd.f32 %v1857, %v1823
      %v1859 = vadd.f32 %v1858, %v1824
      %v1860 = vadd.f32 %v1859, %v1825
      %v1861 = vadd.f32 %v1860, %v1826
      %v1862 = vadd.f32 %v1861, %v1827
      %v1863 = vadd.f32 %v1862, %v1828
      %v1864 = vadd.f32 %v1863, %v1829
      %v1865 = vadd.f32 %v1864, %v1830
      %v1866 = vadd.f32 %v1865, %v1831
      %v1867 = vadd.f32 %v1866, %v1832
      %v1868 = vadd.f32 %v1867, %v1833
      %v1869 = vadd.f32 %v1868, %v1834
      %v1870 = vadd.f32 %v1869, %v1835
      %v1871 = vadd.f32 %v1870, %v1836
      %v1872 = vadd.f32 %v1871, %v1837
      %v1873 = vadd.f32 %v1872, %v1838
      %v1874 = vadd.f32 %v1873, %v1839
      %v1875 = vadd.f32 %v1874, %v1840
      %v1876 = vadd.f32 %v1875, %v1841
      %v1877 = vadd.f32 %v1876, %v1842
      %v1878 = vrot.slane %v1877, 4
      %v1879 = vadd.f32 %v1877, %v1878
      %v1880 = vrot.slane %v1879, 2
      %v1881 = vadd.f32 %v1879, %v1880
      %v1882 = vrot.slane %v1881, 1
      %v1883 = vadd.f32 %v1881, %v1882
      %1884 = vst [vmem:[%s211 + $0x1] sm:$0x1] %v1883
      %1885 = vst [vmem:[%s206] sm:$0xff] 0.0
      %1886 = vst [vmem:[%s206 + $0x8] sm:$0xff] 0.0
      %1887 = vst [vmem:[%s206 + $0x10] sm:$0xff] 0.0
      %1888 = vst [vmem:[%s206 + $0x18] sm:$0xff] %v1424
      %1889 = vst [vmem:[%s206 + $0x20] sm:$0xff] %v1426
      %1890 = vst [vmem:[%s206 + $0x28] sm:$0xff] %v1429
      %1891 = vst [vmem:[%s206 + $0x30] sm:$0xff] %v1431
      %1892 = vst [vmem:[%s206 + $0x38] sm:$0xff] %v1434
      %1893 = vst [vmem:[%s206 + $0x40] sm:$0xff] %v1436
      %1894 = vst [vmem:[%s206 + $0x48] sm:$0xff] %v1439
      %1895 = vst [vmem:[%s206 + $0x50] sm:$0xff] %v1441
      %1896 = vst [vmem:[%s206 + $0x58] sm:$0xff] %v1444
      %1897 = vst [vmem:[%s206 + $0x60] sm:$0xff] %v1446
      %1898 = vst [vmem:[%s206 + $0x68] sm:$0xff] %v1449
      %1899 = vst [vmem:[%s206 + $0x70] sm:$0xff] %v1451
      %1900 = vst [vmem:[%s206 + $0x78] sm:$0xff] %v1454
      %1901 = vst [vmem:[%s206 + $0x80] sm:$0xff] %v1456
      %1902 = vst [vmem:[%s206 + $0x88] sm:$0xff] %v1459
      %1903 = vst [vmem:[%s206 + $0x90] sm:$0xff] %v1461
      %1904 = vst [vmem:[%s206 + $0x98] sm:$0xff] %v1464
      %1905 = vst [vmem:[%s206 + $0xa0] sm:$0xff] %v1466
      %1906 = vst [vmem:[%s206 + $0xa8] sm:$0xff] %v1469
      %1907 = vst [vmem:[%s206 + $0xb0] sm:$0xff] %v1471
      %1908 = vst [vmem:[%s206 + $0xb8] sm:$0xff] %v1474
      %1909 = vst [vmem:[%s206 + $0xc0] sm:$0xff] %v1476
      %1910 = vst [vmem:[%s206 + $0xc8] sm:$0xff] %v1479
      %1911 = vst [vmem:[%s206 + $0xd0] sm:$0xff] %v1481
      %1912 = vst [vmem:[%s206 + $0xd8] sm:$0xff] %v1484
      %1913 = vst [vmem:[%s206 + $0xe0] sm:$0xff] %v1486
      %1914 = vst [vmem:[%s206 + $0xe8] sm:$0xff] %v1489
      %1915 = vst [vmem:[%s206 + $0xf0] sm:$0xff] %v1491
      %1916 = vst [vmem:[%s206 + $0xf8] sm:$0xff] %v1494
      %1917 = vst [vmem:[%s206 + $0x100] sm:$0xff] %v1496
      %1918 = vst [vmem:[%s206 + $0x108] sm:$0xff] %v1499
      %1919 = vst [vmem:[%s206 + $0x110] sm:$0xff] %v1501
      %1920 = vst [vmem:[%s206 + $0x118] sm:$0xff] %v1504
      %1921 = vst [vmem:[%s206 + $0x120] sm:$0xff] %v1506
      %1922 = vst [vmem:[%s206 + $0x128] sm:$0xff] %v1509
      %1923 = vst [vmem:[%s206 + $0x130] sm:$0xff] %v1511
      %1924 = vst [vmem:[%s206 + $0x138] sm:$0xff] 0.0
      %1925 = vst [vmem:[%s206 + $0x140] sm:$0xff] 0.0
      %1926 = vst [vmem:[%s206 + $0x148] sm:$0xff] 0.0
      %s1927 = smul.u32 42, %s16
      %p1928 = scmp.lt.s32.totalorder %s1927, 83
      %s1929 = scalar_select %p1928, %s1927, 83
      %s1930 = smul.addr %s1929, 8
      %s1931 = scalar_lea.vmem %s3, %s1930
      %p1932 = scmp.lt.s32.totalorder %s16, 1
      %s1933 = scalar_select %p1932, %s16, 1
      %s1934 = smul.addr %s1933, 8
      %s1935 = scalar_lea.vmem %s4, %s1934
      // Predicated region
      $region33: #{basic_block.3} parent=31 // pred_check
        %p1936 = pneg %p102
      $region34: #{basic_block.3} parent=31 // pred_check_branch
        %1938 = sbr.rel (%p1936) target = $region36
      $region35: #{basic_block.3} parent=31 // pred_region
        %s1939 = smul.u32 42, %s16
      $region36: #{basic_block.3} parent=31 // pred_fallthru
        _
      // Predicated region
      $region37: #{basic_block.3} parent=31 // pred_check
        %p1940 = pneg %p128
      $region38: #{basic_block.3} parent=31 // pred_check_branch
        %1942 = sbr.rel (%p1940) target = $region40
      $region39: #{basic_block.3} parent=31 // pred_region
        _
      $region40: #{basic_block.3} parent=31 // pred_fallthru
        _
    $region32: #{basic_block.3} parent=5 // pred_fallthru
      _
    %p1943 = scmp.le.s32.totalorder 2, %s11
    // Predicated region
    $region41: #{basic_block.3} parent=5 // pred_check
      %p1944 = pneg %p1943
    $region42: #{basic_block.3} parent=5 // pred_check_branch
      %1946 = sbr.rel (%p1944) target = $region44
    $region43: #{basic_block.3} parent=5 // pred_region
      %s1947 = ssub.s32 %s11, 2
      // Predicated region
      $region45: #{basic_block.3} parent=43 // pred_check
        %p1948 = pneg %p108
      $region46: #{basic_block.3} parent=43 // pred_check_branch
        %1950 = sbr.rel (%p1948) target = $region48
      $region47: #{basic_block.3} parent=43 // pred_region
        %s1951 = smul.u32 42, %s17
        %p1952 = scmp.lt.s32.totalorder %s1951, 83
        %s1953 = scalar_select %p1952, %s1951, 83
        %s1954 = smul.addr %s1953, 8
        %s1955 = scalar_lea.vmem %s3, %s1954
      $region48: #{basic_block.3} parent=43 // pred_fallthru
        _
      // Predicated region
      $region49: #{basic_block.3} parent=43 // pred_check
        %p1956 = pneg %p134
      $region50: #{basic_block.3} parent=43 // pred_check_branch
        %1958 = sbr.rel (%p1956) target = $region52
      $region51: #{basic_block.3} parent=43 // pred_region
        %p1959 = scmp.lt.s32.totalorder %s17, 1
        %s1960 = scalar_select %p1959, %s17, 1
        %s1961 = smul.addr %s1960, 8
        %s1962 = scalar_lea.vmem %s4, %s1961
      $region52: #{basic_block.3} parent=43 // pred_fallthru
        _
    $region44: #{basic_block.3} parent=5 // pred_fallthru
      _
  $region6: #{basic_block.3} parent=0 // loop_footer
    %s15 = sadd.s32 1, %s11
  $region7: #{basic_block.3} parent=0 // loop_footer_branch
    %10 = sbr.rel target = $region3
  $region8: #{basic_block.3} parent=0 // loop_exit
    _

// kernel: basic_block.4
$region0: #{basic_block.4}
  #allocation0 [shape = 'u32[]', space=smem, size = 0x4, offset = 0x4, fixed_abs, tag = 'smem constant byte address 0x4 - core index']
  #allocation1 [shape = 'u32[72,128]{1,0:T(1,128)}', space=vmem, size = 0x9000, scoped, tag = 'internal scratch']
  #allocation2 [shape = 'f32[336,128]{1,0:T(8,128)}', space=vmem, size = 0x2a000, scoped, tag = 'scratch operand']
  %s0 = inlined_call_operand.vmem [shape: f32[672,128], index: 0, kind: input, shape index: {}]
  %s1 = inlined_call_operand.vmem [shape: f32[336,1], index: 1, kind: input, shape index: {}]
  %s2 = inlined_call_operand.vmem [shape: f32[1,128], index: 2, kind: input, shape index: {}]
  %s3 = inlined_call_operand.vmem [shape: f32[1,128], index: 3, kind: input, shape index: {}]
  %s4 = inlined_call_operand.vmem [shape: bf16[1,128,128], index: 4, kind: input, shape index: {}]
  %s5 = inlined_call_operand.vmem [shape: f32[576,128], index: 5, kind: output, shape index: {0}]
  %s6 = inlined_call_operand.vmem [shape: f32[16,128], index: 6, kind: output, shape index: {1}]
  %7 = xla_tuple %s5, %s6
  %s8 = sld [smem:[#allocation0]]
  $region61: #{basic_block.4} parent=0
    _
  %s10 = ssub.s32 1, %s8
  %s11 = scalar_select 0, %s10, %s8
  loop: start=0, step=1, limit=4
  $region2: #{basic_block.4} parent=0 // loop_pre_header
    _
  $region3: #{basic_block.4} parent=0 // loop_header
    %s13 = sphi 0, %s17
    %p14 = scmp.ge.s32.totalorder %s13, 4
    %s23 = sphi 0, %s25
    %s26 = sphi 0, %s23
    %s27 = sphi 0, %s26
    %s43 = sphi 0, %s27
    %s47 = sphi 0, %s47
    %s49 = sphi 0, %s47
    %s50 = sphi 0, %s49
    %s64 = sphi 0, %s50
    %s68 = sphi 0, %s68
    %s70 = sphi 0, %s68
    %s71 = sphi 0, %s70
    %s85 = sphi 0, %s71
    %s89 = sphi 0, %s89
    %s91 = sphi 0, %s89
    %s92 = sphi 0, %s91
    %s106 = sphi 0, %s92
    %s110 = sphi 0, %s110
    %s112 = sphi 0, %s110
    %s113 = sphi 0, %s112
    %s127 = sphi 0, %s113
    %s133 = sphi 0, %s135
    %s136 = sphi 0, %s133
    %s137 = sphi 0, %s136
    %s153 = sphi 0, %s137
    %s159 = sphi 0, %s161
    %s162 = sphi 0, %s159
    %s163 = sphi 0, %s162
    %s179 = sphi 0, %s163
  $region4: #{basic_block.4} parent=0 // loop_header_branch
    %16 = sbr.rel (%p14) target = $region8
  $region5: #{basic_block.4} parent=0 // loop_body
    %s18 = ssub.s32 %s13, 1
    %s19 = ssub.s32 %s13, 2
    %s20 = sadd.s32 %s13, 1
    %s21 = ssub.s32 %s13, %s20
    %p22 = scmp.eq.s32.totalorder %s21, 0
    %s24 = sadd.s32 %s23, 1
    %s25 = scalar_select %p22, %s23, %s24
    %p28 = pneg %p22
    %p29 = scmp.eq.s32.totalorder %s13, 1
    %p30 = por %p28, %p29
    %p31 = scmp.ne.s32.totalorder %s23, %s26
    %p32 = scmp.eq.s32.totalorder %s13, 0
    %p33 = por %p31, %p32
    %p34 = scmp.ne.s32.totalorder %s23, %s26
    %p35 = scmp.eq.s32.totalorder %s18, 1
    %p36 = por %p34, %p35
    %p37 = scmp.ne.s32.totalorder %s26, %s27
    %p38 = scmp.eq.s32.totalorder %s18, 0
    %p39 = por %p37, %p38
    %p40 = scmp.ne.s32.totalorder %s26, %s27
    %p41 = scmp.eq.s32.totalorder %s19, 1
    %p42 = por %p40, %p41
    %p44 = scmp.ne.s32.totalorder %s27, %s43
    %p45 = scmp.eq.s32.totalorder %s19, 0
    %p46 = por %p44, %p45
    %s48 = sadd.s32 %s47, 1
    %p51 = scmp.eq.s32.totalorder %s13, 1
    %p52 = scmp.ne.s32.totalorder %s47, %s49
    %p53 = scmp.eq.s32.totalorder %s13, 0
    %p54 = por %p52, %p53
    %p55 = scmp.ne.s32.totalorder %s47, %s49
    %p56 = scmp.eq.s32.totalorder %s18, 1
    %p57 = por %p55, %p56
    %p58 = scmp.ne.s32.totalorder %s49, %s50
    %p59 = scmp.eq.s32.totalorder %s18, 0
    %p60 = por %p58, %p59
    %p61 = scmp.ne.s32.totalorder %s49, %s50
    %p62 = scmp.eq.s32.totalorder %s19, 1
    %p63 = por %p61, %p62
    %p65 = scmp.ne.s32.totalorder %s50, %s64
    %p66 = scmp.eq.s32.totalorder %s19, 0
    %p67 = por %p65, %p66
    %s69 = sadd.s32 %s68, 1
    %p72 = scmp.eq.s32.totalorder %s13, 1
    %p73 = scmp.ne.s32.totalorder %s68, %s70
    %p74 = scmp.eq.s32.totalorder %s13, 0
    %p75 = por %p73, %p74
    %p76 = scmp.ne.s32.totalorder %s68, %s70
    %p77 = scmp.eq.s32.totalorder %s18, 1
    %p78 = por %p76, %p77
    %p79 = scmp.ne.s32.totalorder %s70, %s71
    %p80 = scmp.eq.s32.totalorder %s18, 0
    %p81 = por %p79, %p80
    %p82 = scmp.ne.s32.totalorder %s70, %s71
    %p83 = scmp.eq.s32.totalorder %s19, 1
    %p84 = por %p82, %p83
    %p86 = scmp.ne.s32.totalorder %s71, %s85
    %p87 = scmp.eq.s32.totalorder %s19, 0
    %p88 = por %p86, %p87
    %s90 = sadd.s32 %s89, 1
    %p93 = scmp.eq.s32.totalorder %s13, 1
    %p94 = scmp.ne.s32.totalorder %s89, %s91
    %p95 = scmp.eq.s32.totalorder %s13, 0
    %p96 = por %p94, %p95
    %p97 = scmp.ne.s32.totalorder %s89, %s91
    %p98 = scmp.eq.s32.totalorder %s18, 1
    %p99 = por %p97, %p98
    %p100 = scmp.ne.s32.totalorder %s91, %s92
    %p101 = scmp.eq.s32.totalorder %s18, 0
    %p102 = por %p100, %p101
    %p103 = scmp.ne.s32.totalorder %s91, %s92
    %p104 = scmp.eq.s32.totalorder %s19, 1
    %p105 = por %p103, %p104
    %p107 = scmp.ne.s32.totalorder %s92, %s106
    %p108 = scmp.eq.s32.totalorder %s19, 0
    %p109 = por %p107, %p108
    %s111 = sadd.s32 %s110, 1
    %p114 = scmp.eq.s32.totalorder %s13, 1
    %p115 = scmp.ne.s32.totalorder %s110, %s112
    %p116 = scmp.eq.s32.totalorder %s13, 0
    %p117 = por %p115, %p116
    %p118 = scmp.ne.s32.totalorder %s110, %s112
    %p119 = scmp.eq.s32.totalorder %s18, 1
    %p120 = por %p118, %p119
    %p121 = scmp.ne.s32.totalorder %s112, %s113
    %p122 = scmp.eq.s32.totalorder %s18, 0
    %p123 = por %p121, %p122
    %p124 = scmp.ne.s32.totalorder %s112, %s113
    %p125 = scmp.eq.s32.totalorder %s19, 1
    %p126 = por %p124, %p125
    %p128 = scmp.ne.s32.totalorder %s113, %s127
    %p129 = scmp.eq.s32.totalorder %s19, 0
    %p130 = por %p128, %p129
    %s131 = ssub.s32 %s13, %s20
    %p132 = scmp.eq.s32.totalorder %s131, 0
    %s134 = sadd.s32 %s133, 1
    %s135 = scalar_select %p132, %s133, %s134
    %p138 = pneg %p132
    %p139 = scmp.eq.s32.totalorder %s13, 1
    %p140 = por %p138, %p139
    %p141 = scmp.ne.s32.totalorder %s133, %s136
    %p142 = scmp.eq.s32.totalorder %s13, 0
    %p143 = por %p141, %p142
    %p144 = scmp.ne.s32.totalorder %s133, %s136
    %p145 = scmp.eq.s32.totalorder %s18, 1
    %p146 = por %p144, %p145
    %p147 = scmp.ne.s32.totalorder %s136, %s137
    %p148 = scmp.eq.s32.totalorder %s18, 0
    %p149 = por %p147, %p148
    %p150 = scmp.ne.s32.totalorder %s136, %s137
    %p151 = scmp.eq.s32.totalorder %s19, 1
    %p152 = por %p150, %p151
    %p154 = scmp.ne.s32.totalorder %s137, %s153
    %p155 = scmp.eq.s32.totalorder %s19, 0
    %p156 = por %p154, %p155
    %s157 = ssub.s32 %s13, %s20
    %p158 = scmp.eq.s32.totalorder %s157, 0
    %s160 = sadd.s32 %s159, 1
    %s161 = scalar_select %p158, %s159, %s160
    %p164 = pneg %p158
    %p165 = scmp.eq.s32.totalorder %s13, 1
    %p166 = por %p164, %p165
    %p167 = scmp.ne.s32.totalorder %s159, %s162
    %p168 = scmp.eq.s32.totalorder %s13, 0
    %p169 = por %p167, %p168
    %p170 = scmp.ne.s32.totalorder %s159, %s162
    %p171 = scmp.eq.s32.totalorder %s18, 1
    %p172 = por %p170, %p171
    %p173 = scmp.ne.s32.totalorder %s162, %s163
    %p174 = scmp.eq.s32.totalorder %s18, 0
    %p175 = por %p173, %p174
    %p176 = scmp.ne.s32.totalorder %s162, %s163
    %p177 = scmp.eq.s32.totalorder %s19, 1
    %p178 = por %p176, %p177
    %p180 = scmp.ne.s32.totalorder %s163, %s179
    %p181 = scmp.eq.s32.totalorder %s19, 0
    %p182 = por %p180, %p181
    %p183 = scmp.le.s32.totalorder 1, %s13
    %p184 = scmp.lt.s32.totalorder %s13, 3
    %p185 = pnand %p183, %p184
    %p186 = pneg %p185
    // Predicated region
    $region9: #{basic_block.4} parent=5 // pred_check
      _
    $region10: #{basic_block.4} parent=5 // pred_check_branch
      %188 = sbr.rel (%p185) target = $region12
    $region11: #{basic_block.4} parent=5 // pred_region
      %s189 = ssub.s32 %s13, 1
      // Predicated region
      $region13: #{basic_block.4} parent=11 // pred_check
        %p190 = pneg %p60
      $region14: #{basic_block.4} parent=11 // pred_check_branch
        %192 = sbr.rel (%p190) target = $region16
      $region15: #{basic_block.4} parent=11 // pred_region
        _
      $region16: #{basic_block.4} parent=11 // pred_fallthru
        _
      // Predicated region
      $region17: #{basic_block.4} parent=11 // pred_check
        %p193 = pneg %p81
      $region18: #{basic_block.4} parent=11 // pred_check_branch
        %195 = sbr.rel (%p193) target = $region20
      $region19: #{basic_block.4} parent=11 // pred_region
        _
      $region20: #{basic_block.4} parent=11 // pred_fallthru
        _
      // Predicated region
      $region21: #{basic_block.4} parent=11 // pred_check
        %p196 = pneg %p102
      $region22: #{basic_block.4} parent=11 // pred_check_branch
        %198 = sbr.rel (%p196) target = $region24
      $region23: #{basic_block.4} parent=11 // pred_region
        _
      $region24: #{basic_block.4} parent=11 // pred_fallthru
        _
      // Predicated region
      $region25: #{basic_block.4} parent=11 // pred_check
        %p199 = pneg %p123
      $region26: #{basic_block.4} parent=11 // pred_check_branch
        %201 = sbr.rel (%p199) target = $region28
      $region27: #{basic_block.4} parent=11 // pred_region
        _
      $region28: #{basic_block.4} parent=11 // pred_fallthru
        _
    $region12: #{basic_block.4} parent=5 // pred_fallthru
      _
    %p202 = scmp.lt.s32.totalorder %s13, 2
    // Predicated region
    $region29: #{basic_block.4} parent=5 // pred_check
      %p203 = pneg %p202
    $region30: #{basic_block.4} parent=5 // pred_check_branch
      %205 = sbr.rel (%p203) target = $region32
    $region31: #{basic_block.4} parent=5 // pred_region
      // Predicated region
      $region33: #{basic_block.4} parent=31 // pred_check
        %p206 = pneg %p33
      $region34: #{basic_block.4} parent=31 // pred_check_branch
        %208 = sbr.rel (%p206) target = $region36
      $region35: #{basic_block.4} parent=31 // pred_region
        %s209 = smul.u32 42, %s13
        %p210 = scmp.lt.s32.totalorder %s209, 83
        %s211 = scalar_select %p210, %s209, 83
        %s212 = smul.addr %s211, 8
        %s213 = scalar_lea.vmem %s0, %s212
        %s214 = smul.u32 42, %s13
      $region36: #{basic_block.4} parent=31 // pred_fallthru
        _
    $region32: #{basic_block.4} parent=5 // pred_fallthru
      _
    %p215 = scmp.le.s32.totalorder 1, %s13
    %p216 = scmp.lt.s32.totalorder %s13, 3
    %p217 = pnand %p215, %p216
    %p218 = pneg %p217
    // Predicated region
    $region37: #{basic_block.4} parent=5 // pred_check
      _
    $region38: #{basic_block.4} parent=5 // pred_check_branch
      %220 = sbr.rel (%p217) target = $region40
    $region39: #{basic_block.4} parent=5 // pred_region
      %s221 = ssub.s32 %s13, 1
      %s222 = smul.u32 42, %s18
      %p223 = scmp.lt.s32.totalorder %s222, 83
      %s224 = scalar_select %p223, %s222, 83
      %s225 = smul.addr %s224, 8
      %s226 = scalar_lea.vmem %s0, %s225
      %p227 = pneg %p39
      %p228 = pneg %p36
      %p229 = pneg %p60
      %p230 = pneg %p57
      %p231 = pneg %p81
      %p232 = pneg %p78
      %p233 = pneg %p102
      %p234 = pneg %p99
      %p235 = pneg %p123
      %p236 = pneg %p120
      %p237 = pneg %p149
      %p238 = pneg %p146
      %s239 = smul.u32 36, %s18
      %p240 = scmp.lt.s32.totalorder %s239, 71
      %s241 = scalar_select %p240, %s239, 71
      %s242 = smul.addr %s241, 8
      %s243 = scalar_lea.vmem %s5, %s242
      %p244 = pneg %p175
      %p245 = pneg %p172
      %p246 = scmp.lt.s32.totalorder %s18, 1
      %s247 = scalar_select %p246, %s18, 1
      %s248 = smul.addr %s247, 8
      %s249 = scalar_lea.vmem %s6, %s248
      %s250 = smul.u32 42, %s18
      %p251 = scmp.lt.s32.totalorder %s250, 83
      %s252 = scalar_select %p251, %s250, 83
      %s253 = smul.addr %s252, 8
      %s254 = scalar_lea.vmem %s0, %s253
      %s255 = smul.u32 42, %s18
      %s256 = smul.u32 36, %s18
      %p257 = scmp.lt.s32.totalorder %s256, 71
      %s258 = scalar_select %p257, %s256, 71
      %s259 = smul.addr %s258, 8
      %s260 = scalar_lea.vmem %s5, %s259
      %s261 = smul.u32 36, %s18
      %p262 = scmp.lt.s32.totalorder %s18, 1
      %s263 = scalar_select %p262, %s18, 1
      %s264 = smul.addr %s263, 8
      %s265 = scalar_lea.vmem %s6, %s264
      %v266 = vld [vmem:[%s254] sm:$0xff]
      %v267 = vld [vmem:[%s254 + $0x8] sm:$0xff]
      %v268 = vld [vmem:[%s254 + $0x10] sm:$0xff]
      %v269 = vld [vmem:[%s254 + $0x18] sm:$0xff]
      %v270 = vld [vmem:[%s254 + $0x20] sm:$0xff]
      %v271 = vld [vmem:[%s254 + $0x28] sm:$0xff]
      %v272 = vld [vmem:[%s254 + $0x30] sm:$0xff]
      %v273 = vld [vmem:[%s254 + $0x38] sm:$0xff]
      %v274 = vld [vmem:[%s254 + $0x40] sm:$0xff]
      %v275 = vld [vmem:[%s254 + $0x48] sm:$0xff]
      %v276 = vld [vmem:[%s254 + $0x50] sm:$0xff]
      %v277 = vld [vmem:[%s254 + $0x58] sm:$0xff]
      %v278 = vld [vmem:[%s254 + $0x60] sm:$0xff]
      %v279 = vld [vmem:[%s254 + $0x68] sm:$0xff]
      %v280 = vld [vmem:[%s254 + $0x70] sm:$0xff]
      %v281 = vld [vmem:[%s254 + $0x78] sm:$0xff]
      %v282 = vld [vmem:[%s254 + $0x80] sm:$0xff]
      %v283 = vld [vmem:[%s254 + $0x88] sm:$0xff]
      %v284 = vld [vmem:[%s254 + $0x90] sm:$0xff]
      %v285 = vld [vmem:[%s254 + $0x98] sm:$0xff]
      %v286 = vld [vmem:[%s254 + $0xa0] sm:$0xff]
      %v287 = vld [vmem:[%s254 + $0xa8] sm:$0xff]
      %v288 = vld [vmem:[%s254 + $0xb0] sm:$0xff]
      %v289 = vld [vmem:[%s254 + $0xb8] sm:$0xff]
      %v290 = vld [vmem:[%s254 + $0xc0] sm:$0xff]
      %v291 = vld [vmem:[%s254 + $0xc8] sm:$0xff]
      %v292 = vld [vmem:[%s254 + $0xd0] sm:$0xff]
      %v293 = vld [vmem:[%s254 + $0xd8] sm:$0xff]
      %v294 = vld [vmem:[%s254 + $0xe0] sm:$0xff]
      %v295 = vld [vmem:[%s254 + $0xe8] sm:$0xff]
      %v296 = vld [vmem:[%s254 + $0xf0] sm:$0xff]
      %v297 = vld [vmem:[%s254 + $0xf8] sm:$0xff]
      %v298 = vld [vmem:[%s254 + $0x100] sm:$0xff]
      %v299 = vld [vmem:[%s254 + $0x108] sm:$0xff]
      %v300 = vld [vmem:[%s254 + $0x110] sm:$0xff]
      %v301 = vld [vmem:[%s254 + $0x118] sm:$0xff]
      %v302 = vld [vmem:[%s254 + $0x120] sm:$0xff]
      %v303 = vld [vmem:[%s254 + $0x128] sm:$0xff]
      %v304 = vld [vmem:[%s254 + $0x130] sm:$0xff]
      %v305 = vld [vmem:[%s254 + $0x138] sm:$0xff]
      %v306 = vld [vmem:[%s254 + $0x140] sm:$0xff]
      %v307 = vld [vmem:[%s254 + $0x148] sm:$0xff]
      %v308 = vld [vmem:[%s2] sm:$0x1]
      %v310 = vperm.slane %v308, 0
      %v312 = vmul.f32 %v266, %v310
      %v313 = vmul.f32 %v267, %v310
      %v314 = vmul.f32 %v268, %v310
      %v315 = vmul.f32 %v269, %v310
      %v316 = vmul.f32 %v270, %v310
      %v317 = vmul.f32 %v271, %v310
      %v318 = vmul.f32 %v272, %v310
      %v319 = vmul.f32 %v273, %v310
      %v320 = vmul.f32 %v274, %v310
      %v321 = vmul.f32 %v275, %v310
      %v322 = vmul.f32 %v276, %v310
      %v323 = vmul.f32 %v277, %v310
      %v324 = vmul.f32 %v278, %v310
      %v325 = vmul.f32 %v279, %v310
      %v326 = vmul.f32 %v280, %v310
      %v327 = vmul.f32 %v281, %v310
      %v328 = vmul.f32 %v282, %v310
      %v329 = vmul.f32 %v283, %v310
      %v330 = vmul.f32 %v284, %v310
      %v331 = vmul.f32 %v285, %v310
      %v332 = vmul.f32 %v286, %v310
      %v333 = vmul.f32 %v287, %v310
      %v334 = vmul.f32 %v288, %v310
      %v335 = vmul.f32 %v289, %v310
      %v336 = vmul.f32 %v290, %v310
      %v337 = vmul.f32 %v291, %v310
      %v338 = vmul.f32 %v292, %v310
      %v339 = vmul.f32 %v293, %v310
      %v340 = vmul.f32 %v294, %v310
      %v341 = vmul.f32 %v295, %v310
      %v342 = vmul.f32 %v296, %v310
      %v343 = vmul.f32 %v297, %v310
      %v344 = vmul.f32 %v298, %v310
      %v345 = vmul.f32 %v299, %v310
      %v346 = vmul.f32 %v300, %v310
      %v347 = vmul.f32 %v301, %v310
      %v348 = vmul.f32 %v302, %v310
      %v349 = vmul.f32 %v303, %v310
      %v350 = vmul.f32 %v304, %v310
      %v351 = vmul.f32 %v305, %v310
      %v352 = vmul.f32 %v306, %v310
      %v353 = vmul.f32 %v307, %v310
      %v354 = vld [vmem:[%s3] sm:$0x1]
      %v356 = vperm.slane %v354, 0
      %v358 = vadd.f32 %v312, %v356
      %v359 = vadd.f32 %v313, %v356
      %v360 = vadd.f32 %v314, %v356
      %v361 = vadd.f32 %v315, %v356
      %v362 = vadd.f32 %v316, %v356
      %v363 = vadd.f32 %v317, %v356
      %v364 = vadd.f32 %v318, %v356
      %v365 = vadd.f32 %v319, %v356
      %v366 = vadd.f32 %v320, %v356
      %v367 = vadd.f32 %v321, %v356
      %v368 = vadd.f32 %v322, %v356
      %v369 = vadd.f32 %v323, %v356
      %v370 = vadd.f32 %v324, %v356
      %v371 = vadd.f32 %v325, %v356
      %v372 = vadd.f32 %v326, %v356
      %v373 = vadd.f32 %v327, %v356
      %v374 = vadd.f32 %v328, %v356
      %v375 = vadd.f32 %v329, %v356
      %v376 = vadd.f32 %v330, %v356
      %v377 = vadd.f32 %v331, %v356
      %v378 = vadd.f32 %v332, %v356
      %v379 = vadd.f32 %v333, %v356
      %v380 = vadd.f32 %v334, %v356
      %v381 = vadd.f32 %v335, %v356
      %v382 = vadd.f32 %v336, %v356
      %v383 = vadd.f32 %v337, %v356
      %v384 = vadd.f32 %v338, %v356
      %v385 = vadd.f32 %v339, %v356
      %v386 = vadd.f32 %v340, %v356
      %v387 = vadd.f32 %v341, %v356
      %v388 = vadd.f32 %v342, %v356
      %v389 = vadd.f32 %v343, %v356
      %v390 = vadd.f32 %v344, %v356
      %v391 = vadd.f32 %v345, %v356
      %v392 = vadd.f32 %v346, %v356
      %v393 = vadd.f32 %v347, %v356
      %v394 = vadd.f32 %v348, %v356
      %v395 = vadd.f32 %v349, %v356
      %v396 = vadd.f32 %v350, %v356
      %v397 = vadd.f32 %v351, %v356
      %v398 = vadd.f32 %v352, %v356
      %v399 = vadd.f32 %v353, %v356
      %v400 = vmax.f32 %v358, 0.0
      %v401 = vmax.f32 %v359, 0.0
      %v402 = vmax.f32 %v360, 0.0
      %v403 = vmax.f32 %v361, 0.0
      %v404 = vmax.f32 %v362, 0.0
      %v405 = vmax.f32 %v363, 0.0
      %v406 = vmax.f32 %v364, 0.0
      %v407 = vmax.f32 %v365, 0.0
      %v408 = vmax.f32 %v366, 0.0
      %v409 = vmax.f32 %v367, 0.0
      %v410 = vmax.f32 %v368, 0.0
      %v411 = vmax.f32 %v369, 0.0
      %v412 = vmax.f32 %v370, 0.0
      %v413 = vmax.f32 %v371, 0.0
      %v414 = vmax.f32 %v372, 0.0
      %v415 = vmax.f32 %v373, 0.0
      %v416 = vmax.f32 %v374, 0.0
      %v417 = vmax.f32 %v375, 0.0
      %v418 = vmax.f32 %v376, 0.0
      %v419 = vmax.f32 %v377, 0.0
      %v420 = vmax.f32 %v378, 0.0
      %v421 = vmax.f32 %v379, 0.0
      %v422 = vmax.f32 %v380, 0.0
      %v423 = vmax.f32 %v381, 0.0
      %v424 = vmax.f32 %v382, 0.0
      %v425 = vmax.f32 %v383, 0.0
      %v426 = vmax.f32 %v384, 0.0
      %v427 = vmax.f32 %v385, 0.0
      %v428 = vmax.f32 %v386, 0.0
      %v429 = vmax.f32 %v387, 0.0
      %v430 = vmax.f32 %v388, 0.0
      %v431 = vmax.f32 %v389, 0.0
      %v432 = vmax.f32 %v390, 0.0
      %v433 = vmax.f32 %v391, 0.0
      %v434 = vmax.f32 %v392, 0.0
      %v435 = vmax.f32 %v393, 0.0
      %v436 = vmax.f32 %v394, 0.0
      %v437 = vmax.f32 %v395, 0.0
      %v438 = vmax.f32 %v396, 0.0
      %v439 = vmax.f32 %v397, 0.0
      %v440 = vmax.f32 %v398, 0.0
      %v441 = vmax.f32 %v399, 0.0
      %v442 = vld [vmem:[%s1] sm:$0xff]
      %v443 = vld [vmem:[%s1 + $0x8] sm:$0xff]
      %v444 = vld [vmem:[%s1 + $0x10] sm:$0xff]
      %v445 = vld [vmem:[%s1 + $0x18] sm:$0xff]
      %v446 = vld [vmem:[%s1 + $0x20] sm:$0xff]
      %v447 = vld [vmem:[%s1 + $0x28] sm:$0xff]
      %v448 = vld [vmem:[%s1 + $0x30] sm:$0xff]
      %v449 = vld [vmem:[%s1 + $0x38] sm:$0xff]
      %v450 = vld [vmem:[%s1 + $0x40] sm:$0xff]
      %v451 = vld [vmem:[%s1 + $0x48] sm:$0xff]
      %v452 = vld [vmem:[%s1 + $0x50] sm:$0xff]
      %v453 = vld [vmem:[%s1 + $0x58] sm:$0xff]
      %v454 = vld [vmem:[%s1 + $0x60] sm:$0xff]
      %v455 = vld [vmem:[%s1 + $0x68] sm:$0xff]
      %v456 = vld [vmem:[%s1 + $0x70] sm:$0xff]
      %v457 = vld [vmem:[%s1 + $0x78] sm:$0xff]
      %v458 = vld [vmem:[%s1 + $0x80] sm:$0xff]
      %v459 = vld [vmem:[%s1 + $0x88] sm:$0xff]
      %v460 = vld [vmem:[%s1 + $0x90] sm:$0xff]
      %v461 = vld [vmem:[%s1 + $0x98] sm:$0xff]
      %v462 = vld [vmem:[%s1 + $0xa0] sm:$0xff]
      %v463 = vld [vmem:[%s1 + $0xa8] sm:$0xff]
      %v464 = vld [vmem:[%s1 + $0xb0] sm:$0xff]
      %v465 = vld [vmem:[%s1 + $0xb8] sm:$0xff]
      %v466 = vld [vmem:[%s1 + $0xc0] sm:$0xff]
      %v467 = vld [vmem:[%s1 + $0xc8] sm:$0xff]
      %v468 = vld [vmem:[%s1 + $0xd0] sm:$0xff]
      %v469 = vld [vmem:[%s1 + $0xd8] sm:$0xff]
      %v470 = vld [vmem:[%s1 + $0xe0] sm:$0xff]
      %v471 = vld [vmem:[%s1 + $0xe8] sm:$0xff]
      %v472 = vld [vmem:[%s1 + $0xf0] sm:$0xff]
      %v473 = vld [vmem:[%s1 + $0xf8] sm:$0xff]
      %v474 = vld [vmem:[%s1 + $0x100] sm:$0xff]
      %v475 = vld [vmem:[%s1 + $0x108] sm:$0xff]
      %v476 = vld [vmem:[%s1 + $0x110] sm:$0xff]
      %v477 = vld [vmem:[%s1 + $0x118] sm:$0xff]
      %v478 = vld [vmem:[%s1 + $0x120] sm:$0xff]
      %v479 = vld [vmem:[%s1 + $0x128] sm:$0xff]
      %v480 = vld [vmem:[%s1 + $0x130] sm:$0xff]
      %v481 = vld [vmem:[%s1 + $0x138] sm:$0xff]
      %v482 = vld [vmem:[%s1 + $0x140] sm:$0xff]
      %v483 = vld [vmem:[%s1 + $0x148] sm:$0xff]
      %vm484 = vcmp.gt.f32.partialorder %v442, 0.5
      %vm485 = vcmp.gt.f32.partialorder %v443, 0.5
      %vm486 = vcmp.gt.f32.partialorder %v444, 0.5
      %vm487 = vcmp.gt.f32.partialorder %v445, 0.5
      %vm488 = vcmp.gt.f32.partialorder %v446, 0.5
      %vm489 = vcmp.gt.f32.partialorder %v447, 0.5
      %vm490 = vcmp.gt.f32.partialorder %v448, 0.5
      %vm491 = vcmp.gt.f32.partialorder %v449, 0.5
      %vm492 = vcmp.gt.f32.partialorder %v450, 0.5
      %vm493 = vcmp.gt.f32.partialorder %v451, 0.5
      %vm494 = vcmp.gt.f32.partialorder %v452, 0.5
      %vm495 = vcmp.gt.f32.partialorder %v453, 0.5
      %vm496 = vcmp.gt.f32.partialorder %v454, 0.5
      %vm497 = vcmp.gt.f32.partialorder %v455, 0.5
      %vm498 = vcmp.gt.f32.partialorder %v456, 0.5
      %vm499 = vcmp.gt.f32.partialorder %v457, 0.5
      %vm500 = vcmp.gt.f32.partialorder %v458, 0.5
      %vm501 = vcmp.gt.f32.partialorder %v459, 0.5
      %vm502 = vcmp.gt.f32.partialorder %v460, 0.5
      %vm503 = vcmp.gt.f32.partialorder %v461, 0.5
      %vm504 = vcmp.gt.f32.partialorder %v462, 0.5
      %vm505 = vcmp.gt.f32.partialorder %v463, 0.5
      %vm506 = vcmp.gt.f32.partialorder %v464, 0.5
      %vm507 = vcmp.gt.f32.partialorder %v465, 0.5
      %vm508 = vcmp.gt.f32.partialorder %v466, 0.5
      %vm509 = vcmp.gt.f32.partialorder %v467, 0.5
      %vm510 = vcmp.gt.f32.partialorder %v468, 0.5
      %vm511 = vcmp.gt.f32.partialorder %v469, 0.5
      %vm512 = vcmp.gt.f32.partialorder %v470, 0.5
      %vm513 = vcmp.gt.f32.partialorder %v471, 0.5
      %vm514 = vcmp.gt.f32.partialorder %v472, 0.5
      %vm515 = vcmp.gt.f32.partialorder %v473, 0.5
      %vm516 = vcmp.gt.f32.partialorder %v474, 0.5
      %vm517 = vcmp.gt.f32.partialorder %v475, 0.5
      %vm518 = vcmp.gt.f32.partialorder %v476, 0.5
      %vm519 = vcmp.gt.f32.partialorder %v477, 0.5
      %vm520 = vcmp.gt.f32.partialorder %v478, 0.5
      %vm521 = vcmp.gt.f32.partialorder %v479, 0.5
      %vm522 = vcmp.gt.f32.partialorder %v480, 0.5
      %vm523 = vcmp.gt.f32.partialorder %v481, 0.5
      %vm524 = vcmp.gt.f32.partialorder %v482, 0.5
      %vm525 = vcmp.gt.f32.partialorder %v483, 0.5
      %v526 = vsel %vm484, 1, 0
      %v527 = vsel %vm485, 1, 0
      %v528 = vsel %vm486, 1, 0
      %v529 = vsel %vm487, 1, 0
      %v530 = vsel %vm488, 1, 0
      %v531 = vsel %vm489, 1, 0
      %v532 = vsel %vm490, 1, 0
      %v533 = vsel %vm491, 1, 0
      %v534 = vsel %vm492, 1, 0
      %v535 = vsel %vm493, 1, 0
      %v536 = vsel %vm494, 1, 0
      %v537 = vsel %vm495, 1, 0
      %v538 = vsel %vm496, 1, 0
      %v539 = vsel %vm497, 1, 0
      %v540 = vsel %vm498, 1, 0
      %v541 = vsel %vm499, 1, 0
      %v542 = vsel %vm500, 1, 0
      %v543 = vsel %vm501, 1, 0
      %v544 = vsel %vm502, 1, 0
      %v545 = vsel %vm503, 1, 0
      %v546 = vsel %vm504, 1, 0
      %v547 = vsel %vm505, 1, 0
      %v548 = vsel %vm506, 1, 0
      %v549 = vsel %vm507, 1, 0
      %v550 = vsel %vm508, 1, 0
      %v551 = vsel %vm509, 1, 0
      %v552 = vsel %vm510, 1, 0
      %v553 = vsel %vm511, 1, 0
      %v554 = vsel %vm512, 1, 0
      %v555 = vsel %vm513, 1, 0
      %v556 = vsel %vm514, 1, 0
      %v557 = vsel %vm515, 1, 0
      %v558 = vsel %vm516, 1, 0
      %v559 = vsel %vm517, 1, 0
      %v560 = vsel %vm518, 1, 0
      %v561 = vsel %vm519, 1, 0
      %v562 = vsel %vm520, 1, 0
      %v563 = vsel %vm521, 1, 0
      %v564 = vsel %vm522, 1, 0
      %v565 = vsel %vm523, 1, 0
      %v566 = vsel %vm524, 1, 0
      %v567 = vsel %vm525, 1, 0
      %568 = vset.pattern.permute.xlu0 0
      %569 = vperm.xlu0 %568, %v526
      %v570 = vpop.permute.xlu0 %569
      %571 = vset.pattern.permute.xlu0 0
      %572 = vperm.xlu0 %571, %v527
      %v573 = vpop.permute.xlu0 %572
      %574 = vset.pattern.permute.xlu0 0
      %575 = vperm.xlu0 %574, %v528
      %v576 = vpop.permute.xlu0 %575
      %577 = vset.pattern.permute.xlu0 0
      %578 = vperm.xlu0 %577, %v529
      %v579 = vpop.permute.xlu0 %578
      %580 = vset.pattern.permute.xlu0 0
      %581 = vperm.xlu0 %580, %v530
      %v582 = vpop.permute.xlu0 %581
      %583 = vset.pattern.permute.xlu0 0
      %584 = vperm.xlu0 %583, %v531
      %v585 = vpop.permute.xlu0 %584
      %586 = vset.pattern.permute.xlu0 0
      %587 = vperm.xlu0 %586, %v532
      %v588 = vpop.permute.xlu0 %587
      %589 = vset.pattern.permute.xlu0 0
      %590 = vperm.xlu0 %589, %v533
      %v591 = vpop.permute.xlu0 %590
      %592 = vset.pattern.permute.xlu0 0
      %593 = vperm.xlu0 %592, %v534
      %v594 = vpop.permute.xlu0 %593
      %595 = vset.pattern.permute.xlu0 0
      %596 = vperm.xlu0 %595, %v535
      %v597 = vpop.permute.xlu0 %596
      %598 = vset.pattern.permute.xlu0 0
      %599 = vperm.xlu0 %598, %v536
      %v600 = vpop.permute.xlu0 %599
      %601 = vset.pattern.permute.xlu0 0
      %602 = vperm.xlu0 %601, %v537
      %v603 = vpop.permute.xlu0 %602
      %604 = vset.pattern.permute.xlu0 0
      %605 = vperm.xlu0 %604, %v538
      %v606 = vpop.permute.xlu0 %605
      %607 = vset.pattern.permute.xlu0 0
      %608 = vperm.xlu0 %607, %v539
      %v609 = vpop.permute.xlu0 %608
      %610 = vset.pattern.permute.xlu0 0
      %611 = vperm.xlu0 %610, %v540
      %v612 = vpop.permute.xlu0 %611
      %613 = vset.pattern.permute.xlu0 0
      %614 = vperm.xlu0 %613, %v541
      %v615 = vpop.permute.xlu0 %614
      %616 = vset.pattern.permute.xlu0 0
      %617 = vperm.xlu0 %616, %v542
      %v618 = vpop.permute.xlu0 %617
      %619 = vset.pattern.permute.xlu0 0
      %620 = vperm.xlu0 %619, %v543
      %v621 = vpop.permute.xlu0 %620
      %622 = vset.pattern.permute.xlu0 0
      %623 = vperm.xlu0 %622, %v544
      %v624 = vpop.permute.xlu0 %623
      %625 = vset.pattern.permute.xlu0 0
      %626 = vperm.xlu0 %625, %v545
      %v627 = vpop.permute.xlu0 %626
      %628 = vset.pattern.permute.xlu0 0
      %629 = vperm.xlu0 %628, %v546
      %v630 = vpop.permute.xlu0 %629
      %631 = vset.pattern.permute.xlu0 0
      %632 = vperm.xlu0 %631, %v547
      %v633 = vpop.permute.xlu0 %632
      %634 = vset.pattern.permute.xlu0 0
      %635 = vperm.xlu0 %634, %v548
      %v636 = vpop.permute.xlu0 %635
      %637 = vset.pattern.permute.xlu0 0
      %638 = vperm.xlu0 %637, %v549
      %v639 = vpop.permute.xlu0 %638
      %640 = vset.pattern.permute.xlu0 0
      %641 = vperm.xlu0 %640, %v550
      %v642 = vpop.permute.xlu0 %641
      %643 = vset.pattern.permute.xlu0 0
      %644 = vperm.xlu0 %643, %v551
      %v645 = vpop.permute.xlu0 %644
      %646 = vset.pattern.permute.xlu0 0
      %647 = vperm.xlu0 %646, %v552
      %v648 = vpop.permute.xlu0 %647
      %649 = vset.pattern.permute.xlu0 0
      %650 = vperm.xlu0 %649, %v553
      %v651 = vpop.permute.xlu0 %650
      %652 = vset.pattern.permute.xlu0 0
      %653 = vperm.xlu0 %652, %v554
      %v654 = vpop.permute.xlu0 %653
      %655 = vset.pattern.permute.xlu0 0
      %656 = vperm.xlu0 %655, %v555
      %v657 = vpop.permute.xlu0 %656
      %658 = vset.pattern.permute.xlu0 0
      %659 = vperm.xlu0 %658, %v556
      %v660 = vpop.permute.xlu0 %659
      %661 = vset.pattern.permute.xlu0 0
      %662 = vperm.xlu0 %661, %v557
      %v663 = vpop.permute.xlu0 %662
      %664 = vset.pattern.permute.xlu0 0
      %665 = vperm.xlu0 %664, %v558
      %v666 = vpop.permute.xlu0 %665
      %667 = vset.pattern.permute.xlu0 0
      %668 = vperm.xlu0 %667, %v559
      %v669 = vpop.permute.xlu0 %668
      %670 = vset.pattern.permute.xlu0 0
      %671 = vperm.xlu0 %670, %v560
      %v672 = vpop.permute.xlu0 %671
      %673 = vset.pattern.permute.xlu0 0
      %674 = vperm.xlu0 %673, %v561
      %v675 = vpop.permute.xlu0 %674
      %676 = vset.pattern.permute.xlu0 0
      %677 = vperm.xlu0 %676, %v562
      %v678 = vpop.permute.xlu0 %677
      %679 = vset.pattern.permute.xlu0 0
      %680 = vperm.xlu0 %679, %v563
      %v681 = vpop.permute.xlu0 %680
      %682 = vset.pattern.permute.xlu0 0
      %683 = vperm.xlu0 %682, %v564
      %v684 = vpop.permute.xlu0 %683
      %685 = vset.pattern.permute.xlu0 0
      %686 = vperm.xlu0 %685, %v565
      %v687 = vpop.permute.xlu0 %686
      %688 = vset.pattern.permute.xlu0 0
      %689 = vperm.xlu0 %688, %v566
      %v690 = vpop.permute.xlu0 %689
      %691 = vset.pattern.permute.xlu0 0
      %692 = vperm.xlu0 %691, %v567
      %v693 = vpop.permute.xlu0 %692
      %vm694 = vcmp.eq.s32.totalorder %v570, 1
      %vm695 = vcmp.eq.s32.totalorder %v573, 1
      %vm696 = vcmp.eq.s32.totalorder %v576, 1
      %vm697 = vcmp.eq.s32.totalorder %v579, 1
      %vm698 = vcmp.eq.s32.totalorder %v582, 1
      %vm699 = vcmp.eq.s32.totalorder %v585, 1
      %vm700 = vcmp.eq.s32.totalorder %v588, 1
      %vm701 = vcmp.eq.s32.totalorder %v591, 1
      %vm702 = vcmp.eq.s32.totalorder %v594, 1
      %vm703 = vcmp.eq.s32.totalorder %v597, 1
      %vm704 = vcmp.eq.s32.totalorder %v600, 1
      %vm705 = vcmp.eq.s32.totalorder %v603, 1
      %vm706 = vcmp.eq.s32.totalorder %v606, 1
      %vm707 = vcmp.eq.s32.totalorder %v609, 1
      %vm708 = vcmp.eq.s32.totalorder %v612, 1
      %vm709 = vcmp.eq.s32.totalorder %v615, 1
      %vm710 = vcmp.eq.s32.totalorder %v618, 1
      %vm711 = vcmp.eq.s32.totalorder %v621, 1
      %vm712 = vcmp.eq.s32.totalorder %v624, 1
      %vm713 = vcmp.eq.s32.totalorder %v627, 1
      %vm714 = vcmp.eq.s32.totalorder %v630, 1
      %vm715 = vcmp.eq.s32.totalorder %v633, 1
      %vm716 = vcmp.eq.s32.totalorder %v636, 1
      %vm717 = vcmp.eq.s32.totalorder %v639, 1
      %vm718 = vcmp.eq.s32.totalorder %v642, 1
      %vm719 = vcmp.eq.s32.totalorder %v645, 1
      %vm720 = vcmp.eq.s32.totalorder %v648, 1
      %vm721 = vcmp.eq.s32.totalorder %v651, 1
      %vm722 = vcmp.eq.s32.totalorder %v654, 1
      %vm723 = vcmp.eq.s32.totalorder %v657, 1
      %vm724 = vcmp.eq.s32.totalorder %v660, 1
      %vm725 = vcmp.eq.s32.totalorder %v663, 1
      %vm726 = vcmp.eq.s32.totalorder %v666, 1
      %vm727 = vcmp.eq.s32.totalorder %v669, 1
      %vm728 = vcmp.eq.s32.totalorder %v672, 1
      %vm729 = vcmp.eq.s32.totalorder %v675, 1
      %vm730 = vcmp.eq.s32.totalorder %v678, 1
      %vm731 = vcmp.eq.s32.totalorder %v681, 1
      %vm732 = vcmp.eq.s32.totalorder %v684, 1
      %vm733 = vcmp.eq.s32.totalorder %v687, 1
      %vm734 = vcmp.eq.s32.totalorder %v690, 1
      %vm735 = vcmp.eq.s32.totalorder %v693, 1
      %v736 = vsel %vm694, %v400, 0.0
      %v737 = vsel %vm695, %v401, 0.0
      %v738 = vsel %vm696, %v402, 0.0
      %v739 = vsel %vm697, %v403, 0.0
      %v740 = vsel %vm698, %v404, 0.0
      %v741 = vsel %vm699, %v405, 0.0
      %v742 = vsel %vm700, %v406, 0.0
      %v743 = vsel %vm701, %v407, 0.0
      %v744 = vsel %vm702, %v408, 0.0
      %v745 = vsel %vm703, %v409, 0.0
      %v746 = vsel %vm704, %v410, 0.0
      %v747 = vsel %vm705, %v411, 0.0
      %v748 = vsel %vm706, %v412, 0.0
      %v749 = vsel %vm707, %v413, 0.0
      %v750 = vsel %vm708, %v414, 0.0
      %v751 = vsel %vm709, %v415, 0.0
      %v752 = vsel %vm710, %v416, 0.0
      %v753 = vsel %vm711, %v417, 0.0
      %v754 = vsel %vm712, %v418, 0.0
      %v755 = vsel %vm713, %v419, 0.0
      %v756 = vsel %vm714, %v420, 0.0
      %v757 = vsel %vm715, %v421, 0.0
      %v758 = vsel %vm716, %v422, 0.0
      %v759 = vsel %vm717, %v423, 0.0
      %v760 = vsel %vm718, %v424, 0.0
      %v761 = vsel %vm719, %v425, 0.0
      %v762 = vsel %vm720, %v426, 0.0
      %v763 = vsel %vm721, %v427, 0.0
      %v764 = vsel %vm722, %v428, 0.0
      %v765 = vsel %vm723, %v429, 0.0
      %v766 = vsel %vm724, %v430, 0.0
      %v767 = vsel %vm725, %v431, 0.0
      %v768 = vsel %vm726, %v432, 0.0
      %v769 = vsel %vm727, %v433, 0.0
      %v770 = vsel %vm728, %v434, 0.0
      %v771 = vsel %vm729, %v435, 0.0
      %v772 = vsel %vm730, %v436, 0.0
      %v773 = vsel %vm731, %v437, 0.0
      %v774 = vsel %vm732, %v438, 0.0
      %v775 = vsel %vm733, %v439, 0.0
      %v776 = vsel %vm734, %v440, 0.0
      %v777 = vsel %vm735, %v441, 0.0
      %778 = vst [vmem:[#allocation2] sm:$0xff] %v736
      %779 = vst [vmem:[#allocation2 + $0x8] sm:$0xff] %v737
      %780 = vst [vmem:[#allocation2 + $0x10] sm:$0xff] %v738
      %781 = vst [vmem:[#allocation2 + $0x18] sm:$0xff] %v739
      %782 = vst [vmem:[#allocation2 + $0x20] sm:$0xff] %v740
      %783 = vst [vmem:[#allocation2 + $0x28] sm:$0xff] %v741
      %784 = vst [vmem:[#allocation2 + $0x30] sm:$0xff] %v742
      %785 = vst [vmem:[#allocation2 + $0x38] sm:$0xff] %v743
      %786 = vst [vmem:[#allocation2 + $0x40] sm:$0xff] %v744
      %787 = vst [vmem:[#allocation2 + $0x48] sm:$0xff] %v745
      %788 = vst [vmem:[#allocation2 + $0x50] sm:$0xff] %v746
      %789 = vst [vmem:[#allocation2 + $0x58] sm:$0xff] %v747
      %790 = vst [vmem:[#allocation2 + $0x60] sm:$0xff] %v748
      %791 = vst [vmem:[#allocation2 + $0x68] sm:$0xff] %v749
      %792 = vst [vmem:[#allocation2 + $0x70] sm:$0xff] %v750
      %793 = vst [vmem:[#allocation2 + $0x78] sm:$0xff] %v751
      %794 = vst [vmem:[#allocation2 + $0x80] sm:$0xff] %v752
      %795 = vst [vmem:[#allocation2 + $0x88] sm:$0xff] %v753
      %796 = vst [vmem:[#allocation2 + $0x90] sm:$0xff] %v754
      %797 = vst [vmem:[#allocation2 + $0x98] sm:$0xff] %v755
      %798 = vst [vmem:[#allocation2 + $0xa0] sm:$0xff] %v756
      %799 = vst [vmem:[#allocation2 + $0xa8] sm:$0xff] %v757
      %800 = vst [vmem:[#allocation2 + $0xb0] sm:$0xff] %v758
      %801 = vst [vmem:[#allocation2 + $0xb8] sm:$0xff] %v759
      %802 = vst [vmem:[#allocation2 + $0xc0] sm:$0xff] %v760
      %803 = vst [vmem:[#allocation2 + $0xc8] sm:$0xff] %v761
      %804 = vst [vmem:[#allocation2 + $0xd0] sm:$0xff] %v762
      %805 = vst [vmem:[#allocation2 + $0xd8] sm:$0xff] %v763
      %806 = vst [vmem:[#allocation2 + $0xe0] sm:$0xff] %v764
      %807 = vst [vmem:[#allocation2 + $0xe8] sm:$0xff] %v765
      %808 = vst [vmem:[#allocation2 + $0xf0] sm:$0xff] %v766
      %809 = vst [vmem:[#allocation2 + $0xf8] sm:$0xff] %v767
      %810 = vst [vmem:[#allocation2 + $0x100] sm:$0xff] %v768
      %811 = vst [vmem:[#allocation2 + $0x108] sm:$0xff] %v769
      %812 = vst [vmem:[#allocation2 + $0x110] sm:$0xff] %v770
      %813 = vst [vmem:[#allocation2 + $0x118] sm:$0xff] %v771
      %814 = vst [vmem:[#allocation2 + $0x120] sm:$0xff] %v772
      %815 = vst [vmem:[#allocation2 + $0x128] sm:$0xff] %v773
      %816 = vst [vmem:[#allocation2 + $0x130] sm:$0xff] %v774
      %817 = vst [vmem:[#allocation2 + $0x138] sm:$0xff] %v775
      %818 = vst [vmem:[#allocation2 + $0x140] sm:$0xff] %v776
      %819 = vst [vmem:[#allocation2 + $0x148] sm:$0xff] %v777
      %v820 = vld [vmem:[#allocation2 + $0x5] sm:$0xff]
      %v821 = vld [vmem:[#allocation2 + $0xd] sm:$0xff]
      %v822 = vld [vmem:[#allocation2 + $0x15] sm:$0xff]
      %v823 = vld [vmem:[#allocation2 + $0x1d] sm:$0xff]
      %v824 = vld [vmem:[#allocation2 + $0x25] sm:$0xff]
      %v825 = vld [vmem:[#allocation2 + $0x2d] sm:$0xff]
      %v826 = vld [vmem:[#allocation2 + $0x35] sm:$0xff]
      %v827 = vld [vmem:[#allocation2 + $0x3d] sm:$0xff]
      %v828 = vld [vmem:[#allocation2 + $0x45] sm:$0xff]
      %v829 = vld [vmem:[#allocation2 + $0x4d] sm:$0xff]
      %v830 = vld [vmem:[#allocation2 + $0x55] sm:$0xff]
      %v831 = vld [vmem:[#allocation2 + $0x5d] sm:$0xff]
      %v832 = vld [vmem:[#allocation2 + $0x65] sm:$0xff]
      %v833 = vld [vmem:[#allocation2 + $0x6d] sm:$0xff]
      %v834 = vld [vmem:[#allocation2 + $0x75] sm:$0xff]
      %v835 = vld [vmem:[#allocation2 + $0x7d] sm:$0xff]
      %v836 = vld [vmem:[#allocation2 + $0x85] sm:$0xff]
      %v837 = vld [vmem:[#allocation2 + $0x8d] sm:$0xff]
      %v838 = vld [vmem:[#allocation2 + $0x95] sm:$0xff]
      %v839 = vld [vmem:[#allocation2 + $0x9d] sm:$0xff]
      %v840 = vld [vmem:[#allocation2 + $0xa5] sm:$0xff]
      %v841 = vld [vmem:[#allocation2 + $0xad] sm:$0xff]
      %v842 = vld [vmem:[#allocation2 + $0xb5] sm:$0xff]
      %v843 = vld [vmem:[#allocation2 + $0xbd] sm:$0xff]
      %v844 = vld [vmem:[#allocation2 + $0xc5] sm:$0xff]
      %v845 = vld [vmem:[#allocation2 + $0xcd] sm:$0xff]
      %v846 = vld [vmem:[#allocation2 + $0xd5] sm:$0xff]
      %v847 = vld [vmem:[#allocation2 + $0xdd] sm:$0xff]
      %v848 = vld [vmem:[#allocation2 + $0xe5] sm:$0xff]
      %v849 = vld [vmem:[#allocation2 + $0xed] sm:$0xff]
      %v850 = vld [vmem:[#allocation2 + $0xf5] sm:$0xff]
      %v851 = vld [vmem:[#allocation2 + $0xfd] sm:$0xff]
      %v852 = vld [vmem:[#allocation2 + $0x105] sm:$0xff]
      %v853 = vld [vmem:[#allocation2 + $0x10d] sm:$0xff]
      %v854 = vld [vmem:[#allocation2 + $0x115] sm:$0xff]
      %v855 = vld [vmem:[#allocation2 + $0x11d] sm:$0xff]
      %v856 = vld [vmem:[#allocation2 + $0x6] sm:$0xff]
      %v857 = vld [vmem:[#allocation2 + $0xe] sm:$0xff]
      %v858 = vld [vmem:[#allocation2 + $0x16] sm:$0xff]
      %v859 = vld [vmem:[#allocation2 + $0x1e] sm:$0xff]
      %v860 = vld [vmem:[#allocation2 + $0x26] sm:$0xff]
      %v861 = vld [vmem:[#allocation2 + $0x2e] sm:$0xff]
      %v862 = vld [vmem:[#allocation2 + $0x36] sm:$0xff]
      %v863 = vld [vmem:[#allocation2 + $0x3e] sm:$0xff]
      %v864 = vld [vmem:[#allocation2 + $0x46] sm:$0xff]
      %v865 = vld [vmem:[#allocation2 + $0x4e] sm:$0xff]
      %v866 = vld [vmem:[#allocation2 + $0x56] sm:$0xff]
      %v867 = vld [vmem:[#allocation2 + $0x5e] sm:$0xff]
      %v868 = vld [vmem:[#allocation2 + $0x66] sm:$0xff]
      %v869 = vld [vmem:[#allocation2 + $0x6e] sm:$0xff]
      %v870 = vld [vmem:[#allocation2 + $0x76] sm:$0xff]
      %v871 = vld [vmem:[#allocation2 + $0x7e] sm:$0xff]
      %v872 = vld [vmem:[#allocation2 + $0x86] sm:$0xff]
      %v873 = vld [vmem:[#allocation2 + $0x8e] sm:$0xff]
      %v874 = vld [vmem:[#allocation2 + $0x96] sm:$0xff]
      %v875 = vld [vmem:[#allocation2 + $0x9e] sm:$0xff]
      %v876 = vld [vmem:[#allocation2 + $0xa6] sm:$0xff]
      %v877 = vld [vmem:[#allocation2 + $0xae] sm:$0xff]
      %v878 = vld [vmem:[#allocation2 + $0xb6] sm:$0xff]
      %v879 = vld [vmem:[#allocation2 + $0xbe] sm:$0xff]
      %v880 = vld [vmem:[#allocation2 + $0xc6] sm:$0xff]
      %v881 = vld [vmem:[#allocation2 + $0xce] sm:$0xff]
      %v882 = vld [vmem:[#allocation2 + $0xd6] sm:$0xff]
      %v883 = vld [vmem:[#allocation2 + $0xde] sm:$0xff]
      %v884 = vld [vmem:[#allocation2 + $0xe6] sm:$0xff]
      %v885 = vld [vmem:[#allocation2 + $0xee] sm:$0xff]
      %v886 = vld [vmem:[#allocation2 + $0xf6] sm:$0xff]
      %v887 = vld [vmem:[#allocation2 + $0xfe] sm:$0xff]
      %v888 = vld [vmem:[#allocation2 + $0x106] sm:$0xff]
      %v889 = vld [vmem:[#allocation2 + $0x10e] sm:$0xff]
      %v890 = vld [vmem:[#allocation2 + $0x116] sm:$0xff]
      %v891 = vld [vmem:[#allocation2 + $0x11e] sm:$0xff]
      %892 = vrot.lane.b32.xlu0 %v856, 4
      %v893 = vpop.permute.xlu0 %892
      %894 = vrot.lane.b32.xlu0 %v857, 4
      %v895 = vpop.permute.xlu0 %894
      %896 = vrot.lane.b32.xlu0 %v858, 4
      %v897 = vpop.permute.xlu0 %896
      %898 = vrot.lane.b32.xlu0 %v859, 4
      %v899 = vpop.permute.xlu0 %898
      %900 = vrot.lane.b32.xlu0 %v860, 4
      %v901 = vpop.permute.xlu0 %900
      %902 = vrot.lane.b32.xlu0 %v861, 4
      %v903 = vpop.permute.xlu0 %902
      %904 = vrot.lane.b32.xlu0 %v862, 4
      %v905 = vpop.permute.xlu0 %904
      %906 = vrot.lane.b32.xlu0 %v863, 4
      %v907 = vpop.permute.xlu0 %906
      %908 = vrot.lane.b32.xlu0 %v864, 4
      %v909 = vpop.permute.xlu0 %908
      %910 = vrot.lane.b32.xlu0 %v865, 4
      %v911 = vpop.permute.xlu0 %910
      %912 = vrot.lane.b32.xlu0 %v866, 4
      %v913 = vpop.permute.xlu0 %912
      %914 = vrot.lane.b32.xlu0 %v867, 4
      %v915 = vpop.permute.xlu0 %914
      %916 = vrot.lane.b32.xlu0 %v868, 4
      %v917 = vpop.permute.xlu0 %916
      %918 = vrot.lane.b32.xlu0 %v869, 4
      %v919 = vpop.permute.xlu0 %918
      %920 = vrot.lane.b32.xlu0 %v870, 4
      %v921 = vpop.permute.xlu0 %920
      %922 = vrot.lane.b32.xlu0 %v871, 4
      %v923 = vpop.permute.xlu0 %922
      %924 = vrot.lane.b32.xlu0 %v872, 4
      %v925 = vpop.permute.xlu0 %924
      %926 = vrot.lane.b32.xlu0 %v873, 4
      %v927 = vpop.permute.xlu0 %926
      %928 = vrot.lane.b32.xlu0 %v874, 4
      %v929 = vpop.permute.xlu0 %928
      %930 = vrot.lane.b32.xlu0 %v875, 4
      %v931 = vpop.permute.xlu0 %930
      %932 = vrot.lane.b32.xlu0 %v876, 4
      %v933 = vpop.permute.xlu0 %932
      %934 = vrot.lane.b32.xlu0 %v877, 4
      %v935 = vpop.permute.xlu0 %934
      %936 = vrot.lane.b32.xlu0 %v878, 4
      %v937 = vpop.permute.xlu0 %936
      %938 = vrot.lane.b32.xlu0 %v879, 4
      %v939 = vpop.permute.xlu0 %938
      %940 = vrot.lane.b32.xlu0 %v880, 4
      %v941 = vpop.permute.xlu0 %940
      %942 = vrot.lane.b32.xlu0 %v881, 4
      %v943 = vpop.permute.xlu0 %942
      %944 = vrot.lane.b32.xlu0 %v882, 4
      %v945 = vpop.permute.xlu0 %944
      %946 = vrot.lane.b32.xlu0 %v883, 4
      %v947 = vpop.permute.xlu0 %946
      %948 = vrot.lane.b32.xlu0 %v884, 4
      %v949 = vpop.permute.xlu0 %948
      %950 = vrot.lane.b32.xlu0 %v885, 4
      %v951 = vpop.permute.xlu0 %950
      %952 = vrot.lane.b32.xlu0 %v886, 4
      %v953 = vpop.permute.xlu0 %952
      %954 = vrot.lane.b32.xlu0 %v887, 4
      %v955 = vpop.permute.xlu0 %954
      %956 = vrot.lane.b32.xlu0 %v888, 4
      %v957 = vpop.permute.xlu0 %956
      %958 = vrot.lane.b32.xlu0 %v889, 4
      %v959 = vpop.permute.xlu0 %958
      %960 = vrot.lane.b32.xlu0 %v890, 4
      %v961 = vpop.permute.xlu0 %960
      %962 = vrot.lane.b32.xlu0 %v891, 4
      %v963 = vpop.permute.xlu0 %962
      %v964 = vadd.f32 %v820, %v893
      %v965 = vadd.f32 %v821, %v895
      %v966 = vadd.f32 %v822, %v897
      %v967 = vadd.f32 %v823, %v899
      %v968 = vadd.f32 %v824, %v901
      %v969 = vadd.f32 %v825, %v903
      %v970 = vadd.f32 %v826, %v905
      %v971 = vadd.f32 %v827, %v907
      %v972 = vadd.f32 %v828, %v909
      %v973 = vadd.f32 %v829, %v911
      %v974 = vadd.f32 %v830, %v913
      %v975 = vadd.f32 %v831, %v915
      %v976 = vadd.f32 %v832, %v917
      %v977 = vadd.f32 %v833, %v919
      %v978 = vadd.f32 %v834, %v921
      %v979 = vadd.f32 %v835, %v923
      %v980 = vadd.f32 %v836, %v925
      %v981 = vadd.f32 %v837, %v927
      %v982 = vadd.f32 %v838, %v929
      %v983 = vadd.f32 %v839, %v931
      %v984 = vadd.f32 %v840, %v933
      %v985 = vadd.f32 %v841, %v935
      %v986 = vadd.f32 %v842, %v937
      %v987 = vadd.f32 %v843, %v939
      %v988 = vadd.f32 %v844, %v941
      %v989 = vadd.f32 %v845, %v943
      %v990 = vadd.f32 %v846, %v945
      %v991 = vadd.f32 %v847, %v947
      %v992 = vadd.f32 %v848, %v949
      %v993 = vadd.f32 %v849, %v951
      %v994 = vadd.f32 %v850, %v953
      %v995 = vadd.f32 %v851, %v955
      %v996 = vadd.f32 %v852, %v957
      %v997 = vadd.f32 %v853, %v959
      %v998 = vadd.f32 %v854, %v961
      %v999 = vadd.f32 %v855, %v963
      %v1000 = vld [vmem:[#allocation2 + $0x7] sm:$0xff]
      %v1001 = vld [vmem:[#allocation2 + $0xf] sm:$0xff]
      %v1002 = vld [vmem:[#allocation2 + $0x17] sm:$0xff]
      %v1003 = vld [vmem:[#allocation2 + $0x1f] sm:$0xff]
      %v1004 = vld [vmem:[#allocation2 + $0x27] sm:$0xff]
      %v1005 = vld [vmem:[#allocation2 + $0x2f] sm:$0xff]
      %v1006 = vld [vmem:[#allocation2 + $0x37] sm:$0xff]
      %v1007 = vld [vmem:[#allocation2 + $0x3f] sm:$0xff]
      %v1008 = vld [vmem:[#allocation2 + $0x47] sm:$0xff]
      %v1009 = vld [vmem:[#allocation2 + $0x4f] sm:$0xff]
      %v1010 = vld [vmem:[#allocation2 + $0x57] sm:$0xff]
      %v1011 = vld [vmem:[#allocation2 + $0x5f] sm:$0xff]
      %v1012 = vld [vmem:[#allocation2 + $0x67] sm:$0xff]
      %v1013 = vld [vmem:[#allocation2 + $0x6f] sm:$0xff]
      %v1014 = vld [vmem:[#allocation2 + $0x77] sm:$0xff]
      %v1015 = vld [vmem:[#allocation2 + $0x7f] sm:$0xff]
      %v1016 = vld [vmem:[#allocation2 + $0x87] sm:$0xff]
      %v1017 = vld [vmem:[#allocation2 + $0x8f] sm:$0xff]
      %v1018 = vld [vmem:[#allocation2 + $0x97] sm:$0xff]
      %v1019 = vld [vmem:[#allocation2 + $0x9f] sm:$0xff]
      %v1020 = vld [vmem:[#allocation2 + $0xa7] sm:$0xff]
      %v1021 = vld [vmem:[#allocation2 + $0xaf] sm:$0xff]
      %v1022 = vld [vmem:[#allocation2 + $0xb7] sm:$0xff]
      %v1023 = vld [vmem:[#allocation2 + $0xbf] sm:$0xff]
      %v1024 = vld [vmem:[#allocation2 + $0xc7] sm:$0xff]
      %v1025 = vld [vmem:[#allocation2 + $0xcf] sm:$0xff]
      %v1026 = vld [vmem:[#allocation2 + $0xd7] sm:$0xff]
      %v1027 = vld [vmem:[#allocation2 + $0xdf] sm:$0xff]
      %v1028 = vld [vmem:[#allocation2 + $0xe7] sm:$0xff]
      %v1029 = vld [vmem:[#allocation2 + $0xef] sm:$0xff]
      %v1030 = vld [vmem:[#allocation2 + $0xf7] sm:$0xff]
      %v1031 = vld [vmem:[#allocation2 + $0xff] sm:$0xff]
      %v1032 = vld [vmem:[#allocation2 + $0x107] sm:$0xff]
      %v1033 = vld [vmem:[#allocation2 + $0x10f] sm:$0xff]
      %v1034 = vld [vmem:[#allocation2 + $0x117] sm:$0xff]
      %v1035 = vld [vmem:[#allocation2 + $0x11f] sm:$0xff]
      %1036 = vrot.lane.b32.xlu0 %v1000, 8
      %v1037 = vpop.permute.xlu0 %1036
      %1038 = vrot.lane.b32.xlu0 %v1001, 8
      %v1039 = vpop.permute.xlu0 %1038
      %1040 = vrot.lane.b32.xlu0 %v1002, 8
      %v1041 = vpop.permute.xlu0 %1040
      %1042 = vrot.lane.b32.xlu0 %v1003, 8
      %v1043 = vpop.permute.xlu0 %1042
      %1044 = vrot.lane.b32.xlu0 %v1004, 8
      %v1045 = vpop.permute.xlu0 %1044
      %1046 = vrot.lane.b32.xlu0 %v1005, 8
      %v1047 = vpop.permute.xlu0 %1046
      %1048 = vrot.lane.b32.xlu0 %v1006, 8
      %v1049 = vpop.permute.xlu0 %1048
      %1050 = vrot.lane.b32.xlu0 %v1007, 8
      %v1051 = vpop.permute.xlu0 %1050
      %1052 = vrot.lane.b32.xlu0 %v1008, 8
      %v1053 = vpop.permute.xlu0 %1052
      %1054 = vrot.lane.b32.xlu0 %v1009, 8
      %v1055 = vpop.permute.xlu0 %1054
      %1056 = vrot.lane.b32.xlu0 %v1010, 8
      %v1057 = vpop.permute.xlu0 %1056
      %1058 = vrot.lane.b32.xlu0 %v1011, 8
      %v1059 = vpop.permute.xlu0 %1058
      %1060 = vrot.lane.b32.xlu0 %v1012, 8
      %v1061 = vpop.permute.xlu0 %1060
      %1062 = vrot.lane.b32.xlu0 %v1013, 8
      %v1063 = vpop.permute.xlu0 %1062
      %1064 = vrot.lane.b32.xlu0 %v1014, 8
      %v1065 = vpop.permute.xlu0 %1064
      %1066 = vrot.lane.b32.xlu0 %v1015, 8
      %v1067 = vpop.permute.xlu0 %1066
      %1068 = vrot.lane.b32.xlu0 %v1016, 8
      %v1069 = vpop.permute.xlu0 %1068
      %1070 = vrot.lane.b32.xlu0 %v1017, 8
      %v1071 = vpop.permute.xlu0 %1070
      %1072 = vrot.lane.b32.xlu0 %v1018, 8
      %v1073 = vpop.permute.xlu0 %1072
      %1074 = vrot.lane.b32.xlu0 %v1019, 8
      %v1075 = vpop.permute.xlu0 %1074
      %1076 = vrot.lane.b32.xlu0 %v1020, 8
      %v1077 = vpop.permute.xlu0 %1076
      %1078 = vrot.lane.b32.xlu0 %v1021, 8
      %v1079 = vpop.permute.xlu0 %1078
      %1080 = vrot.lane.b32.xlu0 %v1022, 8
      %v1081 = vpop.permute.xlu0 %1080
      %1082 = vrot.lane.b32.xlu0 %v1023, 8
      %v1083 = vpop.permute.xlu0 %1082
      %1084 = vrot.lane.b32.xlu0 %v1024, 8
      %v1085 = vpop.permute.xlu0 %1084
      %1086 = vrot.lane.b32.xlu0 %v1025, 8
      %v1087 = vpop.permute.xlu0 %1086
      %1088 = vrot.lane.b32.xlu0 %v1026, 8
      %v1089 = vpop.permute.xlu0 %1088
      %1090 = vrot.lane.b32.xlu0 %v1027, 8
      %v1091 = vpop.permute.xlu0 %1090
      %1092 = vrot.lane.b32.xlu0 %v1028, 8
      %v1093 = vpop.permute.xlu0 %1092
      %1094 = vrot.lane.b32.xlu0 %v1029, 8
      %v1095 = vpop.permute.xlu0 %1094
      %1096 = vrot.lane.b32.xlu0 %v1030, 8
      %v1097 = vpop.permute.xlu0 %1096
      %1098 = vrot.lane.b32.xlu0 %v1031, 8
      %v1099 = vpop.permute.xlu0 %1098
      %1100 = vrot.lane.b32.xlu0 %v1032, 8
      %v1101 = vpop.permute.xlu0 %1100
      %1102 = vrot.lane.b32.xlu0 %v1033, 8
      %v1103 = vpop.permute.xlu0 %1102
      %1104 = vrot.lane.b32.xlu0 %v1034, 8
      %v1105 = vpop.permute.xlu0 %1104
      %1106 = vrot.lane.b32.xlu0 %v1035, 8
      %v1107 = vpop.permute.xlu0 %1106
      %v1108 = vadd.f32 %v964, %v1037
      %v1109 = vadd.f32 %v965, %v1039
      %v1110 = vadd.f32 %v966, %v1041
      %v1111 = vadd.f32 %v967, %v1043
      %v1112 = vadd.f32 %v968, %v1045
      %v1113 = vadd.f32 %v969, %v1047
      %v1114 = vadd.f32 %v970, %v1049
      %v1115 = vadd.f32 %v971, %v1051
      %v1116 = vadd.f32 %v972, %v1053
      %v1117 = vadd.f32 %v973, %v1055
      %v1118 = vadd.f32 %v974, %v1057
      %v1119 = vadd.f32 %v975, %v1059
      %v1120 = vadd.f32 %v976, %v1061
      %v1121 = vadd.f32 %v977, %v1063
      %v1122 = vadd.f32 %v978, %v1065
      %v1123 = vadd.f32 %v979, %v1067
      %v1124 = vadd.f32 %v980, %v1069
      %v1125 = vadd.f32 %v981, %v1071
      %v1126 = vadd.f32 %v982, %v1073
      %v1127 = vadd.f32 %v983, %v1075
      %v1128 = vadd.f32 %v984, %v1077
      %v1129 = vadd.f32 %v985, %v1079
      %v1130 = vadd.f32 %v986, %v1081
      %v1131 = vadd.f32 %v987, %v1083
      %v1132 = vadd.f32 %v988, %v1085
      %v1133 = vadd.f32 %v989, %v1087
      %v1134 = vadd.f32 %v990, %v1089
      %v1135 = vadd.f32 %v991, %v1091
      %v1136 = vadd.f32 %v992, %v1093
      %v1137 = vadd.f32 %v993, %v1095
      %v1138 = vadd.f32 %v994, %v1097
      %v1139 = vadd.f32 %v995, %v1099
      %v1140 = vadd.f32 %v996, %v1101
      %v1141 = vadd.f32 %v997, %v1103
      %v1142 = vadd.f32 %v998, %v1105
      %v1143 = vadd.f32 %v999, %v1107
      %v1144 = vld [vmem:[#allocation2 + $0x127] sm:$0xff]
      %v1145 = vld [vmem:[#allocation2 + $0x12f] sm:$0xff]
      %1146 = vrot.lane.b32.xlu0 %v1002, 12
      %v1147 = vpop.permute.xlu0 %1146
      %1148 = vrot.lane.b32.xlu0 %v1003, 12
      %v1149 = vpop.permute.xlu0 %1148
      %1150 = vrot.lane.b32.xlu0 %v1004, 12
      %v1151 = vpop.permute.xlu0 %1150
      %1152 = vrot.lane.b32.xlu0 %v1005, 12
      %v1153 = vpop.permute.xlu0 %1152
      %1154 = vrot.lane.b32.xlu0 %v1006, 12
      %v1155 = vpop.permute.xlu0 %1154
      %1156 = vrot.lane.b32.xlu0 %v1007, 12
      %v1157 = vpop.permute.xlu0 %1156
      %1158 = vrot.lane.b32.xlu0 %v1008, 12
      %v1159 = vpop.permute.xlu0 %1158
      %1160 = vrot.lane.b32.xlu0 %v1009, 12
      %v1161 = vpop.permute.xlu0 %1160
      %1162 = vrot.lane.b32.xlu0 %v1010, 12
      %v1163 = vpop.permute.xlu0 %1162
      %1164 = vrot.lane.b32.xlu0 %v1011, 12
      %v1165 = vpop.permute.xlu0 %1164
      %1166 = vrot.lane.b32.xlu0 %v1012, 12
      %v1167 = vpop.permute.xlu0 %1166
      %1168 = vrot.lane.b32.xlu0 %v1013, 12
      %v1169 = vpop.permute.xlu0 %1168
      %1170 = vrot.lane.b32.xlu0 %v1014, 12
      %v1171 = vpop.permute.xlu0 %1170
      %1172 = vrot.lane.b32.xlu0 %v1015, 12
      %v1173 = vpop.permute.xlu0 %1172
      %1174 = vrot.lane.b32.xlu0 %v1016, 12
      %v1175 = vpop.permute.xlu0 %1174
      %1176 = vrot.lane.b32.xlu0 %v1017, 12
      %v1177 = vpop.permute.xlu0 %1176
      %1178 = vrot.lane.b32.xlu0 %v1018, 12
      %v1179 = vpop.permute.xlu0 %1178
      %1180 = vrot.lane.b32.xlu0 %v1019, 12
      %v1181 = vpop.permute.xlu0 %1180
      %1182 = vrot.lane.b32.xlu0 %v1020, 12
      %v1183 = vpop.permute.xlu0 %1182
      %1184 = vrot.lane.b32.xlu0 %v1021, 12
      %v1185 = vpop.permute.xlu0 %1184
      %1186 = vrot.lane.b32.xlu0 %v1022, 12
      %v1187 = vpop.permute.xlu0 %1186
      %1188 = vrot.lane.b32.xlu0 %v1023, 12
      %v1189 = vpop.permute.xlu0 %1188
      %1190 = vrot.lane.b32.xlu0 %v1024, 12
      %v1191 = vpop.permute.xlu0 %1190
      %1192 = vrot.lane.b32.xlu0 %v1025, 12
      %v1193 = vpop.permute.xlu0 %1192
      %1194 = vrot.lane.b32.xlu0 %v1026, 12
      %v1195 = vpop.permute.xlu0 %1194
      %1196 = vrot.lane.b32.xlu0 %v1027, 12
      %v1197 = vpop.permute.xlu0 %1196
      %1198 = vrot.lane.b32.xlu0 %v1028, 12
      %v1199 = vpop.permute.xlu0 %1198
      %1200 = vrot.lane.b32.xlu0 %v1029, 12
      %v1201 = vpop.permute.xlu0 %1200
      %1202 = vrot.lane.b32.xlu0 %v1030, 12
      %v1203 = vpop.permute.xlu0 %1202
      %1204 = vrot.lane.b32.xlu0 %v1031, 12
      %v1205 = vpop.permute.xlu0 %1204
      %1206 = vrot.lane.b32.xlu0 %v1032, 12
      %v1207 = vpop.permute.xlu0 %1206
      %1208 = vrot.lane.b32.xlu0 %v1033, 12
      %v1209 = vpop.permute.xlu0 %1208
      %1210 = vrot.lane.b32.xlu0 %v1034, 12
      %v1211 = vpop.permute.xlu0 %1210
      %1212 = vrot.lane.b32.xlu0 %v1035, 12
      %v1213 = vpop.permute.xlu0 %1212
      %1214 = vrot.lane.b32.xlu0 %v1144, 12
      %v1215 = vpop.permute.xlu0 %1214
      %1216 = vrot.lane.b32.xlu0 %v1145, 12
      %v1217 = vpop.permute.xlu0 %1216
      %v1218 = vadd.f32 %v1108, %v1147
      %v1219 = vadd.f32 %v1109, %v1149
      %v1220 = vadd.f32 %v1110, %v1151
      %v1221 = vadd.f32 %v1111, %v1153
      %v1222 = vadd.f32 %v1112, %v1155
      %v1223 = vadd.f32 %v1113, %v1157
      %v1224 = vadd.f32 %v1114, %v1159
      %v1225 = vadd.f32 %v1115, %v1161
      %v1226 = vadd.f32 %v1116, %v1163
      %v1227 = vadd.f32 %v1117, %v1165
      %v1228 = vadd.f32 %v1118, %v1167
      %v1229 = vadd.f32 %v1119, %v1169
      %v1230 = vadd.f32 %v1120, %v1171
      %v1231 = vadd.f32 %v1121, %v1173
      %v1232 = vadd.f32 %v1122, %v1175
      %v1233 = vadd.f32 %v1123, %v1177
      %v1234 = vadd.f32 %v1124, %v1179
      %v1235 = vadd.f32 %v1125, %v1181
      %v1236 = vadd.f32 %v1126, %v1183
      %v1237 = vadd.f32 %v1127, %v1185
      %v1238 = vadd.f32 %v1128, %v1187
      %v1239 = vadd.f32 %v1129, %v1189
      %v1240 = vadd.f32 %v1130, %v1191
      %v1241 = vadd.f32 %v1131, %v1193
      %v1242 = vadd.f32 %v1132, %v1195
      %v1243 = vadd.f32 %v1133, %v1197
      %v1244 = vadd.f32 %v1134, %v1199
      %v1245 = vadd.f32 %v1135, %v1201
      %v1246 = vadd.f32 %v1136, %v1203
      %v1247 = vadd.f32 %v1137, %v1205
      %v1248 = vadd.f32 %v1138, %v1207
      %v1249 = vadd.f32 %v1139, %v1209
      %v1250 = vadd.f32 %v1140, %v1211
      %v1251 = vadd.f32 %v1141, %v1213
      %v1252 = vadd.f32 %v1142, %v1215
      %v1253 = vadd.f32 %v1143, %v1217
      %v1254 = vld [vmem:[#allocation2 + $0x18] sm:$0xff]
      %v1255 = vld [vmem:[#allocation2 + $0x20] sm:$0xff]
      %v1256 = vld [vmem:[#allocation2 + $0x28] sm:$0xff]
      %v1257 = vld [vmem:[#allocation2 + $0x30] sm:$0xff]
      %v1258 = vld [vmem:[#allocation2 + $0x38] sm:$0xff]
      %v1259 = vld [vmem:[#allocation2 + $0x40] sm:$0xff]
      %v1260 = vld [vmem:[#allocation2 + $0x48] sm:$0xff]
      %v1261 = vld [vmem:[#allocation2 + $0x50] sm:$0xff]
      %v1262 = vld [vmem:[#allocation2 + $0x58] sm:$0xff]
      %v1263 = vld [vmem:[#allocation2 + $0x60] sm:$0xff]
      %v1264 = vld [vmem:[#allocation2 + $0x68] sm:$0xff]
      %v1265 = vld [vmem:[#allocation2 + $0x70] sm:$0xff]
      %v1266 = vld [vmem:[#allocation2 + $0x78] sm:$0xff]
      %v1267 = vld [vmem:[#allocation2 + $0x80] sm:$0xff]
      %v1268 = vld [vmem:[#allocation2 + $0x88] sm:$0xff]
      %v1269 = vld [vmem:[#allocation2 + $0x90] sm:$0xff]
      %v1270 = vld [vmem:[#allocation2 + $0x98] sm:$0xff]
      %v1271 = vld [vmem:[#allocation2 + $0xa0] sm:$0xff]
      %v1272 = vld [vmem:[#allocation2 + $0xa8] sm:$0xff]
      %v1273 = vld [vmem:[#allocation2 + $0xb0] sm:$0xff]
      %v1274 = vld [vmem:[#allocation2 + $0xb8] sm:$0xff]
      %v1275 = vld [vmem:[#allocation2 + $0xc0] sm:$0xff]
      %v1276 = vld [vmem:[#allocation2 + $0xc8] sm:$0xff]
      %v1277 = vld [vmem:[#allocation2 + $0xd0] sm:$0xff]
      %v1278 = vld [vmem:[#allocation2 + $0xd8] sm:$0xff]
      %v1279 = vld [vmem:[#allocation2 + $0xe0] sm:$0xff]
      %v1280 = vld [vmem:[#allocation2 + $0xe8] sm:$0xff]
      %v1281 = vld [vmem:[#allocation2 + $0xf0] sm:$0xff]
      %v1282 = vld [vmem:[#allocation2 + $0xf8] sm:$0xff]
      %v1283 = vld [vmem:[#allocation2 + $0x100] sm:$0xff]
      %v1284 = vld [vmem:[#allocation2 + $0x108] sm:$0xff]
      %v1285 = vld [vmem:[#allocation2 + $0x110] sm:$0xff]
      %v1286 = vld [vmem:[#allocation2 + $0x118] sm:$0xff]
      %v1287 = vld [vmem:[#allocation2 + $0x120] sm:$0xff]
      %v1288 = vld [vmem:[#allocation2 + $0x128] sm:$0xff]
      %v1289 = vld [vmem:[#allocation2 + $0x130] sm:$0xff]
      %1290 = vrot.lane.b32.xlu0 %v1254, 16
      %v1291 = vpop.permute.xlu0 %1290
      %1292 = vrot.lane.b32.xlu0 %v1255, 16
      %v1293 = vpop.permute.xlu0 %1292
      %1294 = vrot.lane.b32.xlu0 %v1256, 16
      %v1295 = vpop.permute.xlu0 %1294
      %1296 = vrot.lane.b32.xlu0 %v1257, 16
      %v1297 = vpop.permute.xlu0 %1296
      %1298 = vrot.lane.b32.xlu0 %v1258, 16
      %v1299 = vpop.permute.xlu0 %1298
      %1300 = vrot.lane.b32.xlu0 %v1259, 16
      %v1301 = vpop.permute.xlu0 %1300
      %1302 = vrot.lane.b32.xlu0 %v1260, 16
      %v1303 = vpop.permute.xlu0 %1302
      %1304 = vrot.lane.b32.xlu0 %v1261, 16
      %v1305 = vpop.permute.xlu0 %1304
      %1306 = vrot.lane.b32.xlu0 %v1262, 16
      %v1307 = vpop.permute.xlu0 %1306
      %1308 = vrot.lane.b32.xlu0 %v1263, 16
      %v1309 = vpop.permute.xlu0 %1308
      %1310 = vrot.lane.b32.xlu0 %v1264, 16
      %v1311 = vpop.permute.xlu0 %1310
      %1312 = vrot.lane.b32.xlu0 %v1265, 16
      %v1313 = vpop.permute.xlu0 %1312
      %1314 = vrot.lane.b32.xlu0 %v1266, 16
      %v1315 = vpop.permute.xlu0 %1314
      %1316 = vrot.lane.b32.xlu0 %v1267, 16
      %v1317 = vpop.permute.xlu0 %1316
      %1318 = vrot.lane.b32.xlu0 %v1268, 16
      %v1319 = vpop.permute.xlu0 %1318
      %1320 = vrot.lane.b32.xlu0 %v1269, 16
      %v1321 = vpop.permute.xlu0 %1320
      %1322 = vrot.lane.b32.xlu0 %v1270, 16
      %v1323 = vpop.permute.xlu0 %1322
      %1324 = vrot.lane.b32.xlu0 %v1271, 16
      %v1325 = vpop.permute.xlu0 %1324
      %1326 = vrot.lane.b32.xlu0 %v1272, 16
      %v1327 = vpop.permute.xlu0 %1326
      %1328 = vrot.lane.b32.xlu0 %v1273, 16
      %v1329 = vpop.permute.xlu0 %1328
      %1330 = vrot.lane.b32.xlu0 %v1274, 16
      %v1331 = vpop.permute.xlu0 %1330
      %1332 = vrot.lane.b32.xlu0 %v1275, 16
      %v1333 = vpop.permute.xlu0 %1332
      %1334 = vrot.lane.b32.xlu0 %v1276, 16
      %v1335 = vpop.permute.xlu0 %1334
      %1336 = vrot.lane.b32.xlu0 %v1277, 16
      %v1337 = vpop.permute.xlu0 %1336
      %1338 = vrot.lane.b32.xlu0 %v1278, 16
      %v1339 = vpop.permute.xlu0 %1338
      %1340 = vrot.lane.b32.xlu0 %v1279, 16
      %v1341 = vpop.permute.xlu0 %1340
      %1342 = vrot.lane.b32.xlu0 %v1280, 16
      %v1343 = vpop.permute.xlu0 %1342
      %1344 = vrot.lane.b32.xlu0 %v1281, 16
      %v1345 = vpop.permute.xlu0 %1344
      %1346 = vrot.lane.b32.xlu0 %v1282, 16
      %v1347 = vpop.permute.xlu0 %1346
      %1348 = vrot.lane.b32.xlu0 %v1283, 16
      %v1349 = vpop.permute.xlu0 %1348
      %1350 = vrot.lane.b32.xlu0 %v1284, 16
      %v1351 = vpop.permute.xlu0 %1350
      %1352 = vrot.lane.b32.xlu0 %v1285, 16
      %v1353 = vpop.permute.xlu0 %1352
      %1354 = vrot.lane.b32.xlu0 %v1286, 16
      %v1355 = vpop.permute.xlu0 %1354
      %1356 = vrot.lane.b32.xlu0 %v1287, 16
      %v1357 = vpop.permute.xlu0 %1356
      %1358 = vrot.lane.b32.xlu0 %v1288, 16
      %v1359 = vpop.permute.xlu0 %1358
      %1360 = vrot.lane.b32.xlu0 %v1289, 16
      %v1361 = vpop.permute.xlu0 %1360
      %v1362 = vadd.f32 %v1218, %v1291
      %v1363 = vadd.f32 %v1219, %v1293
      %v1364 = vadd.f32 %v1220, %v1295
      %v1365 = vadd.f32 %v1221, %v1297
      %v1366 = vadd.f32 %v1222, %v1299
      %v1367 = vadd.f32 %v1223, %v1301
      %v1368 = vadd.f32 %v1224, %v1303
      %v1369 = vadd.f32 %v1225, %v1305
      %v1370 = vadd.f32 %v1226, %v1307
      %v1371 = vadd.f32 %v1227, %v1309
      %v1372 = vadd.f32 %v1228, %v1311
      %v1373 = vadd.f32 %v1229, %v1313
      %v1374 = vadd.f32 %v1230, %v1315
      %v1375 = vadd.f32 %v1231, %v1317
      %v1376 = vadd.f32 %v1232, %v1319
      %v1377 = vadd.f32 %v1233, %v1321
      %v1378 = vadd.f32 %v1234, %v1323
      %v1379 = vadd.f32 %v1235, %v1325
      %v1380 = vadd.f32 %v1236, %v1327
      %v1381 = vadd.f32 %v1237, %v1329
      %v1382 = vadd.f32 %v1238, %v1331
      %v1383 = vadd.f32 %v1239, %v1333
      %v1384 = vadd.f32 %v1240, %v1335
      %v1385 = vadd.f32 %v1241, %v1337
      %v1386 = vadd.f32 %v1242, %v1339
      %v1387 = vadd.f32 %v1243, %v1341
      %v1388 = vadd.f32 %v1244, %v1343
      %v1389 = vadd.f32 %v1245, %v1345
      %v1390 = vadd.f32 %v1246, %v1347
      %v1391 = vadd.f32 %v1247, %v1349
      %v1392 = vadd.f32 %v1248, %v1351
      %v1393 = vadd.f32 %v1249, %v1353
      %v1394 = vadd.f32 %v1250, %v1355
      %v1395 = vadd.f32 %v1251, %v1357
      %v1396 = vadd.f32 %v1252, %v1359
      %v1397 = vadd.f32 %v1253, %v1361
      %v1398 = vld [vmem:[#allocation2 + $0x19] sm:$0xff]
      %v1399 = vld [vmem:[#allocation2 + $0x21] sm:$0xff]
      %v1400 = vld [vmem:[#allocation2 + $0x29] sm:$0xff]
      %v1401 = vld [vmem:[#allocation2 + $0x31] sm:$0xff]
      %v1402 = vld [vmem:[#allocation2 + $0x39] sm:$0xff]
      %v1403 = vld [vmem:[#allocation2 + $0x41] sm:$0xff]
      %v1404 = vld [vmem:[#allocation2 + $0x49] sm:$0xff]
      %v1405 = vld [vmem:[#allocation2 + $0x51] sm:$0xff]
      %v1406 = vld [vmem:[#allocation2 + $0x59] sm:$0xff]
      %v1407 = vld [vmem:[#allocation2 + $0x61] sm:$0xff]
      %v1408 = vld [vmem:[#allocation2 + $0x69] sm:$0xff]
      %v1409 = vld [vmem:[#allocation2 + $0x71] sm:$0xff]
      %v1410 = vld [vmem:[#allocation2 + $0x79] sm:$0xff]
      %v1411 = vld [vmem:[#allocation2 + $0x81] sm:$0xff]
      %v1412 = vld [vmem:[#allocation2 + $0x89] sm:$0xff]
      %v1413 = vld [vmem:[#allocation2 + $0x91] sm:$0xff]
      %v1414 = vld [vmem:[#allocation2 + $0x99] sm:$0xff]
      %v1415 = vld [vmem:[#allocation2 + $0xa1] sm:$0xff]
      %v1416 = vld [vmem:[#allocation2 + $0xa9] sm:$0xff]
      %v1417 = vld [vmem:[#allocation2 + $0xb1] sm:$0xff]
      %v1418 = vld [vmem:[#allocation2 + $0xb9] sm:$0xff]
      %v1419 = vld [vmem:[#allocation2 + $0xc1] sm:$0xff]
      %v1420 = vld [vmem:[#allocation2 + $0xc9] sm:$0xff]
      %v1421 = vld [vmem:[#allocation2 + $0xd1] sm:$0xff]
      %v1422 = vld [vmem:[#allocation2 + $0xd9] sm:$0xff]
      %v1423 = vld [vmem:[#allocation2 + $0xe1] sm:$0xff]
      %v1424 = vld [vmem:[#allocation2 + $0xe9] sm:$0xff]
      %v1425 = vld [vmem:[#allocation2 + $0xf1] sm:$0xff]
      %v1426 = vld [vmem:[#allocation2 + $0xf9] sm:$0xff]
      %v1427 = vld [vmem:[#allocation2 + $0x101] sm:$0xff]
      %v1428 = vld [vmem:[#allocation2 + $0x109] sm:$0xff]
      %v1429 = vld [vmem:[#allocation2 + $0x111] sm:$0xff]
      %v1430 = vld [vmem:[#allocation2 + $0x119] sm:$0xff]
      %v1431 = vld [vmem:[#allocation2 + $0x121] sm:$0xff]
      %v1432 = vld [vmem:[#allocation2 + $0x129] sm:$0xff]
      %v1433 = vld [vmem:[#allocation2 + $0x131] sm:$0xff]
      %1434 = vrot.lane.b32.xlu0 %v1398, 20
      %v1435 = vpop.permute.xlu0 %1434
      %1436 = vrot.lane.b32.xlu0 %v1399, 20
      %v1437 = vpop.permute.xlu0 %1436
      %1438 = vrot.lane.b32.xlu0 %v1400, 20
      %v1439 = vpop.permute.xlu0 %1438
      %1440 = vrot.lane.b32.xlu0 %v1401, 20
      %v1441 = vpop.permute.xlu0 %1440
      %1442 = vrot.lane.b32.xlu0 %v1402, 20
      %v1443 = vpop.permute.xlu0 %1442
      %1444 = vrot.lane.b32.xlu0 %v1403, 20
      %v1445 = vpop.permute.xlu0 %1444
      %1446 = vrot.lane.b32.xlu0 %v1404, 20
      %v1447 = vpop.permute.xlu0 %1446
      %1448 = vrot.lane.b32.xlu0 %v1405, 20
      %v1449 = vpop.permute.xlu0 %1448
      %1450 = vrot.lane.b32.xlu0 %v1406, 20
      %v1451 = vpop.permute.xlu0 %1450
      %1452 = vrot.lane.b32.xlu0 %v1407, 20
      %v1453 = vpop.permute.xlu0 %1452
      %1454 = vrot.lane.b32.xlu0 %v1408, 20
      %v1455 = vpop.permute.xlu0 %1454
      %1456 = vrot.lane.b32.xlu0 %v1409, 20
      %v1457 = vpop.permute.xlu0 %1456
      %1458 = vrot.lane.b32.xlu0 %v1410, 20
      %v1459 = vpop.permute.xlu0 %1458
      %1460 = vrot.lane.b32.xlu0 %v1411, 20
      %v1461 = vpop.permute.xlu0 %1460
      %1462 = vrot.lane.b32.xlu0 %v1412, 20
      %v1463 = vpop.permute.xlu0 %1462
      %1464 = vrot.lane.b32.xlu0 %v1413, 20
      %v1465 = vpop.permute.xlu0 %1464
      %1466 = vrot.lane.b32.xlu0 %v1414, 20
      %v1467 = vpop.permute.xlu0 %1466
      %1468 = vrot.lane.b32.xlu0 %v1415, 20
      %v1469 = vpop.permute.xlu0 %1468
      %1470 = vrot.lane.b32.xlu0 %v1416, 20
      %v1471 = vpop.permute.xlu0 %1470
      %1472 = vrot.lane.b32.xlu0 %v1417, 20
      %v1473 = vpop.permute.xlu0 %1472
      %1474 = vrot.lane.b32.xlu0 %v1418, 20
      %v1475 = vpop.permute.xlu0 %1474
      %1476 = vrot.lane.b32.xlu0 %v1419, 20
      %v1477 = vpop.permute.xlu0 %1476
      %1478 = vrot.lane.b32.xlu0 %v1420, 20
      %v1479 = vpop.permute.xlu0 %1478
      %1480 = vrot.lane.b32.xlu0 %v1421, 20
      %v1481 = vpop.permute.xlu0 %1480
      %1482 = vrot.lane.b32.xlu0 %v1422, 20
      %v1483 = vpop.permute.xlu0 %1482
      %1484 = vrot.lane.b32.xlu0 %v1423, 20
      %v1485 = vpop.permute.xlu0 %1484
      %1486 = vrot.lane.b32.xlu0 %v1424, 20
      %v1487 = vpop.permute.xlu0 %1486
      %1488 = vrot.lane.b32.xlu0 %v1425, 20
      %v1489 = vpop.permute.xlu0 %1488
      %1490 = vrot.lane.b32.xlu0 %v1426, 20
      %v1491 = vpop.permute.xlu0 %1490
      %1492 = vrot.lane.b32.xlu0 %v1427, 20
      %v1493 = vpop.permute.xlu0 %1492
      %1494 = vrot.lane.b32.xlu0 %v1428, 20
      %v1495 = vpop.permute.xlu0 %1494
      %1496 = vrot.lane.b32.xlu0 %v1429, 20
      %v1497 = vpop.permute.xlu0 %1496
      %1498 = vrot.lane.b32.xlu0 %v1430, 20
      %v1499 = vpop.permute.xlu0 %1498
      %1500 = vrot.lane.b32.xlu0 %v1431, 20
      %v1501 = vpop.permute.xlu0 %1500
      %1502 = vrot.lane.b32.xlu0 %v1432, 20
      %v1503 = vpop.permute.xlu0 %1502
      %1504 = vrot.lane.b32.xlu0 %v1433, 20
      %v1505 = vpop.permute.xlu0 %1504
      %v1506 = vadd.f32 %v1362, %v1435
      %v1507 = vadd.f32 %v1363, %v1437
      %v1508 = vadd.f32 %v1364, %v1439
      %v1509 = vadd.f32 %v1365, %v1441
      %v1510 = vadd.f32 %v1366, %v1443
      %v1511 = vadd.f32 %v1367, %v1445
      %v1512 = vadd.f32 %v1368, %v1447
      %v1513 = vadd.f32 %v1369, %v1449
      %v1514 = vadd.f32 %v1370, %v1451
      %v1515 = vadd.f32 %v1371, %v1453
      %v1516 = vadd.f32 %v1372, %v1455
      %v1517 = vadd.f32 %v1373, %v1457
      %v1518 = vadd.f32 %v1374, %v1459
      %v1519 = vadd.f32 %v1375, %v1461
      %v1520 = vadd.f32 %v1376, %v1463
      %v1521 = vadd.f32 %v1377, %v1465
      %v1522 = vadd.f32 %v1378, %v1467
      %v1523 = vadd.f32 %v1379, %v1469
      %v1524 = vadd.f32 %v1380, %v1471
      %v1525 = vadd.f32 %v1381, %v1473
      %v1526 = vadd.f32 %v1382, %v1475
      %v1527 = vadd.f32 %v1383, %v1477
      %v1528 = vadd.f32 %v1384, %v1479
      %v1529 = vadd.f32 %v1385, %v1481
      %v1530 = vadd.f32 %v1386, %v1483
      %v1531 = vadd.f32 %v1387, %v1485
      %v1532 = vadd.f32 %v1388, %v1487
      %v1533 = vadd.f32 %v1389, %v1489
      %v1534 = vadd.f32 %v1390, %v1491
      %v1535 = vadd.f32 %v1391, %v1493
      %v1536 = vadd.f32 %v1392, %v1495
      %v1537 = vadd.f32 %v1393, %v1497
      %v1538 = vadd.f32 %v1394, %v1499
      %v1539 = vadd.f32 %v1395, %v1501
      %v1540 = vadd.f32 %v1396, %v1503
      %v1541 = vadd.f32 %v1397, %v1505
      %v1542 = vld [vmem:[#allocation2 + $0x139] sm:$0xff]
      %v1543 = vld [vmem:[#allocation2 + $0x141] sm:$0xff]
      %1544 = vrot.lane.b32.xlu0 %v1400, 24
      %v1545 = vpop.permute.xlu0 %1544
      %1546 = vrot.lane.b32.xlu0 %v1401, 24
      %v1547 = vpop.permute.xlu0 %1546
      %1548 = vrot.lane.b32.xlu0 %v1402, 24
      %v1549 = vpop.permute.xlu0 %1548
      %1550 = vrot.lane.b32.xlu0 %v1403, 24
      %v1551 = vpop.permute.xlu0 %1550
      %1552 = vrot.lane.b32.xlu0 %v1404, 24
      %v1553 = vpop.permute.xlu0 %1552
      %1554 = vrot.lane.b32.xlu0 %v1405, 24
      %v1555 = vpop.permute.xlu0 %1554
      %1556 = vrot.lane.b32.xlu0 %v1406, 24
      %v1557 = vpop.permute.xlu0 %1556
      %1558 = vrot.lane.b32.xlu0 %v1407, 24
      %v1559 = vpop.permute.xlu0 %1558
      %1560 = vrot.lane.b32.xlu0 %v1408, 24
      %v1561 = vpop.permute.xlu0 %1560
      %1562 = vrot.lane.b32.xlu0 %v1409, 24
      %v1563 = vpop.permute.xlu0 %1562
      %1564 = vrot.lane.b32.xlu0 %v1410, 24
      %v1565 = vpop.permute.xlu0 %1564
      %1566 = vrot.lane.b32.xlu0 %v1411, 24
      %v1567 = vpop.permute.xlu0 %1566
      %1568 = vrot.lane.b32.xlu0 %v1412, 24
      %v1569 = vpop.permute.xlu0 %1568
      %1570 = vrot.lane.b32.xlu0 %v1413, 24
      %v1571 = vpop.permute.xlu0 %1570
      %1572 = vrot.lane.b32.xlu0 %v1414, 24
      %v1573 = vpop.permute.xlu0 %1572
      %1574 = vrot.lane.b32.xlu0 %v1415, 24
      %v1575 = vpop.permute.xlu0 %1574
      %1576 = vrot.lane.b32.xlu0 %v1416, 24
      %v1577 = vpop.permute.xlu0 %1576
      %1578 = vrot.lane.b32.xlu0 %v1417, 24
      %v1579 = vpop.permute.xlu0 %1578
      %1580 = vrot.lane.b32.xlu0 %v1418, 24
      %v1581 = vpop.permute.xlu0 %1580
      %1582 = vrot.lane.b32.xlu0 %v1419, 24
      %v1583 = vpop.permute.xlu0 %1582
      %1584 = vrot.lane.b32.xlu0 %v1420, 24
      %v1585 = vpop.permute.xlu0 %1584
      %1586 = vrot.lane.b32.xlu0 %v1421, 24
      %v1587 = vpop.permute.xlu0 %1586
      %1588 = vrot.lane.b32.xlu0 %v1422, 24
      %v1589 = vpop.permute.xlu0 %1588
      %1590 = vrot.lane.b32.xlu0 %v1423, 24
      %v1591 = vpop.permute.xlu0 %1590
      %1592 = vrot.lane.b32.xlu0 %v1424, 24
      %v1593 = vpop.permute.xlu0 %1592
      %1594 = vrot.lane.b32.xlu0 %v1425, 24
      %v1595 = vpop.permute.xlu0 %1594
      %1596 = vrot.lane.b32.xlu0 %v1426, 24
      %v1597 = vpop.permute.xlu0 %1596
      %1598 = vrot.lane.b32.xlu0 %v1427, 24
      %v1599 = vpop.permute.xlu0 %1598
      %1600 = vrot.lane.b32.xlu0 %v1428, 24
      %v1601 = vpop.permute.xlu0 %1600
      %1602 = vrot.lane.b32.xlu0 %v1429, 24
      %v1603 = vpop.permute.xlu0 %1602
      %1604 = vrot.lane.b32.xlu0 %v1430, 24
      %v1605 = vpop.permute.xlu0 %1604
      %1606 = vrot.lane.b32.xlu0 %v1431, 24
      %v1607 = vpop.permute.xlu0 %1606
      %1608 = vrot.lane.b32.xlu0 %v1432, 24
      %v1609 = vpop.permute.xlu0 %1608
      %1610 = vrot.lane.b32.xlu0 %v1433, 24
      %v1611 = vpop.permute.xlu0 %1610
      %1612 = vrot.lane.b32.xlu0 %v1542, 24
      %v1613 = vpop.permute.xlu0 %1612
      %1614 = vrot.lane.b32.xlu0 %v1543, 24
      %v1615 = vpop.permute.xlu0 %1614
      %v1616 = vadd.f32 %v1506, %v1545
      %v1617 = vadd.f32 %v1507, %v1547
      %v1618 = vadd.f32 %v1508, %v1549
      %v1619 = vadd.f32 %v1509, %v1551
      %v1620 = vadd.f32 %v1510, %v1553
      %v1621 = vadd.f32 %v1511, %v1555
      %v1622 = vadd.f32 %v1512, %v1557
      %v1623 = vadd.f32 %v1513, %v1559
      %v1624 = vadd.f32 %v1514, %v1561
      %v1625 = vadd.f32 %v1515, %v1563
      %v1626 = vadd.f32 %v1516, %v1565
      %v1627 = vadd.f32 %v1517, %v1567
      %v1628 = vadd.f32 %v1518, %v1569
      %v1629 = vadd.f32 %v1519, %v1571
      %v1630 = vadd.f32 %v1520, %v1573
      %v1631 = vadd.f32 %v1521, %v1575
      %v1632 = vadd.f32 %v1522, %v1577
      %v1633 = vadd.f32 %v1523, %v1579
      %v1634 = vadd.f32 %v1524, %v1581
      %v1635 = vadd.f32 %v1525, %v1583
      %v1636 = vadd.f32 %v1526, %v1585
      %v1637 = vadd.f32 %v1527, %v1587
      %v1638 = vadd.f32 %v1528, %v1589
      %v1639 = vadd.f32 %v1529, %v1591
      %v1640 = vadd.f32 %v1530, %v1593
      %v1641 = vadd.f32 %v1531, %v1595
      %v1642 = vadd.f32 %v1532, %v1597
      %v1643 = vadd.f32 %v1533, %v1599
      %v1644 = vadd.f32 %v1534, %v1601
      %v1645 = vadd.f32 %v1535, %v1603
      %v1646 = vadd.f32 %v1536, %v1605
      %v1647 = vadd.f32 %v1537, %v1607
      %v1648 = vadd.f32 %v1538, %v1609
      %v1649 = vadd.f32 %v1539, %v1611
      %v1650 = vadd.f32 %v1540, %v1613
      %v1651 = vadd.f32 %v1541, %v1615
      %v1652 = vld [vmem:[#allocation2 + $0x2a] sm:$0xff]
      %v1653 = vld [vmem:[#allocation2 + $0x32] sm:$0xff]
      %v1654 = vld [vmem:[#allocation2 + $0x3a] sm:$0xff]
      %v1655 = vld [vmem:[#allocation2 + $0x42] sm:$0xff]
      %v1656 = vld [vmem:[#allocation2 + $0x4a] sm:$0xff]
      %v1657 = vld [vmem:[#allocation2 + $0x52] sm:$0xff]
      %v1658 = vld [vmem:[#allocation2 + $0x5a] sm:$0xff]
      %v1659 = vld [vmem:[#allocation2 + $0x62] sm:$0xff]
      %v1660 = vld [vmem:[#allocation2 + $0x6a] sm:$0xff]
      %v1661 = vld [vmem:[#allocation2 + $0x72] sm:$0xff]
      %v1662 = vld [vmem:[#allocation2 + $0x7a] sm:$0xff]
      %v1663 = vld [vmem:[#allocation2 + $0x82] sm:$0xff]
      %v1664 = vld [vmem:[#allocation2 + $0x8a] sm:$0xff]
      %v1665 = vld [vmem:[#allocation2 + $0x92] sm:$0xff]
      %v1666 = vld [vmem:[#allocation2 + $0x9a] sm:$0xff]
      %v1667 = vld [vmem:[#allocation2 + $0xa2] sm:$0xff]
      %v1668 = vld [vmem:[#allocation2 + $0xaa] sm:$0xff]
      %v1669 = vld [vmem:[#allocation2 + $0xb2] sm:$0xff]
      %v1670 = vld [vmem:[#allocation2 + $0xba] sm:$0xff]
      %v1671 = vld [vmem:[#allocation2 + $0xc2] sm:$0xff]
      %v1672 = vld [vmem:[#allocation2 + $0xca] sm:$0xff]
      %v1673 = vld [vmem:[#allocation2 + $0xd2] sm:$0xff]
      %v1674 = vld [vmem:[#allocation2 + $0xda] sm:$0xff]
      %v1675 = vld [vmem:[#allocation2 + $0xe2] sm:$0xff]
      %v1676 = vld [vmem:[#allocation2 + $0xea] sm:$0xff]
      %v1677 = vld [vmem:[#allocation2 + $0xf2] sm:$0xff]
      %v1678 = vld [vmem:[#allocation2 + $0xfa] sm:$0xff]
      %v1679 = vld [vmem:[#allocation2 + $0x102] sm:$0xff]
      %v1680 = vld [vmem:[#allocation2 + $0x10a] sm:$0xff]
      %v1681 = vld [vmem:[#allocation2 + $0x112] sm:$0xff]
      %v1682 = vld [vmem:[#allocation2 + $0x11a] sm:$0xff]
      %v1683 = vld [vmem:[#allocation2 + $0x122] sm:$0xff]
      %v1684 = vld [vmem:[#allocation2 + $0x12a] sm:$0xff]
      %v1685 = vld [vmem:[#allocation2 + $0x132] sm:$0xff]
      %v1686 = vld [vmem:[#allocation2 + $0x13a] sm:$0xff]
      %v1687 = vld [vmem:[#allocation2 + $0x142] sm:$0xff]
      %1688 = vrot.lane.b32.xlu0 %v1652, 28
      %v1689 = vpop.permute.xlu0 %1688
      %1690 = vrot.lane.b32.xlu0 %v1653, 28
      %v1691 = vpop.permute.xlu0 %1690
      %1692 = vrot.lane.b32.xlu0 %v1654, 28
      %v1693 = vpop.permute.xlu0 %1692
      %1694 = vrot.lane.b32.xlu0 %v1655, 28
      %v1695 = vpop.permute.xlu0 %1694
      %1696 = vrot.lane.b32.xlu0 %v1656, 28
      %v1697 = vpop.permute.xlu0 %1696
      %1698 = vrot.lane.b32.xlu0 %v1657, 28
      %v1699 = vpop.permute.xlu0 %1698
      %1700 = vrot.lane.b32.xlu0 %v1658, 28
      %v1701 = vpop.permute.xlu0 %1700
      %1702 = vrot.lane.b32.xlu0 %v1659, 28
      %v1703 = vpop.permute.xlu0 %1702
      %1704 = vrot.lane.b32.xlu0 %v1660, 28
      %v1705 = vpop.permute.xlu0 %1704
      %1706 = vrot.lane.b32.xlu0 %v1661, 28
      %v1707 = vpop.permute.xlu0 %1706
      %1708 = vrot.lane.b32.xlu0 %v1662, 28
      %v1709 = vpop.permute.xlu0 %1708
      %1710 = vrot.lane.b32.xlu0 %v1663, 28
      %v1711 = vpop.permute.xlu0 %1710
      %1712 = vrot.lane.b32.xlu0 %v1664, 28
      %v1713 = vpop.permute.xlu0 %1712
      %1714 = vrot.lane.b32.xlu0 %v1665, 28
      %v1715 = vpop.permute.xlu0 %1714
      %1716 = vrot.lane.b32.xlu0 %v1666, 28
      %v1717 = vpop.permute.xlu0 %1716
      %1718 = vrot.lane.b32.xlu0 %v1667, 28
      %v1719 = vpop.permute.xlu0 %1718
      %1720 = vrot.lane.b32.xlu0 %v1668, 28
      %v1721 = vpop.permute.xlu0 %1720
      %1722 = vrot.lane.b32.xlu0 %v1669, 28
      %v1723 = vpop.permute.xlu0 %1722
      %1724 = vrot.lane.b32.xlu0 %v1670, 28
      %v1725 = vpop.permute.xlu0 %1724
      %1726 = vrot.lane.b32.xlu0 %v1671, 28
      %v1727 = vpop.permute.xlu0 %1726
      %1728 = vrot.lane.b32.xlu0 %v1672, 28
      %v1729 = vpop.permute.xlu0 %1728
      %1730 = vrot.lane.b32.xlu0 %v1673, 28
      %v1731 = vpop.permute.xlu0 %1730
      %1732 = vrot.lane.b32.xlu0 %v1674, 28
      %v1733 = vpop.permute.xlu0 %1732
      %1734 = vrot.lane.b32.xlu0 %v1675, 28
      %v1735 = vpop.permute.xlu0 %1734
      %1736 = vrot.lane.b32.xlu0 %v1676, 28
      %v1737 = vpop.permute.xlu0 %1736
      %1738 = vrot.lane.b32.xlu0 %v1677, 28
      %v1739 = vpop.permute.xlu0 %1738
      %1740 = vrot.lane.b32.xlu0 %v1678, 28
      %v1741 = vpop.permute.xlu0 %1740
      %1742 = vrot.lane.b32.xlu0 %v1679, 28
      %v1743 = vpop.permute.xlu0 %1742
      %1744 = vrot.lane.b32.xlu0 %v1680, 28
      %v1745 = vpop.permute.xlu0 %1744
      %1746 = vrot.lane.b32.xlu0 %v1681, 28
      %v1747 = vpop.permute.xlu0 %1746
      %1748 = vrot.lane.b32.xlu0 %v1682, 28
      %v1749 = vpop.permute.xlu0 %1748
      %1750 = vrot.lane.b32.xlu0 %v1683, 28
      %v1751 = vpop.permute.xlu0 %1750
      %1752 = vrot.lane.b32.xlu0 %v1684, 28
      %v1753 = vpop.permute.xlu0 %1752
      %1754 = vrot.lane.b32.xlu0 %v1685, 28
      %v1755 = vpop.permute.xlu0 %1754
      %1756 = vrot.lane.b32.xlu0 %v1686, 28
      %v1757 = vpop.permute.xlu0 %1756
      %1758 = vrot.lane.b32.xlu0 %v1687, 28
      %v1759 = vpop.permute.xlu0 %1758
      %v1760 = vadd.f32 %v1616, %v1689
      %v1761 = vadd.f32 %v1617, %v1691
      %v1762 = vadd.f32 %v1618, %v1693
      %v1763 = vadd.f32 %v1619, %v1695
      %v1764 = vadd.f32 %v1620, %v1697
      %v1765 = vadd.f32 %v1621, %v1699
      %v1766 = vadd.f32 %v1622, %v1701
      %v1767 = vadd.f32 %v1623, %v1703
      %v1768 = vadd.f32 %v1624, %v1705
      %v1769 = vadd.f32 %v1625, %v1707
      %v1770 = vadd.f32 %v1626, %v1709
      %v1771 = vadd.f32 %v1627, %v1711
      %v1772 = vadd.f32 %v1628, %v1713
      %v1773 = vadd.f32 %v1629, %v1715
      %v1774 = vadd.f32 %v1630, %v1717
      %v1775 = vadd.f32 %v1631, %v1719
      %v1776 = vadd.f32 %v1632, %v1721
      %v1777 = vadd.f32 %v1633, %v1723
      %v1778 = vadd.f32 %v1634, %v1725
      %v1779 = vadd.f32 %v1635, %v1727
      %v1780 = vadd.f32 %v1636, %v1729
      %v1781 = vadd.f32 %v1637, %v1731
      %v1782 = vadd.f32 %v1638, %v1733
      %v1783 = vadd.f32 %v1639, %v1735
      %v1784 = vadd.f32 %v1640, %v1737
      %v1785 = vadd.f32 %v1641, %v1739
      %v1786 = vadd.f32 %v1642, %v1741
      %v1787 = vadd.f32 %v1643, %v1743
      %v1788 = vadd.f32 %v1644, %v1745
      %v1789 = vadd.f32 %v1645, %v1747
      %v1790 = vadd.f32 %v1646, %v1749
      %v1791 = vadd.f32 %v1647, %v1751
      %v1792 = vadd.f32 %v1648, %v1753
      %v1793 = vadd.f32 %v1649, %v1755
      %v1794 = vadd.f32 %v1650, %v1757
      %v1795 = vadd.f32 %v1651, %v1759
      %v1796 = vld [vmem:[#allocation2 + $0x2b] sm:$0xff]
      %v1797 = vld [vmem:[#allocation2 + $0x33] sm:$0xff]
      %v1798 = vld [vmem:[#allocation2 + $0x3b] sm:$0xff]
      %v1799 = vld [vmem:[#allocation2 + $0x43] sm:$0xff]
      %v1800 = vld [vmem:[#allocation2 + $0x4b] sm:$0xff]
      %v1801 = vld [vmem:[#allocation2 + $0x53] sm:$0xff]
      %v1802 = vld [vmem:[#allocation2 + $0x5b] sm:$0xff]
      %v1803 = vld [vmem:[#allocation2 + $0x63] sm:$0xff]
      %v1804 = vld [vmem:[#allocation2 + $0x6b] sm:$0xff]
      %v1805 = vld [vmem:[#allocation2 + $0x73] sm:$0xff]
      %v1806 = vld [vmem:[#allocation2 + $0x7b] sm:$0xff]
      %v1807 = vld [vmem:[#allocation2 + $0x83] sm:$0xff]
      %v1808 = vld [vmem:[#allocation2 + $0x8b] sm:$0xff]
      %v1809 = vld [vmem:[#allocation2 + $0x93] sm:$0xff]
      %v1810 = vld [vmem:[#allocation2 + $0x9b] sm:$0xff]
      %v1811 = vld [vmem:[#allocation2 + $0xa3] sm:$0xff]
      %v1812 = vld [vmem:[#allocation2 + $0xab] sm:$0xff]
      %v1813 = vld [vmem:[#allocation2 + $0xb3] sm:$0xff]
      %v1814 = vld [vmem:[#allocation2 + $0xbb] sm:$0xff]
      %v1815 = vld [vmem:[#allocation2 + $0xc3] sm:$0xff]
      %v1816 = vld [vmem:[#allocation2 + $0xcb] sm:$0xff]
      %v1817 = vld [vmem:[#allocation2 + $0xd3] sm:$0xff]
      %v1818 = vld [vmem:[#allocation2 + $0xdb] sm:$0xff]
      %v1819 = vld [vmem:[#allocation2 + $0xe3] sm:$0xff]
      %v1820 = vld [vmem:[#allocation2 + $0xeb] sm:$0xff]
      %v1821 = vld [vmem:[#allocation2 + $0xf3] sm:$0xff]
      %v1822 = vld [vmem:[#allocation2 + $0xfb] sm:$0xff]
      %v1823 = vld [vmem:[#allocation2 + $0x103] sm:$0xff]
      %v1824 = vld [vmem:[#allocation2 + $0x10b] sm:$0xff]
      %v1825 = vld [vmem:[#allocation2 + $0x113] sm:$0xff]
      %v1826 = vld [vmem:[#allocation2 + $0x11b] sm:$0xff]
      %v1827 = vld [vmem:[#allocation2 + $0x123] sm:$0xff]
      %v1828 = vld [vmem:[#allocation2 + $0x12b] sm:$0xff]
      %v1829 = vld [vmem:[#allocation2 + $0x133] sm:$0xff]
      %v1830 = vld [vmem:[#allocation2 + $0x13b] sm:$0xff]
      %v1831 = vld [vmem:[#allocation2 + $0x143] sm:$0xff]
      %1832 = vrot.lane.b32.xlu0 %v1796, 32
      %v1833 = vpop.permute.xlu0 %1832
      %1834 = vrot.lane.b32.xlu0 %v1797, 32
      %v1835 = vpop.permute.xlu0 %1834
      %1836 = vrot.lane.b32.xlu0 %v1798, 32
      %v1837 = vpop.permute.xlu0 %1836
      %1838 = vrot.lane.b32.xlu0 %v1799, 32
      %v1839 = vpop.permute.xlu0 %1838
      %1840 = vrot.lane.b32.xlu0 %v1800, 32
      %v1841 = vpop.permute.xlu0 %1840
      %1842 = vrot.lane.b32.xlu0 %v1801, 32
      %v1843 = vpop.permute.xlu0 %1842
      %1844 = vrot.lane.b32.xlu0 %v1802, 32
      %v1845 = vpop.permute.xlu0 %1844
      %1846 = vrot.lane.b32.xlu0 %v1803, 32
      %v1847 = vpop.permute.xlu0 %1846
      %1848 = vrot.lane.b32.xlu0 %v1804, 32
      %v1849 = vpop.permute.xlu0 %1848
      %1850 = vrot.lane.b32.xlu0 %v1805, 32
      %v1851 = vpop.permute.xlu0 %1850
      %1852 = vrot.lane.b32.xlu0 %v1806, 32
      %v1853 = vpop.permute.xlu0 %1852
      %1854 = vrot.lane.b32.xlu0 %v1807, 32
      %v1855 = vpop.permute.xlu0 %1854
      %1856 = vrot.lane.b32.xlu0 %v1808, 32
      %v1857 = vpop.permute.xlu0 %1856
      %1858 = vrot.lane.b32.xlu0 %v1809, 32
      %v1859 = vpop.permute.xlu0 %1858
      %1860 = vrot.lane.b32.xlu0 %v1810, 32
      %v1861 = vpop.permute.xlu0 %1860
      %1862 = vrot.lane.b32.xlu0 %v1811, 32
      %v1863 = vpop.permute.xlu0 %1862
      %1864 = vrot.lane.b32.xlu0 %v1812, 32
      %v1865 = vpop.permute.xlu0 %1864
      %1866 = vrot.lane.b32.xlu0 %v1813, 32
      %v1867 = vpop.permute.xlu0 %1866
      %1868 = vrot.lane.b32.xlu0 %v1814, 32
      %v1869 = vpop.permute.xlu0 %1868
      %1870 = vrot.lane.b32.xlu0 %v1815, 32
      %v1871 = vpop.permute.xlu0 %1870
      %1872 = vrot.lane.b32.xlu0 %v1816, 32
      %v1873 = vpop.permute.xlu0 %1872
      %1874 = vrot.lane.b32.xlu0 %v1817, 32
      %v1875 = vpop.permute.xlu0 %1874
      %1876 = vrot.lane.b32.xlu0 %v1818, 32
      %v1877 = vpop.permute.xlu0 %1876
      %1878 = vrot.lane.b32.xlu0 %v1819, 32
      %v1879 = vpop.permute.xlu0 %1878
      %1880 = vrot.lane.b32.xlu0 %v1820, 32
      %v1881 = vpop.permute.xlu0 %1880
      %1882 = vrot.lane.b32.xlu0 %v1821, 32
      %v1883 = vpop.permute.xlu0 %1882
      %1884 = vrot.lane.b32.xlu0 %v1822, 32
      %v1885 = vpop.permute.xlu0 %1884
      %1886 = vrot.lane.b32.xlu0 %v1823, 32
      %v1887 = vpop.permute.xlu0 %1886
      %1888 = vrot.lane.b32.xlu0 %v1824, 32
      %v1889 = vpop.permute.xlu0 %1888
      %1890 = vrot.lane.b32.xlu0 %v1825, 32
      %v1891 = vpop.permute.xlu0 %1890
      %1892 = vrot.lane.b32.xlu0 %v1826, 32
      %v1893 = vpop.permute.xlu0 %1892
      %1894 = vrot.lane.b32.xlu0 %v1827, 32
      %v1895 = vpop.permute.xlu0 %1894
      %1896 = vrot.lane.b32.xlu0 %v1828, 32
      %v1897 = vpop.permute.xlu0 %1896
      %1898 = vrot.lane.b32.xlu0 %v1829, 32
      %v1899 = vpop.permute.xlu0 %1898
      %1900 = vrot.lane.b32.xlu0 %v1830, 32
      %v1901 = vpop.permute.xlu0 %1900
      %1902 = vrot.lane.b32.xlu0 %v1831, 32
      %v1903 = vpop.permute.xlu0 %1902
      %v1904 = vadd.f32 %v1760, %v1833
      %v1905 = vadd.f32 %v1761, %v1835
      %v1906 = vadd.f32 %v1762, %v1837
      %v1907 = vadd.f32 %v1763, %v1839
      %v1908 = vadd.f32 %v1764, %v1841
      %v1909 = vadd.f32 %v1765, %v1843
      %v1910 = vadd.f32 %v1766, %v1845
      %v1911 = vadd.f32 %v1767, %v1847
      %v1912 = vadd.f32 %v1768, %v1849
      %v1913 = vadd.f32 %v1769, %v1851
      %v1914 = vadd.f32 %v1770, %v1853
      %v1915 = vadd.f32 %v1771, %v1855
      %v1916 = vadd.f32 %v1772, %v1857
      %v1917 = vadd.f32 %v1773, %v1859
      %v1918 = vadd.f32 %v1774, %v1861
      %v1919 = vadd.f32 %v1775, %v1863
      %v1920 = vadd.f32 %v1776, %v1865
      %v1921 = vadd.f32 %v1777, %v1867
      %v1922 = vadd.f32 %v1778, %v1869
      %v1923 = vadd.f32 %v1779, %v1871
      %v1924 = vadd.f32 %v1780, %v1873
      %v1925 = vadd.f32 %v1781, %v1875
      %v1926 = vadd.f32 %v1782, %v1877
      %v1927 = vadd.f32 %v1783, %v1879
      %v1928 = vadd.f32 %v1784, %v1881
      %v1929 = vadd.f32 %v1785, %v1883
      %v1930 = vadd.f32 %v1786, %v1885
      %v1931 = vadd.f32 %v1787, %v1887
      %v1932 = vadd.f32 %v1788, %v1889
      %v1933 = vadd.f32 %v1789, %v1891
      %v1934 = vadd.f32 %v1790, %v1893
      %v1935 = vadd.f32 %v1791, %v1895
      %v1936 = vadd.f32 %v1792, %v1897
      %v1937 = vadd.f32 %v1793, %v1899
      %v1938 = vadd.f32 %v1794, %v1901
      %v1939 = vadd.f32 %v1795, %v1903
      %v1940 = vpack.c.bf16 %v1905, %v1904
      %v1941 = vpack.c.bf16 %v1907, %v1906
      %v1942 = vpack.c.bf16 %v1909, %v1908
      %v1943 = vpack.c.bf16 %v1911, %v1910
      %v1944 = vpack.c.bf16 %v1913, %v1912
      %v1945 = vpack.c.bf16 %v1915, %v1914
      %v1946 = vpack.c.bf16 %v1917, %v1916
      %v1947 = vpack.c.bf16 %v1919, %v1918
      %v1948 = vpack.c.bf16 %v1921, %v1920
      %v1949 = vpack.c.bf16 %v1923, %v1922
      %v1950 = vpack.c.bf16 %v1925, %v1924
      %v1951 = vpack.c.bf16 %v1927, %v1926
      %v1952 = vpack.c.bf16 %v1929, %v1928
      %v1953 = vpack.c.bf16 %v1931, %v1930
      %v1954 = vpack.c.bf16 %v1933, %v1932
      %v1955 = vpack.c.bf16 %v1935, %v1934
      %v1956 = vpack.c.bf16 %v1937, %v1936
      %v1957 = vpack.c.bf16 %v1939, %v1938
      %v1958 = vld [vmem:[%s4] sm:$0xf]
      %v1959 = vld [vmem:[%s4 + $0x4] sm:$0xf]
      %v1960 = vld [vmem:[%s4 + $0x8] sm:$0xf]
      %v1961 = vld [vmem:[%s4 + $0xc] sm:$0xf]
      %v1962 = vld [vmem:[%s4 + $0x10] sm:$0xf]
      %v1963 = vld [vmem:[%s4 + $0x14] sm:$0xf]
      %v1964 = vld [vmem:[%s4 + $0x18] sm:$0xf]
      %v1965 = vld [vmem:[%s4 + $0x1c] sm:$0xf]
      %v1966 = vld [vmem:[%s4 + $0x20] sm:$0xf]
      %v1967 = vld [vmem:[%s4 + $0x24] sm:$0xf]
      %v1968 = vld [vmem:[%s4 + $0x28] sm:$0xf]
      %v1969 = vld [vmem:[%s4 + $0x2c] sm:$0xf]
      %v1970 = vld [vmem:[%s4 + $0x30] sm:$0xf]
      %v1971 = vld [vmem:[%s4 + $0x34] sm:$0xf]
      %v1972 = vld [vmem:[%s4 + $0x38] sm:$0xf]
      %v1973 = vld [vmem:[%s4 + $0x3c] sm:$0xf]
      %v1990 = vunpack.c.l.b16 %v1958
      %v1991 = vunpack.c.l.b16 %v1959
      %v1992 = vunpack.c.l.b16 %v1960
      %v1993 = vunpack.c.l.b16 %v1961
      %v1994 = vunpack.c.l.b16 %v1962
      %v1995 = vunpack.c.l.b16 %v1963
      %v1996 = vunpack.c.l.b16 %v1964
      %v1997 = vunpack.c.l.b16 %v1965
      %v1998 = vunpack.c.l.b16 %v1966
      %v1999 = vunpack.c.l.b16 %v1967
      %v2000 = vunpack.c.l.b16 %v1968
      %v2001 = vunpack.c.l.b16 %v1969
      %v2002 = vunpack.c.l.b16 %v1970
      %v2003 = vunpack.c.l.b16 %v1971
      %v2004 = vunpack.c.l.b16 %v1972
      %v2005 = vunpack.c.l.b16 %v1973
      %v2006 = vpack.c.b16 %v1991, %v1990
      %v2007 = vpack.c.b16 %v1993, %v1992
      %v2008 = vpack.c.b16 %v1995, %v1994
      %v2009 = vpack.c.b16 %v1997, %v1996
      %v2010 = vpack.c.b16 %v1999, %v1998
      %v2011 = vpack.c.b16 %v2001, %v2000
      %v2012 = vpack.c.b16 %v2003, %v2002
      %v2013 = vpack.c.b16 %v2005, %v2004
      %2022 = vmatpush.bf16.msra.mxu0 %v2013
      %2023 = vmatpush.bf16.msra.mxu0 %v2012
      %2024 = vmatpush.bf16.msra.mxu0 %v2011
      %2025 = vmatpush.bf16.msra.mxu0 %v2010
      %2026 = vmatpush.bf16.msra.mxu0 %v2009
      %2027 = vmatpush.bf16.msra.mxu0 %v2008
      %2028 = vmatpush.bf16.msra.mxu0 %v2007
      %2029 = vmatpush.bf16.msra.mxu0 %v2006
      %2030 = vmatmul.bf16.gmra.mxu0 %v1940
      %v2031 = vpop.f32.mrf.mxu0
      %v2032 = vadd.f32 0.0, %v2031
      %v2033 = vpop.f32.mrf.mxu0
      %v2034 = vadd.f32 0.0, %v2033
      %2035 = vmatmul.bf16.gmra.mxu0 %v1941
      %v2036 = vpop.f32.mrf.mxu0
      %v2037 = vadd.f32 0.0, %v2036
      %v2038 = vpop.f32.mrf.mxu0
      %v2039 = vadd.f32 0.0, %v2038
      %2040 = vmatmul.bf16.gmra.mxu0 %v1942
      %v2041 = vpop.f32.mrf.mxu0
      %v2042 = vadd.f32 0.0, %v2041
      %v2043 = vpop.f32.mrf.mxu0
      %v2044 = vadd.f32 0.0, %v2043
      %2045 = vmatmul.bf16.gmra.mxu0 %v1943
      %v2046 = vpop.f32.mrf.mxu0
      %v2047 = vadd.f32 0.0, %v2046
      %v2048 = vpop.f32.mrf.mxu0
      %v2049 = vadd.f32 0.0, %v2048
      %2050 = vmatmul.bf16.gmra.mxu0 %v1944
      %v2051 = vpop.f32.mrf.mxu0
      %v2052 = vadd.f32 0.0, %v2051
      %v2053 = vpop.f32.mrf.mxu0
      %v2054 = vadd.f32 0.0, %v2053
      %2055 = vmatmul.bf16.gmra.mxu0 %v1945
      %v2056 = vpop.f32.mrf.mxu0
      %v2057 = vadd.f32 0.0, %v2056
      %v2058 = vpop.f32.mrf.mxu0
      %v2059 = vadd.f32 0.0, %v2058
      %2060 = vmatmul.bf16.gmra.mxu0 %v1946
      %v2061 = vpop.f32.mrf.mxu0
      %v2062 = vadd.f32 0.0, %v2061
      %v2063 = vpop.f32.mrf.mxu0
      %v2064 = vadd.f32 0.0, %v2063
      %2065 = vmatmul.bf16.gmra.mxu0 %v1947
      %v2066 = vpop.f32.mrf.mxu0
      %v2067 = vadd.f32 0.0, %v2066
      %v2068 = vpop.f32.mrf.mxu0
      %v2069 = vadd.f32 0.0, %v2068
      %2070 = vmatmul.bf16.gmra.mxu0 %v1948
      %v2071 = vpop.f32.mrf.mxu0
      %v2072 = vadd.f32 0.0, %v2071
      %v2073 = vpop.f32.mrf.mxu0
      %v2074 = vadd.f32 0.0, %v2073
      %2075 = vmatmul.bf16.gmra.mxu0 %v1949
      %v2076 = vpop.f32.mrf.mxu0
      %v2077 = vadd.f32 0.0, %v2076
      %v2078 = vpop.f32.mrf.mxu0
      %v2079 = vadd.f32 0.0, %v2078
      %2080 = vmatmul.bf16.gmra.mxu0 %v1950
      %v2081 = vpop.f32.mrf.mxu0
      %v2082 = vadd.f32 0.0, %v2081
      %v2083 = vpop.f32.mrf.mxu0
      %v2084 = vadd.f32 0.0, %v2083
      %2085 = vmatmul.bf16.gmra.mxu0 %v1951
      %v2086 = vpop.f32.mrf.mxu0
      %v2087 = vadd.f32 0.0, %v2086
      %v2088 = vpop.f32.mrf.mxu0
      %v2089 = vadd.f32 0.0, %v2088
      %2090 = vmatmul.bf16.gmra.mxu0 %v1952
      %v2091 = vpop.f32.mrf.mxu0
      %v2092 = vadd.f32 0.0, %v2091
      %v2093 = vpop.f32.mrf.mxu0
      %v2094 = vadd.f32 0.0, %v2093
      %2095 = vmatmul.bf16.gmra.mxu0 %v1953
      %v2096 = vpop.f32.mrf.mxu0
      %v2097 = vadd.f32 0.0, %v2096
      %v2098 = vpop.f32.mrf.mxu0
      %v2099 = vadd.f32 0.0, %v2098
      %2100 = vmatmul.bf16.gmra.mxu0 %v1954
      %v2101 = vpop.f32.mrf.mxu0
      %v2102 = vadd.f32 0.0, %v2101
      %v2103 = vpop.f32.mrf.mxu0
      %v2104 = vadd.f32 0.0, %v2103
      %2105 = vmatmul.bf16.gmra.mxu0 %v1955
      %v2106 = vpop.f32.mrf.mxu0
      %v2107 = vadd.f32 0.0, %v2106
      %v2108 = vpop.f32.mrf.mxu0
      %v2109 = vadd.f32 0.0, %v2108
      %2110 = vmatmul.bf16.gmra.mxu0 %v1956
      %v2111 = vpop.f32.mrf.mxu0
      %v2112 = vadd.f32 0.0, %v2111
      %v2113 = vpop.f32.mrf.mxu0
      %v2114 = vadd.f32 0.0, %v2113
      %2115 = vmatmul.bf16.gmra.mxu0 %v1957
      %v2116 = vpop.f32.mrf.mxu0
      %v2117 = vadd.f32 0.0, %v2116
      %v2118 = vpop.f32.mrf.mxu0
      %v2119 = vadd.f32 0.0, %v2118
      %2120 = vdwg.mxu0
      %v2121 = vld [vmem:[%s1 + $0x18] sm:$0xff]
      %v2122 = vld [vmem:[%s1 + $0x20] sm:$0xff]
      %v2123 = vld [vmem:[%s1 + $0x28] sm:$0xff]
      %v2124 = vld [vmem:[%s1 + $0x30] sm:$0xff]
      %v2125 = vld [vmem:[%s1 + $0x38] sm:$0xff]
      %v2126 = vld [vmem:[%s1 + $0x40] sm:$0xff]
      %v2127 = vld [vmem:[%s1 + $0x48] sm:$0xff]
      %v2128 = vld [vmem:[%s1 + $0x50] sm:$0xff]
      %v2129 = vld [vmem:[%s1 + $0x58] sm:$0xff]
      %v2130 = vld [vmem:[%s1 + $0x60] sm:$0xff]
      %v2131 = vld [vmem:[%s1 + $0x68] sm:$0xff]
      %v2132 = vld [vmem:[%s1 + $0x70] sm:$0xff]
      %v2133 = vld [vmem:[%s1 + $0x78] sm:$0xff]
      %v2134 = vld [vmem:[%s1 + $0x80] sm:$0xff]
      %v2135 = vld [vmem:[%s1 + $0x88] sm:$0xff]
      %v2136 = vld [vmem:[%s1 + $0x90] sm:$0xff]
      %v2137 = vld [vmem:[%s1 + $0x98] sm:$0xff]
      %v2138 = vld [vmem:[%s1 + $0xa0] sm:$0xff]
      %v2139 = vld [vmem:[%s1 + $0xa8] sm:$0xff]
      %v2140 = vld [vmem:[%s1 + $0xb0] sm:$0xff]
      %v2141 = vld [vmem:[%s1 + $0xb8] sm:$0xff]
      %v2142 = vld [vmem:[%s1 + $0xc0] sm:$0xff]
      %v2143 = vld [vmem:[%s1 + $0xc8] sm:$0xff]
      %v2144 = vld [vmem:[%s1 + $0xd0] sm:$0xff]
      %v2145 = vld [vmem:[%s1 + $0xd8] sm:$0xff]
      %v2146 = vld [vmem:[%s1 + $0xe0] sm:$0xff]
      %v2147 = vld [vmem:[%s1 + $0xe8] sm:$0xff]
      %v2148 = vld [vmem:[%s1 + $0xf0] sm:$0xff]
      %v2149 = vld [vmem:[%s1 + $0xf8] sm:$0xff]
      %v2150 = vld [vmem:[%s1 + $0x100] sm:$0xff]
      %v2151 = vld [vmem:[%s1 + $0x108] sm:$0xff]
      %v2152 = vld [vmem:[%s1 + $0x110] sm:$0xff]
      %v2153 = vld [vmem:[%s1 + $0x118] sm:$0xff]
      %v2154 = vld [vmem:[%s1 + $0x120] sm:$0xff]
      %v2155 = vld [vmem:[%s1 + $0x128] sm:$0xff]
      %v2156 = vld [vmem:[%s1 + $0x130] sm:$0xff]
      %2158 = vset.pattern.permute.xlu0 0
      %2159 = vperm.xlu0 %2158, %v2121
      %v2160 = vpop.permute.xlu0 %2159
      %2163 = vset.pattern.permute.xlu0 0
      %2164 = vperm.xlu0 %2163, %v2122
      %v2165 = vpop.permute.xlu0 %2164
      %2168 = vset.pattern.permute.xlu0 0
      %2169 = vperm.xlu0 %2168, %v2123
      %v2170 = vpop.permute.xlu0 %2169
      %2173 = vset.pattern.permute.xlu0 0
      %2174 = vperm.xlu0 %2173, %v2124
      %v2175 = vpop.permute.xlu0 %2174
      %2178 = vset.pattern.permute.xlu0 0
      %2179 = vperm.xlu0 %2178, %v2125
      %v2180 = vpop.permute.xlu0 %2179
      %2183 = vset.pattern.permute.xlu0 0
      %2184 = vperm.xlu0 %2183, %v2126
      %v2185 = vpop.permute.xlu0 %2184
      %2188 = vset.pattern.permute.xlu0 0
      %2189 = vperm.xlu0 %2188, %v2127
      %v2190 = vpop.permute.xlu0 %2189
      %2193 = vset.pattern.permute.xlu0 0
      %2194 = vperm.xlu0 %2193, %v2128
      %v2195 = vpop.permute.xlu0 %2194
      %2198 = vset.pattern.permute.xlu0 0
      %2199 = vperm.xlu0 %2198, %v2129
      %v2200 = vpop.permute.xlu0 %2199
      %2203 = vset.pattern.permute.xlu0 0
      %2204 = vperm.xlu0 %2203, %v2130
      %v2205 = vpop.permute.xlu0 %2204
      %2208 = vset.pattern.permute.xlu0 0
      %2209 = vperm.xlu0 %2208, %v2131
      %v2210 = vpop.permute.xlu0 %2209
      %2213 = vset.pattern.permute.xlu0 0
      %2214 = vperm.xlu0 %2213, %v2132
      %v2215 = vpop.permute.xlu0 %2214
      %2218 = vset.pattern.permute.xlu0 0
      %2219 = vperm.xlu0 %2218, %v2133
      %v2220 = vpop.permute.xlu0 %2219
      %2223 = vset.pattern.permute.xlu0 0
      %2224 = vperm.xlu0 %2223, %v2134
      %v2225 = vpop.permute.xlu0 %2224
      %2228 = vset.pattern.permute.xlu0 0
      %2229 = vperm.xlu0 %2228, %v2135
      %v2230 = vpop.permute.xlu0 %2229
      %2233 = vset.pattern.permute.xlu0 0
      %2234 = vperm.xlu0 %2233, %v2136
      %v2235 = vpop.permute.xlu0 %2234
      %2238 = vset.pattern.permute.xlu0 0
      %2239 = vperm.xlu0 %2238, %v2137
      %v2240 = vpop.permute.xlu0 %2239
      %2243 = vset.pattern.permute.xlu0 0
      %2244 = vperm.xlu0 %2243, %v2138
      %v2245 = vpop.permute.xlu0 %2244
      %2248 = vset.pattern.permute.xlu0 0
      %2249 = vperm.xlu0 %2248, %v2139
      %v2250 = vpop.permute.xlu0 %2249
      %2253 = vset.pattern.permute.xlu0 0
      %2254 = vperm.xlu0 %2253, %v2140
      %v2255 = vpop.permute.xlu0 %2254
      %2258 = vset.pattern.permute.xlu0 0
      %2259 = vperm.xlu0 %2258, %v2141
      %v2260 = vpop.permute.xlu0 %2259
      %2263 = vset.pattern.permute.xlu0 0
      %2264 = vperm.xlu0 %2263, %v2142
      %v2265 = vpop.permute.xlu0 %2264
      %2268 = vset.pattern.permute.xlu0 0
      %2269 = vperm.xlu0 %2268, %v2143
      %v2270 = vpop.permute.xlu0 %2269
      %2273 = vset.pattern.permute.xlu0 0
      %2274 = vperm.xlu0 %2273, %v2144
      %v2275 = vpop.permute.xlu0 %2274
      %2278 = vset.pattern.permute.xlu0 0
      %2279 = vperm.xlu0 %2278, %v2145
      %v2280 = vpop.permute.xlu0 %2279
      %2283 = vset.pattern.permute.xlu0 0
      %2284 = vperm.xlu0 %2283, %v2146
      %v2285 = vpop.permute.xlu0 %2284
      %2288 = vset.pattern.permute.xlu0 0
      %2289 = vperm.xlu0 %2288, %v2147
      %v2290 = vpop.permute.xlu0 %2289
      %2293 = vset.pattern.permute.xlu0 0
      %2294 = vperm.xlu0 %2293, %v2148
      %v2295 = vpop.permute.xlu0 %2294
      %2298 = vset.pattern.permute.xlu0 0
      %2299 = vperm.xlu0 %2298, %v2149
      %v2300 = vpop.permute.xlu0 %2299
      %2303 = vset.pattern.permute.xlu0 0
      %2304 = vperm.xlu0 %2303, %v2150
      %v2305 = vpop.permute.xlu0 %2304
      %2308 = vset.pattern.permute.xlu0 0
      %2309 = vperm.xlu0 %2308, %v2151
      %v2310 = vpop.permute.xlu0 %2309
      %2313 = vset.pattern.permute.xlu0 0
      %2314 = vperm.xlu0 %2313, %v2152
      %v2315 = vpop.permute.xlu0 %2314
      %2318 = vset.pattern.permute.xlu0 0
      %2319 = vperm.xlu0 %2318, %v2153
      %v2320 = vpop.permute.xlu0 %2319
      %2323 = vset.pattern.permute.xlu0 0
      %2324 = vperm.xlu0 %2323, %v2154
      %v2325 = vpop.permute.xlu0 %2324
      %2328 = vset.pattern.permute.xlu0 0
      %2329 = vperm.xlu0 %2328, %v2155
      %v2330 = vpop.permute.xlu0 %2329
      %2333 = vset.pattern.permute.xlu0 0
      %2334 = vperm.xlu0 %2333, %v2156
      %v2335 = vpop.permute.xlu0 %2334
      %v2337 = vmul.f32 %v2032, %v2160
      %v2338 = vmul.f32 %v2034, %v2165
      %v2339 = vmul.f32 %v2037, %v2170
      %v2340 = vmul.f32 %v2039, %v2175
      %v2341 = vmul.f32 %v2042, %v2180
      %v2342 = vmul.f32 %v2044, %v2185
      %v2343 = vmul.f32 %v2047, %v2190
      %v2344 = vmul.f32 %v2049, %v2195
      %v2345 = vmul.f32 %v2052, %v2200
      %v2346 = vmul.f32 %v2054, %v2205
      %v2347 = vmul.f32 %v2057, %v2210
      %v2348 = vmul.f32 %v2059, %v2215
      %v2349 = vmul.f32 %v2062, %v2220
      %v2350 = vmul.f32 %v2064, %v2225
      %v2351 = vmul.f32 %v2067, %v2230
      %v2352 = vmul.f32 %v2069, %v2235
      %v2353 = vmul.f32 %v2072, %v2240
      %v2354 = vmul.f32 %v2074, %v2245
      %v2355 = vmul.f32 %v2077, %v2250
      %v2356 = vmul.f32 %v2079, %v2255
      %v2357 = vmul.f32 %v2082, %v2260
      %v2358 = vmul.f32 %v2084, %v2265
      %v2359 = vmul.f32 %v2087, %v2270
      %v2360 = vmul.f32 %v2089, %v2275
      %v2361 = vmul.f32 %v2092, %v2280
      %v2362 = vmul.f32 %v2094, %v2285
      %v2363 = vmul.f32 %v2097, %v2290
      %v2364 = vmul.f32 %v2099, %v2295
      %v2365 = vmul.f32 %v2102, %v2300
      %v2366 = vmul.f32 %v2104, %v2305
      %v2367 = vmul.f32 %v2107, %v2310
      %v2368 = vmul.f32 %v2109, %v2315
      %v2369 = vmul.f32 %v2112, %v2320
      %v2370 = vmul.f32 %v2114, %v2325
      %v2371 = vmul.f32 %v2117, %v2330
      %v2372 = vmul.f32 %v2119, %v2335
      %v2373 = vadd.f32 %v2337, %v2338
      %v2374 = vadd.f32 %v2373, %v2339
      %v2375 = vadd.f32 %v2374, %v2340
      %v2376 = vadd.f32 %v2375, %v2341
      %v2377 = vadd.f32 %v2376, %v2342
      %v2378 = vadd.f32 %v2377, %v2343
      %v2379 = vadd.f32 %v2378, %v2344
      %v2380 = vadd.f32 %v2379, %v2345
      %v2381 = vadd.f32 %v2380, %v2346
      %v2382 = vadd.f32 %v2381, %v2347
      %v2383 = vadd.f32 %v2382, %v2348
      %v2384 = vadd.f32 %v2383, %v2349
      %v2385 = vadd.f32 %v2384, %v2350
      %v2386 = vadd.f32 %v2385, %v2351
      %v2387 = vadd.f32 %v2386, %v2352
      %v2388 = vadd.f32 %v2387, %v2353
      %v2389 = vadd.f32 %v2388, %v2354
      %v2390 = vadd.f32 %v2389, %v2355
      %v2391 = vadd.f32 %v2390, %v2356
      %v2392 = vadd.f32 %v2391, %v2357
      %v2393 = vadd.f32 %v2392, %v2358
      %v2394 = vadd.f32 %v2393, %v2359
      %v2395 = vadd.f32 %v2394, %v2360
      %v2396 = vadd.f32 %v2395, %v2361
      %v2397 = vadd.f32 %v2396, %v2362
      %v2398 = vadd.f32 %v2397, %v2363
      %v2399 = vadd.f32 %v2398, %v2364
      %v2400 = vadd.f32 %v2399, %v2365
      %v2401 = vadd.f32 %v2400, %v2366
      %v2402 = vadd.f32 %v2401, %v2367
      %v2403 = vadd.f32 %v2402, %v2368
      %v2404 = vadd.f32 %v2403, %v2369
      %v2405 = vadd.f32 %v2404, %v2370
      %v2406 = vadd.f32 %v2405, %v2371
      %v2407 = vadd.f32 %v2406, %v2372
      %v2408 = vrot.slane %v2407, 4
      %v2409 = vadd.f32 %v2407, %v2408
      %v2410 = vrot.slane %v2409, 2
      %v2411 = vadd.f32 %v2409, %v2410
      %v2412 = vrot.slane %v2411, 1
      %v2413 = vadd.f32 %v2411, %v2412
      %2414 = vst [vmem:[%s265] sm:$0x1] %v2413
      %v2415 = vmul.f32 %v2337, %v2032
      %v2416 = vmul.f32 %v2338, %v2034
      %v2417 = vmul.f32 %v2339, %v2037
      %v2418 = vmul.f32 %v2340, %v2039
      %v2419 = vmul.f32 %v2341, %v2042
      %v2420 = vmul.f32 %v2342, %v2044
      %v2421 = vmul.f32 %v2343, %v2047
      %v2422 = vmul.f32 %v2344, %v2049
      %v2423 = vmul.f32 %v2345, %v2052
      %v2424 = vmul.f32 %v2346, %v2054
      %v2425 = vmul.f32 %v2347, %v2057
      %v2426 = vmul.f32 %v2348, %v2059
      %v2427 = vmul.f32 %v2349, %v2062
      %v2428 = vmul.f32 %v2350, %v2064
      %v2429 = vmul.f32 %v2351, %v2067
      %v2430 = vmul.f32 %v2352, %v2069
      %v2431 = vmul.f32 %v2353, %v2072
      %v2432 = vmul.f32 %v2354, %v2074
      %v2433 = vmul.f32 %v2355, %v2077
      %v2434 = vmul.f32 %v2356, %v2079
      %v2435 = vmul.f32 %v2357, %v2082
      %v2436 = vmul.f32 %v2358, %v2084
      %v2437 = vmul.f32 %v2359, %v2087
      %v2438 = vmul.f32 %v2360, %v2089
      %v2439 = vmul.f32 %v2361, %v2092
      %v2440 = vmul.f32 %v2362, %v2094
      %v2441 = vmul.f32 %v2363, %v2097
      %v2442 = vmul.f32 %v2364, %v2099
      %v2443 = vmul.f32 %v2365, %v2102
      %v2444 = vmul.f32 %v2366, %v2104
      %v2445 = vmul.f32 %v2367, %v2107
      %v2446 = vmul.f32 %v2368, %v2109
      %v2447 = vmul.f32 %v2369, %v2112
      %v2448 = vmul.f32 %v2370, %v2114
      %v2449 = vmul.f32 %v2371, %v2117
      %v2450 = vmul.f32 %v2372, %v2119
      %v2451 = vadd.f32 %v2415, %v2416
      %v2452 = vadd.f32 %v2451, %v2417
      %v2453 = vadd.f32 %v2452, %v2418
      %v2454 = vadd.f32 %v2453, %v2419
      %v2455 = vadd.f32 %v2454, %v2420
      %v2456 = vadd.f32 %v2455, %v2421
      %v2457 = vadd.f32 %v2456, %v2422
      %v2458 = vadd.f32 %v2457, %v2423
      %v2459 = vadd.f32 %v2458, %v2424
      %v2460 = vadd.f32 %v2459, %v2425
      %v2461 = vadd.f32 %v2460, %v2426
      %v2462 = vadd.f32 %v2461, %v2427
      %v2463 = vadd.f32 %v2462, %v2428
      %v2464 = vadd.f32 %v2463, %v2429
      %v2465 = vadd.f32 %v2464, %v2430
      %v2466 = vadd.f32 %v2465, %v2431
      %v2467 = vadd.f32 %v2466, %v2432
      %v2468 = vadd.f32 %v2467, %v2433
      %v2469 = vadd.f32 %v2468, %v2434
      %v2470 = vadd.f32 %v2469, %v2435
      %v2471 = vadd.f32 %v2470, %v2436
      %v2472 = vadd.f32 %v2471, %v2437
      %v2473 = vadd.f32 %v2472, %v2438
      %v2474 = vadd.f32 %v2473, %v2439
      %v2475 = vadd.f32 %v2474, %v2440
      %v2476 = vadd.f32 %v2475, %v2441
      %v2477 = vadd.f32 %v2476, %v2442
      %v2478 = vadd.f32 %v2477, %v2443
      %v2479 = vadd.f32 %v2478, %v2444
      %v2480 = vadd.f32 %v2479, %v2445
      %v2481 = vadd.f32 %v2480, %v2446
      %v2482 = vadd.f32 %v2481, %v2447
      %v2483 = vadd.f32 %v2482, %v2448
      %v2484 = vadd.f32 %v2483, %v2449
      %v2485 = vadd.f32 %v2484, %v2450
      %v2486 = vrot.slane %v2485, 4
      %v2487 = vadd.f32 %v2485, %v2486
      %v2488 = vrot.slane %v2487, 2
      %v2489 = vadd.f32 %v2487, %v2488
      %v2490 = vrot.slane %v2489, 1
      %v2491 = vadd.f32 %v2489, %v2490
      %2492 = vst [vmem:[%s265 + $0x1] sm:$0x1] %v2491
      %2493 = vst [vmem:[%s260] sm:$0xff] %v2032
      %2494 = vst [vmem:[%s260 + $0x8] sm:$0xff] %v2034
      %2495 = vst [vmem:[%s260 + $0x10] sm:$0xff] %v2037
      %2496 = vst [vmem:[%s260 + $0x18] sm:$0xff] %v2039
      %2497 = vst [vmem:[%s260 + $0x20] sm:$0xff] %v2042
      %2498 = vst [vmem:[%s260 + $0x28] sm:$0xff] %v2044
      %2499 = vst [vmem:[%s260 + $0x30] sm:$0xff] %v2047
      %2500 = vst [vmem:[%s260 + $0x38] sm:$0xff] %v2049
      %2501 = vst [vmem:[%s260 + $0x40] sm:$0xff] %v2052
      %2502 = vst [vmem:[%s260 + $0x48] sm:$0xff] %v2054
      %2503 = vst [vmem:[%s260 + $0x50] sm:$0xff] %v2057
      %2504 = vst [vmem:[%s260 + $0x58] sm:$0xff] %v2059
      %2505 = vst [vmem:[%s260 + $0x60] sm:$0xff] %v2062
      %2506 = vst [vmem:[%s260 + $0x68] sm:$0xff] %v2064
      %2507 = vst [vmem:[%s260 + $0x70] sm:$0xff] %v2067
      %2508 = vst [vmem:[%s260 + $0x78] sm:$0xff] %v2069
      %2509 = vst [vmem:[%s260 + $0x80] sm:$0xff] %v2072
      %2510 = vst [vmem:[%s260 + $0x88] sm:$0xff] %v2074
      %2511 = vst [vmem:[%s260 + $0x90] sm:$0xff] %v2077
      %2512 = vst [vmem:[%s260 + $0x98] sm:$0xff] %v2079
      %2513 = vst [vmem:[%s260 + $0xa0] sm:$0xff] %v2082
      %2514 = vst [vmem:[%s260 + $0xa8] sm:$0xff] %v2084
      %2515 = vst [vmem:[%s260 + $0xb0] sm:$0xff] %v2087
      %2516 = vst [vmem:[%s260 + $0xb8] sm:$0xff] %v2089
      %2517 = vst [vmem:[%s260 + $0xc0] sm:$0xff] %v2092
      %2518 = vst [vmem:[%s260 + $0xc8] sm:$0xff] %v2094
      %2519 = vst [vmem:[%s260 + $0xd0] sm:$0xff] %v2097
      %2520 = vst [vmem:[%s260 + $0xd8] sm:$0xff] %v2099
      %2521 = vst [vmem:[%s260 + $0xe0] sm:$0xff] %v2102
      %2522 = vst [vmem:[%s260 + $0xe8] sm:$0xff] %v2104
      %2523 = vst [vmem:[%s260 + $0xf0] sm:$0xff] %v2107
      %2524 = vst [vmem:[%s260 + $0xf8] sm:$0xff] %v2109
      %2525 = vst [vmem:[%s260 + $0x100] sm:$0xff] %v2112
      %2526 = vst [vmem:[%s260 + $0x108] sm:$0xff] %v2114
      %2527 = vst [vmem:[%s260 + $0x110] sm:$0xff] %v2117
      %2528 = vst [vmem:[%s260 + $0x118] sm:$0xff] %v2119
      %s2529 = smul.u32 36, %s18
      %p2530 = scmp.lt.s32.totalorder %s2529, 71
      %s2531 = scalar_select %p2530, %s2529, 71
      %s2532 = smul.addr %s2531, 8
      %s2533 = scalar_lea.vmem %s5, %s2532
      %p2534 = scmp.lt.s32.totalorder %s18, 1
      %s2535 = scalar_select %p2534, %s18, 1
      %s2536 = smul.addr %s2535, 8
      %s2537 = scalar_lea.vmem %s6, %s2536
      // Predicated region
      $region41: #{basic_block.4} parent=39 // pred_check
        %p2538 = pneg %p146
      $region42: #{basic_block.4} parent=39 // pred_check_branch
        %2540 = sbr.rel (%p2538) target = $region44
      $region43: #{basic_block.4} parent=39 // pred_region
        %s2541 = smul.u32 36, %s18
      $region44: #{basic_block.4} parent=39 // pred_fallthru
        _
      // Predicated region
      $region45: #{basic_block.4} parent=39 // pred_check
        %p2542 = pneg %p172
      $region46: #{basic_block.4} parent=39 // pred_check_branch
        %2544 = sbr.rel (%p2542) target = $region48
      $region47: #{basic_block.4} parent=39 // pred_region
        _
      $region48: #{basic_block.4} parent=39 // pred_fallthru
        _
    $region40: #{basic_block.4} parent=5 // pred_fallthru
      _
    %p2545 = scmp.le.s32.totalorder 2, %s13
    // Predicated region
    $region49: #{basic_block.4} parent=5 // pred_check
      %p2546 = pneg %p2545
    $region50: #{basic_block.4} parent=5 // pred_check_branch
      %2548 = sbr.rel (%p2546) target = $region52
    $region51: #{basic_block.4} parent=5 // pred_region
      %s2549 = ssub.s32 %s13, 2
      // Predicated region
      $region53: #{basic_block.4} parent=51 // pred_check
        %p2550 = pneg %p152
      $region54: #{basic_block.4} parent=51 // pred_check_branch
        %2552 = sbr.rel (%p2550) target = $region56
      $region55: #{basic_block.4} parent=51 // pred_region
        %s2553 = smul.u32 36, %s19
        %p2554 = scmp.lt.s32.totalorder %s2553, 71
        %s2555 = scalar_select %p2554, %s2553, 71
        %s2556 = smul.addr %s2555, 8
        %s2557 = scalar_lea.vmem %s5, %s2556
      $region56: #{basic_block.4} parent=51 // pred_fallthru
        _
      // Predicated region
      $region57: #{basic_block.4} parent=51 // pred_check
        %p2558 = pneg %p178
      $region58: #{basic_block.4} parent=51 // pred_check_branch
        %2560 = sbr.rel (%p2558) target = $region60
      $region59: #{basic_block.4} parent=51 // pred_region
        %p2561 = scmp.lt.s32.totalorder %s19, 1
        %s2562 = scalar_select %p2561, %s19, 1
        %s2563 = smul.addr %s2562, 8
        %s2564 = scalar_lea.vmem %s6, %s2563
      $region60: #{basic_block.4} parent=51 // pred_fallthru
        _
    $region52: #{basic_block.4} parent=5 // pred_fallthru
      _
  $region6: #{basic_block.4} parent=0 // loop_footer
    %s17 = sadd.s32 1, %s13
  $region7: #{basic_block.4} parent=0 // loop_footer_branch
    %12 = sbr.rel target = $region3
  $region8: #{basic_block.4} parent=0 // loop_exit
    _

</llo_original>
